<compile_context>
chip_gen: v5e
topology: v5e:2x2
jax: 0.10.0
libtpu: 0.0.40
codegen_flags: <defaults>
</compile_context>

<pallas_src>
import functools
import math

import jax
import jax.numpy as jnp
from jax.experimental import pallas as pl
from jax.experimental.pallas import tpu as pltpu


def _round_up(x, m):
    return ((x + m - 1) // m) * m


def _pad2(x, rows, cols):
    pr, pc = rows - x.shape[0], cols - x.shape[1]
    if pr == 0 and pc == 0:
        return x
    return jnp.pad(x, ((0, pr), (0, pc)))


def _plan(N, a_itemsize, tiles=None):
    """Pick (padded_rows, padded_cols, tm, tk) for streaming the (N, N) adjacency."""
    if tiles is not None:
        tm, tk = tiles
        assert tm % 8 == 0 and tk % 128 == 0, "need tm % 8 == 0 and tk % 128 == 0"
    elif N <= 512:
        # Tiny graph: a single block whose dims equal the (padded) array dims,
        # which satisfies the (8, 128) tiling rule without over-padding.
        g = 32 if a_itemsize == 1 else 8          # int8 packs 4/word along sublanes
        tm = tk = _round_up(N, g)
    else:
        tm = 512                                  # >= 2 row blocks -> megacore shards rows
        np512 = _round_up(N, 512)
        budget = 16 * 1024 * 1024                 # A double-buffer cap; v7x-safe (64 MiB VMEM/TC)
        tk = 512
        for cand in (2048, 1024):
            if cand <= np512 and 2 * tm * cand * a_itemsize <= budget:
                tk = cand
                break
    # Rows / columns padded separately (no lcm over-padding).
    return _round_up(N, tm), _round_up(N, tk), tm, tk


def _sage_agg_kernel(a_ref, z_ref, s_ref, scale_ref, alpha_ref, o_ref):
    # a_ref:     [tm, tk]  adjacency tile (f32, or int8 0/1 mask -> cast here)
    # z_ref:     [tk, H]   hoisted neighbor projection  Z = X @ W2
    # s_ref:     [tm, H]   hoisted self term            S = X @ W1 + (b1 + b2)
    # scale_ref: [tm, 1]   per-destination-row scale (1/deg for mean agg, else 1.0)
    # alpha_ref: [1]       PReLU slope, in SMEM
    # o_ref:     [tm, H]   f32 output block; doubles as the K-axis accumulator
    k = pl.program_id(1)

    @pl.when(k == 0)
    def _init():
        o_ref[...] = jnp.zeros_like(o_ref)

    a = a_ref[...].astype(jnp.float32)  # no-op for f32 A; VPU cast for the int8 mask
    o_ref[...] += jnp.dot(a, z_ref[...], preferred_element_type=jnp.float32)

    @pl.when(k == pl.num_programs(1) - 1)
    def _finalize():
        y = s_ref[...] + scale_ref[...] * o_ref[...]
        alpha = alpha_ref[0]  # single shared PReLU parameter (torch default)
        o_ref[...] = jnp.where(y > 0.0, y, alpha * y)


def _sage_layer(A_p, act, W1, b1, W2, b2, alpha, scale, *, tm, tk):
    """One SAGE layer: PReLU(act @ W1 + (b1+b2) + scale * (A_p @ (act @ W2)))."""
    Np_r, Np_c = A_p.shape
    H = W1.shape[1]
    hp = jax.lax.Precision.HIGHEST

    # Hoisted projections: tiny relative to the O(N^2) A stream, done once per
    # layer (not once per row block like before).
    Z = jnp.dot(act, W2, precision=hp).astype(jnp.float32)              # (Np_c, H)
    S = (jnp.dot(act[:Np_r], W1, precision=hp) + (b1 + b2)).astype(jnp.float32)
    alpha_s = jnp.asarray(alpha, jnp.float32).reshape(1)                 # SMEM scalar

    grid = (Np_r // tm, Np_c // tk)
    a_bytes = A_p.dtype.itemsize

    # VMEM footprint: double-buffered A and Z streams + resident S / scale / out.
    footprint = (2 * tm * tk * a_bytes + 2 * tk * H * 4
                 + 2 * (tm * H * 4 + tm * 4) + tm * H * 4)
    vmem_limit = int(min(64 * 2**20, max(32 * 2**20, 2 * footprint)))

    cost = pl.CostEstimate(
        flops=2 * Np_r * Np_c * H,
        transcendentals=0,
        bytes_accessed=(Np_r * Np_c * a_bytes          # A streamed once
                        + grid[0] * Np_c * H * 4        # Z re-read once per row block
                        + 2 * Np_r * H * 4 + Np_r * 4), # S + out + scale
    )

    out = pl.pallas_call(
        _sage_agg_kernel,
        out_shape=jax.ShapeDtypeStruct((Np_r, H), jnp.float32),
        grid=grid,
        in_specs=[
            # Dominant N^2 stream.  Knob: pipeline_mode=pl.Buffered(3) if the
            # A DMA is exposed after enlarging tiles.
            pl.BlockSpec((tm, tk), lambda i, k: (i, k)),
            pl.BlockSpec((tk, H), lambda i, k: (k, 0)),          # Z tile
            pl.BlockSpec((tm, H), lambda i, k: (i, 0)),          # S (self term)
            pl.BlockSpec((tm, 1), lambda i, k: (i, 0)),          # per-row scale
            pl.BlockSpec(memory_space=pltpu.MemorySpace.SMEM),   # PReLU slope
        ],
        out_specs=pl.BlockSpec((tm, H), lambda i, k: (i, 0)),
        compiler_params=pltpu.CompilerParams(
            dimension_semantics=("parallel", "arbitrary"),
            vmem_limit_bytes=vmem_limit,
        ),
        cost_estimate=cost,
    )(A_p, Z, S, scale, alpha_s)
    return out


@functools.partial(jax.jit, static_argnames=("tiles",))
def sage_forward(A, X, params, *, tiles=None):
    """General path: A is an arbitrary dense (N, N) matrix (stand-in for torch.sparse.mm)."""
    N = X.shape[0]
    A = A.astype(jnp.float32)
    Np_r, Np_c, tm, tk = _plan(N, A.dtype.itemsize, tiles)

    A_p = _pad2(A, Np_r, Np_c)                         # padded ONCE, reused by every layer
    scale = jnp.ones((Np_r, 1), jnp.float32)
    act = _pad2(X.astype(jnp.float32), Np_c, X.shape[1])

    for (W1, b1, W2, b2, alpha) in params:
        out = _sage_layer(A_p, act, W1, b1, W2, b2, alpha, scale, tm=tm, tk=tk)
        act = _pad2(out, Np_c, out.shape[1])           # keep activations padded across layers
        # Dropout(p=0.0) is the identity -> no-op.
    return act[None, :N, :]


@functools.partial(jax.jit, static_argnames=("tiles",))
def sage_forward_mean_agg(adj_mask, X, params, *, tiles=None):
    """Optimized path for A = diag(1/deg) @ adj_mask (row-normalized 0/1 adjacency).

    The 0/1 mask is streamed from HBM as int8 (4x less traffic on the dominant
    N^2 stream) and the 1/deg scale is applied in the kernel epilogue.  The
    mask is cast to f32 in-kernel before the MXU, so no int8 MXU support is
    required (works on v5e/v6e/v7x) and numerics stay exact.
    """
    N = X.shape[0]
    Np_r, Np_c, tm, tk = _plan(N, 1, tiles)

    mask = (adj_mask != 0)
    deg = jnp.sum(mask, axis=1).astype(jnp.float32)
    inv_deg = 1.0 / jnp.clip(deg, 1.0, None)

    A_p = _pad2(mask.astype(jnp.int8), Np_r, Np_c)     # padded ONCE
    scale = _pad2(inv_deg.reshape(N, 1), Np_r, 1)
    act = _pad2(X.astype(jnp.float32), Np_c, X.shape[1])

    for (W1, b1, W2, b2, alpha) in params:
        out = _sage_layer(A_p, act, W1, b1, W2, b2, alpha, scale, tm=tm, tk=tk)
        act = _pad2(out, Np_c, out.shape[1])
    return act[None, :N, :]


def init_sage_params(key, inp_dim, hidden_dims):
    """Parameter init mirroring SAGE.__init__ shapes.

    convs1[i], convs2[i]: Linear(d_in, d_out) stored transposed as [d_in, d_out]
      - weights: xavier_uniform
      - biases: layer 0 filled with 0.0 (as in the module); later layers use
        torch's default uniform(-1/sqrt(fan_in), 1/sqrt(fan_in)).
    g[i]: PReLU with a single slope, init 0.25.
    (BatchNorm1d layers are created in __init__ but never used in forward.)
    """
    params = []
    dims = [inp_dim] + list(hidden_dims)
    for i in range(len(hidden_dims)):
        d_in, d_out = dims[i], dims[i + 1]
        key, k1, k2, k3, k4 = jax.random.split(key, 5)
        bound = (6.0 / (d_in + d_out)) ** 0.5  # xavier_uniform gain=1
        W1 = jax.random.uniform(k1, (d_in, d_out), jnp.float32, -bound, bound)
        W2 = jax.random.uniform(k2, (d_in, d_out), jnp.float32, -bound, bound)
        if i == 0:
            b1 = jnp.zeros((d_out,), jnp.float32)
            b2 = jnp.zeros((d_out,), jnp.float32)
        else:
            bb = 1.0 / (d_in ** 0.5)
            b1 = jax.random.uniform(k3, (d_out,), jnp.float32, -bb, bb)
            b2 = jax.random.uniform(k4, (d_out,), jnp.float32, -bb, bb)
        alpha = jnp.float32(0.25)  # PReLU default init
        params.append((W1, b1, W2, b2, alpha))
    return params


if __name__ == "__main__":
    key = jax.random.PRNGKey(0)
    k_a, k_x, k_p = jax.random.split(key, 3)

    N = 512          # number of graph nodes
    inp_dim = 32     # input feature dim
    hidden_dims = [32, 16]

    # Dense adjacency standing in for the sparse A of torch.sparse.mm:
    # 0/1 mask, row-normalized (GraphSAGE-style mean aggregation).
    mask = (jax.random.uniform(k_a, (N, N), jnp.float32) < 0.05).astype(jnp.float32)
    deg = jnp.clip(mask.sum(axis=1, keepdims=True), 1.0, None)
    A = mask / deg

    X = jax.random.normal(k_x, (N, inp_dim), jnp.float32)
    params = init_sage_params(k_p, inp_dim, hidden_dims)

    # Pure-JAX reference (un-reassociated, highest matmul precision).
    def hdot(a, b):
        return jnp.dot(a, b, precision=jax.lax.Precision.HIGHEST)

    def ref_forward(A, X, params):
        temp = X
        for (W1, b1, W2, b2, alpha) in params:
            y = hdot(temp, W1) + b1 + hdot(hdot(A, temp), W2) + b2
            temp = jnp.where(y > 0, y, alpha * y)
        return temp[None, ...]

    ref = ref_forward(A, X, params)

    # 1) General path (arbitrary dense f32 A), default plan (single block at N=512).
    out = sage_forward(A, X, params)
    jax.block_until_ready(out)
    assert out.shape == (1, N, hidden_dims[-1]), out.shape
    assert out.dtype == jnp.float32
    err = float(jnp.max(jnp.abs(out - ref)))
    assert jnp.allclose(out, ref, atol=1e-3, rtol=1e-3), err

    # 2) General path with an explicit multi-block tiling: exercises the K-axis
    #    accumulation into o_ref and the 2-row-block (megacore) path.
    out_t = sage_forward(A, X, params, tiles=(256, 128))
    jax.block_until_ready(out_t)
    err_t = float(jnp.max(jnp.abs(out_t - ref)))
    assert jnp.allclose(out_t, ref, atol=1e-3, rtol=1e-3), err_t

    # 3) Factored path: int8 0/1 mask stream + per-row 1/deg scale in the epilogue.
    out_m = sage_forward_mean_agg(mask, X, params, tiles=(256, 128))
    jax.block_until_ready(out_m)
    err_m = float(jnp.max(jnp.abs(out_m - ref)))
    assert out_m.shape == (1, N, hidden_dims[-1]), out_m.shape
    assert jnp.allclose(out_m, ref, atol=1e-3, rtol=1e-3), err_m

    print("KERNEL_OK")
</pallas_src>

<mosaic_0001>
module attributes {stable_mosaic.version = 11 : i64} {
  func.func @_sage_agg_kernel(%arg0: i32, %arg1: i32, %arg2: memref<512x512xf32, #tpu.memory_space<vmem>>, %arg3: memref<512x32xf32, #tpu.memory_space<vmem>>, %arg4: memref<512x32xf32, #tpu.memory_space<vmem>>, %arg5: memref<512x1xf32, #tpu.memory_space<vmem>>, %arg6: memref<1xf32, #tpu.memory_space<smem>>, %arg7: memref<512x32xf32, #tpu.memory_space<vmem>>) attributes {dimension_semantics = [#tpu.dimension_semantics<parallel>, #tpu.dimension_semantics<arbitrary>], iteration_bounds = array<i64: 1, 1>, scalar_prefetch = 0 : i64, scratch_operands = 0 : i64, tpu.core_type = #tpu.core_type<tc>, window_params = [{transform_indices = @transform_0, window_bounds = array<i64: 512, 512>}, {transform_indices = @transform_1, window_bounds = array<i64: 512, 32>}, {transform_indices = @transform_2, window_bounds = array<i64: 512, 32>}, {transform_indices = @transform_3, window_bounds = array<i64: 512, 1>}, {transform_indices = @transform_4, window_bounds = array<i64: 1>}, {transform_indices = @transform_5, window_bounds = array<i64: 512, 32>}]} {
    %c0_i32 = arith.constant 0 : i32
    %0 = arith.cmpi eq, %arg1, %c0_i32 : i32
    %1 = arith.extui %0 : i1 to i32
    %c0_i32_0 = arith.constant 0 : i32
    %2 = arith.cmpi ne, %1, %c0_i32_0 : i32
    scf.if %2 {
      %cst_10 = arith.constant 0.000000e+00 : f32
      %12 = vector.broadcast %cst_10 : f32 to vector<512x32xf32>
      %c0_11 = arith.constant 0 : index
      %c0_12 = arith.constant 0 : index
      %13 = vector.load %arg7[%c0_11, %c0_12] : memref<512x32xf32, #tpu.memory_space<vmem>>, vector<512x32xf32>
      tpu.vector_store %arg7[%c0_11, %c0_12], %12 {strides = array<i32>} : memref<512x32xf32, #tpu.memory_space<vmem>>, vector<512x32xf32>,
    } else {
    }
    %c0 = arith.constant 0 : index
    %c0_1 = arith.constant 0 : index
    %3 = vector.load %arg2[%c0, %c0_1] : memref<512x512xf32, #tpu.memory_space<vmem>>, vector<512x512xf32>
    %c0_2 = arith.constant 0 : index
    %c0_3 = arith.constant 0 : index
    %4 = vector.load %arg7[%c0_2, %c0_3] : memref<512x32xf32, #tpu.memory_space<vmem>>, vector<512x32xf32>
    %c0_4 = arith.constant 0 : index
    %c0_5 = arith.constant 0 : index
    %5 = vector.load %arg3[%c0_4, %c0_5] : memref<512x32xf32, #tpu.memory_space<vmem>>, vector<512x32xf32>
    %cst = arith.constant dense<0.000000e+00> : vector<512x32xf32>
    %6 = tpu.matmul %3, %5, %cst {dimension_numbers = #tpu.dot_dimension_numbers<[1], [0], [0], [1], [0, 0, 1, 1], [], []>} : vector<512x512xf32>, vector<512x32xf32>, vector<512x32xf32> -> vector<512x32xf32>
    %7 = arith.addf %4, %6 : vector<512x32xf32>
    %c0_6 = arith.constant 0 : index
    %c0_7 = arith.constant 0 : index
    %8 = vector.load %arg7[%c0_6, %c0_7] : memref<512x32xf32, #tpu.memory_space<vmem>>, vector<512x32xf32>
    tpu.vector_store %arg7[%c0_6, %c0_7], %7 {strides = array<i32>} : memref<512x32xf32, #tpu.memory_space<vmem>>, vector<512x32xf32>,
    %c0_i32_8 = arith.constant 0 : i32
    %9 = arith.cmpi eq, %arg1, %c0_i32_8 : i32
    %10 = arith.extui %9 : i1 to i32
    %c0_i32_9 = arith.constant 0 : i32
    %11 = arith.cmpi ne, %10, %c0_i32_9 : i32
    scf.if %11 {
      %c0_10 = arith.constant 0 : index
      %c0_11 = arith.constant 0 : index
      %12 = vector.load %arg4[%c0_10, %c0_11] : memref<512x32xf32, #tpu.memory_space<vmem>>, vector<512x32xf32>
      %c0_12 = arith.constant 0 : index
      %c0_13 = arith.constant 0 : index
      %13 = vector.load %arg5[%c0_12, %c0_13] : memref<512x1xf32, #tpu.memory_space<vmem>>, vector<512x1xf32>
      %c0_14 = arith.constant 0 : index
      %c0_15 = arith.constant 0 : index
      %14 = vector.load %arg7[%c0_14, %c0_15] : memref<512x32xf32, #tpu.memory_space<vmem>>, vector<512x32xf32>
      %15 = vector.broadcast %13 : vector<512x1xf32> to vector<512x32xf32>
      %16 = arith.mulf %15, %14 : vector<512x32xf32>
      %17 = arith.addf %12, %16 : vector<512x32xf32>
      %c0_16 = arith.constant 0 : index
      %18 = memref.load %arg6[%c0_16] : memref<1xf32, #tpu.memory_space<smem>>
      %cst_17 = arith.constant 0.000000e+00 : f32
      %19 = vector.broadcast %cst_17 : f32 to vector<512x32xf32>
      %20 = arith.cmpf ogt, %17, %19 : vector<512x32xf32>
      %21 = vector.broadcast %18 : f32 to vector<512x32xf32>
      %22 = arith.mulf %21, %17 : vector<512x32xf32>
      %23 = arith.select %20, %17, %22 : vector<512x32xi1>, vector<512x32xf32>
      %c0_18 = arith.constant 0 : index
      %c0_19 = arith.constant 0 : index
      %24 = vector.load %arg7[%c0_18, %c0_19] : memref<512x32xf32, #tpu.memory_space<vmem>>, vector<512x32xf32>
      tpu.vector_store %arg7[%c0_18, %c0_19], %23 {strides = array<i32>} : memref<512x32xf32, #tpu.memory_space<vmem>>, vector<512x32xf32>,
    } else {
    }
    return
  }
  func.func @transform_0(%arg0: i32, %arg1: i32) -> (i32, i32) {
    %c0_i32 = arith.constant 0 : i32
    return %arg0, %arg1 : i32, i32
  }
  func.func @transform_1(%arg0: i32, %arg1: i32) -> (i32, i32) {
    %c0_i32 = arith.constant 0 : i32
    %c0_i32_0 = arith.constant 0 : i32
    return %arg1, %c0_i32 : i32, i32
  }
  func.func @transform_2(%arg0: i32, %arg1: i32) -> (i32, i32) {
    %c0_i32 = arith.constant 0 : i32
    %c0_i32_0 = arith.constant 0 : i32
    return %arg0, %c0_i32 : i32, i32
  }
  func.func @transform_3(%arg0: i32, %arg1: i32) -> (i32, i32) {
    %c0_i32 = arith.constant 0 : i32
    %c0_i32_0 = arith.constant 0 : i32
    return %arg0, %c0_i32 : i32, i32
  }
  func.func @transform_4(%arg0: i32, %arg1: i32) -> i32 {
    %c0_i32 = arith.constant 0 : i32
    %c0_i32_0 = arith.constant 0 : i32
    return %c0_i32 : i32
  }
  func.func @transform_5(%arg0: i32, %arg1: i32) -> (i32, i32) {
    %c0_i32 = arith.constant 0 : i32
    %c0_i32_0 = arith.constant 0 : i32
    return %arg0, %c0_i32 : i32, i32
  }
}

module attributes {stable_mosaic.version = 11 : i64} {
  func.func @_sage_agg_kernel(%arg0: i32, %arg1: i32, %arg2: memref<512x512xf32, #tpu.memory_space<vmem>>, %arg3: memref<512x16xf32, #tpu.memory_space<vmem>>, %arg4: memref<512x16xf32, #tpu.memory_space<vmem>>, %arg5: memref<512x1xf32, #tpu.memory_space<vmem>>, %arg6: memref<1xf32, #tpu.memory_space<smem>>, %arg7: memref<512x16xf32, #tpu.memory_space<vmem>>) attributes {dimension_semantics = [#tpu.dimension_semantics<parallel>, #tpu.dimension_semantics<arbitrary>], iteration_bounds = array<i64: 1, 1>, scalar_prefetch = 0 : i64, scratch_operands = 0 : i64, tpu.core_type = #tpu.core_type<tc>, window_params = [{transform_indices = @transform_0, window_bounds = array<i64: 512, 512>}, {transform_indices = @transform_1, window_bounds = array<i64: 512, 16>}, {transform_indices = @transform_2, window_bounds = array<i64: 512, 16>}, {transform_indices = @transform_3, window_bounds = array<i64: 512, 1>}, {transform_indices = @transform_4, window_bounds = array<i64: 1>}, {transform_indices = @transform_5, window_bounds = array<i64: 512, 16>}]} {
    %c0_i32 = arith.constant 0 : i32
    %0 = arith.cmpi eq, %arg1, %c0_i32 : i32
    %1 = arith.extui %0 : i1 to i32
    %c0_i32_0 = arith.constant 0 : i32
    %2 = arith.cmpi ne, %1, %c0_i32_0 : i32
    scf.if %2 {
      %cst_10 = arith.constant 0.000000e+00 : f32
      %12 = vector.broadcast %cst_10 : f32 to vector<512x16xf32>
      %c0_11 = arith.constant 0 : index
      %c0_12 = arith.constant 0 : index
      %13 = vector.load %arg7[%c0_11, %c0_12] : memref<512x16xf32, #tpu.memory_space<vmem>>, vector<512x16xf32>
      tpu.vector_store %arg7[%c0_11, %c0_12], %12 {strides = array<i32>} : memref<512x16xf32, #tpu.memory_space<vmem>>, vector<512x16xf32>,
    } else {
    }
    %c0 = arith.constant 0 : index
    %c0_1 = arith.constant 0 : index
    %3 = vector.load %arg2[%c0, %c0_1] : memref<512x512xf32, #tpu.memory_space<vmem>>, vector<512x512xf32>
    %c0_2 = arith.constant 0 : index
    %c0_3 = arith.constant 0 : index
    %4 = vector.load %arg7[%c0_2, %c0_3] : memref<512x16xf32, #tpu.memory_space<vmem>>, vector<512x16xf32>
    %c0_4 = arith.constant 0 : index
    %c0_5 = arith.constant 0 : index
    %5 = vector.load %arg3[%c0_4, %c0_5] : memref<512x16xf32, #tpu.memory_space<vmem>>, vector<512x16xf32>
    %cst = arith.constant dense<0.000000e+00> : vector<512x16xf32>
    %6 = tpu.matmul %3, %5, %cst {dimension_numbers = #tpu.dot_dimension_numbers<[1], [0], [0], [1], [0, 0, 1, 1], [], []>} : vector<512x512xf32>, vector<512x16xf32>, vector<512x16xf32> -> vector<512x16xf32>
    %7 = arith.addf %4, %6 : vector<512x16xf32>
    %c0_6 = arith.constant 0 : index
    %c0_7 = arith.constant 0 : index
    %8 = vector.load %arg7[%c0_6, %c0_7] : memref<512x16xf32, #tpu.memory_space<vmem>>, vector<512x16xf32>
    tpu.vector_store %arg7[%c0_6, %c0_7], %7 {strides = array<i32>} : memref<512x16xf32, #tpu.memory_space<vmem>>, vector<512x16xf32>,
    %c0_i32_8 = arith.constant 0 : i32
    %9 = arith.cmpi eq, %arg1, %c0_i32_8 : i32
    %10 = arith.extui %9 : i1 to i32
    %c0_i32_9 = arith.constant 0 : i32
    %11 = arith.cmpi ne, %10, %c0_i32_9 : i32
    scf.if %11 {
      %c0_10 = arith.constant 0 : index
      %c0_11 = arith.constant 0 : index
      %12 = vector.load %arg4[%c0_10, %c0_11] : memref<512x16xf32, #tpu.memory_space<vmem>>, vector<512x16xf32>
      %c0_12 = arith.constant 0 : index
      %c0_13 = arith.constant 0 : index
      %13 = vector.load %arg5[%c0_12, %c0_13] : memref<512x1xf32, #tpu.memory_space<vmem>>, vector<512x1xf32>
      %c0_14 = arith.constant 0 : index
      %c0_15 = arith.constant 0 : index
      %14 = vector.load %arg7[%c0_14, %c0_15] : memref<512x16xf32, #tpu.memory_space<vmem>>, vector<512x16xf32>
      %15 = vector.broadcast %13 : vector<512x1xf32> to vector<512x16xf32>
      %16 = arith.mulf %15, %14 : vector<512x16xf32>
      %17 = arith.addf %12, %16 : vector<512x16xf32>
      %c0_16 = arith.constant 0 : index
      %18 = memref.load %arg6[%c0_16] : memref<1xf32, #tpu.memory_space<smem>>
      %cst_17 = arith.constant 0.000000e+00 : f32
      %19 = vector.broadcast %cst_17 : f32 to vector<512x16xf32>
      %20 = arith.cmpf ogt, %17, %19 : vector<512x16xf32>
      %21 = vector.broadcast %18 : f32 to vector<512x16xf32>
      %22 = arith.mulf %21, %17 : vector<512x16xf32>
      %23 = arith.select %20, %17, %22 : vector<512x16xi1>, vector<512x16xf32>
      %c0_18 = arith.constant 0 : index
      %c0_19 = arith.constant 0 : index
      %24 = vector.load %arg7[%c0_18, %c0_19] : memref<512x16xf32, #tpu.memory_space<vmem>>, vector<512x16xf32>
      tpu.vector_store %arg7[%c0_18, %c0_19], %23 {strides = array<i32>} : memref<512x16xf32, #tpu.memory_space<vmem>>, vector<512x16xf32>,
    } else {
    }
    return
  }
  func.func @transform_0(%arg0: i32, %arg1: i32) -> (i32, i32) {
    %c0_i32 = arith.constant 0 : i32
    return %arg0, %arg1 : i32, i32
  }
  func.func @transform_1(%arg0: i32, %arg1: i32) -> (i32, i32) {
    %c0_i32 = arith.constant 0 : i32
    %c0_i32_0 = arith.constant 0 : i32
    return %arg1, %c0_i32 : i32, i32
  }
  func.func @transform_2(%arg0: i32, %arg1: i32) -> (i32, i32) {
    %c0_i32 = arith.constant 0 : i32
    %c0_i32_0 = arith.constant 0 : i32
    return %arg0, %c0_i32 : i32, i32
  }
  func.func @transform_3(%arg0: i32, %arg1: i32) -> (i32, i32) {
    %c0_i32 = arith.constant 0 : i32
    %c0_i32_0 = arith.constant 0 : i32
    return %arg0, %c0_i32 : i32, i32
  }
  func.func @transform_4(%arg0: i32, %arg1: i32) -> i32 {
    %c0_i32 = arith.constant 0 : i32
    %c0_i32_0 = arith.constant 0 : i32
    return %c0_i32 : i32
  }
  func.func @transform_5(%arg0: i32, %arg1: i32) -> (i32, i32) {
    %c0_i32 = arith.constant 0 : i32
    %c0_i32_0 = arith.constant 0 : i32
    return %arg0, %c0_i32 : i32, i32
  }
}

</mosaic_0001>

<llo_original>
// kernel: sage_forward.2
$region0: #{sage_forward.2}
  #allocation0 [shape = 'u32[]', space=smem, size = 0x4, offset = 0x4, fixed_abs, tag = 'smem constant byte address 0x4 - core index']
  #allocation1 [shape = 'u32[72,128]{1,0:T(1,128)}', space=vmem, size = 0x9000, scoped, tag = 'internal scratch']
  #allocation2 [shape = 'f32[1]{0:T(128)S(6)}', space=smem, size = 0x200, scoped, tag = 'scoped memory for sage_forward.2']
  %s0 = inlined_call_operand.hbm [shape: f32[512,512], index: 0, kind: input, shape index: {}]
  %s1 = inlined_call_operand.vmem [shape: f32[512,32], index: 1, kind: input, shape index: {}]
  %s2 = inlined_call_operand.vmem [shape: f32[512,32], index: 2, kind: input, shape index: {}]
  %s3 = inlined_call_operand.vmem [shape: f32[512,1], index: 3, kind: input, shape index: {}]
  %s4 = inlined_call_operand.<no memory space> [shape: f32[1], index: 4, kind: input, shape index: {}]
  %s5 = inlined_call_operand.vmem [shape: f32[512,32], index: 5, kind: output, shape index: {}]
  %s6 = sld [smem:[#allocation0]]
  $region42: #{sage_forward.2} parent=0
    _
  %s8 = ssub.s32 1, %s6
  %s9 = scalar_select 0, %s8, %s6
  %10 = sst [smem:[#allocation2]] %s4
  $region1: #{sage_forward.2} parent=0
    #allocation3 [shape = 'u8[1048576]{0}', space=vmem, size = 0x100000, scoped, tag = 'input window, operand 0, single buffered']
    #allocation4 [shape = 's32[1]{0}', space=sflag, size = 0x4, scoped, tag = 'scoped memory for sage_forward.2']
    %11 = vsyncpa [#allocation4], 0
    // Predicated region
    $region2: #{sage_forward.2} parent=1 // pred_check
      _
    $region3: #{sage_forward.2} parent=1 // pred_check_branch
      %13 = sbr.rel (0) target = $region5
    $region4: #{sage_forward.2} parent=1 // pred_region
      %15 = vsyncadd [#allocation4], 0
      %s16 = sshll.u32 %s0, 4
      %s17 = int_to_ptr.hbm [resolvable:$true] %s16
      %s18 = sshll.u32 [#allocation3], 4
      %s19 = int_to_ptr.vmem [resolvable:$true] %s18
      %24 = dma.hbm_to_vmem [thread:$0]  %s17, 32768, %s19, [#allocation4], 512, 512, 32
    $region5: #{sage_forward.2} parent=1 // pred_fallthru
      _
    // Predicated region
    $region6: #{sage_forward.2} parent=1 // pred_check
      _
    $region7: #{sage_forward.2} parent=1 // pred_check_branch
      %26 = sbr.rel (0) target = $region9
    $region8: #{sage_forward.2} parent=1 // pred_region
      _
    $region9: #{sage_forward.2} parent=1 // pred_fallthru
      _
    // Predicated region
    $region10: #{sage_forward.2} parent=1 // pred_check
      _
    $region11: #{sage_forward.2} parent=1 // pred_check_branch
      %28 = sbr.rel (0) target = $region13
    $region12: #{sage_forward.2} parent=1 // pred_region
      _
    $region13: #{sage_forward.2} parent=1 // pred_fallthru
      _
    // Predicated region
    $region14: #{sage_forward.2} parent=1 // pred_check
      _
    $region15: #{sage_forward.2} parent=1 // pred_check_branch
      %30 = sbr.rel (0) target = $region17
    $region16: #{sage_forward.2} parent=1 // pred_region
      _
    $region17: #{sage_forward.2} parent=1 // pred_fallthru
      _
    // Predicated region
    $region18: #{sage_forward.2} parent=1 // pred_check
      _
    $region19: #{sage_forward.2} parent=1 // pred_check_branch
      %32 = sbr.rel (0) target = $region21
    $region20: #{sage_forward.2} parent=1 // pred_region
      _
    $region21: #{sage_forward.2} parent=1 // pred_fallthru
      _
    // Predicated region
    $region22: #{sage_forward.2} parent=1 // pred_check
      _
    $region23: #{sage_forward.2} parent=1 // pred_check_branch
      %34 = sbr.rel (0) target = $region25
    $region24: #{sage_forward.2} parent=1 // pred_region
      %36 = dma.done [#allocation4], 32768
    $region25: #{sage_forward.2} parent=1 // pred_fallthru
      _
    %p37 = scmp.eq.s32.totalorder 0, 0
    // Predicated region
    $region26: #{sage_forward.2} parent=1 // pred_check
      %p38 = pneg %p37
    $region27: #{sage_forward.2} parent=1 // pred_check_branch
      %40 = sbr.rel (%p38) target = $region29
    $region28: #{sage_forward.2} parent=1 // pred_region
      %vm41 = vcmask 261120
      %42 = vst.msk [vmem:[%s5] sm:$0xff] %vm41, 0.0
      %43 = vst.msk [vmem:[%s5 + $0x8] sm:$0xff] %vm41, 0.0
      %44 = vst.msk [vmem:[%s5 + $0x10] sm:$0xff] %vm41, 0.0
      %45 = vst.msk [vmem:[%s5 + $0x18] sm:$0xff] %vm41, 0.0
      %46 = vst.msk [vmem:[%s5 + $0x20] sm:$0xff] %vm41, 0.0
      %47 = vst.msk [vmem:[%s5 + $0x28] sm:$0xff] %vm41, 0.0
      %48 = vst.msk [vmem:[%s5 + $0x30] sm:$0xff] %vm41, 0.0
      %49 = vst.msk [vmem:[%s5 + $0x38] sm:$0xff] %vm41, 0.0
      %50 = vst.msk [vmem:[%s5 + $0x40] sm:$0xff] %vm41, 0.0
      %51 = vst.msk [vmem:[%s5 + $0x48] sm:$0xff] %vm41, 0.0
      %52 = vst.msk [vmem:[%s5 + $0x50] sm:$0xff] %vm41, 0.0
      %53 = vst.msk [vmem:[%s5 + $0x58] sm:$0xff] %vm41, 0.0
      %54 = vst.msk [vmem:[%s5 + $0x60] sm:$0xff] %vm41, 0.0
      %55 = vst.msk [vmem:[%s5 + $0x68] sm:$0xff] %vm41, 0.0
      %56 = vst.msk [vmem:[%s5 + $0x70] sm:$0xff] %vm41, 0.0
      %57 = vst.msk [vmem:[%s5 + $0x78] sm:$0xff] %vm41, 0.0
      %58 = vst.msk [vmem:[%s5 + $0x80] sm:$0xff] %vm41, 0.0
      %59 = vst.msk [vmem:[%s5 + $0x88] sm:$0xff] %vm41, 0.0
      %60 = vst.msk [vmem:[%s5 + $0x90] sm:$0xff] %vm41, 0.0
      %61 = vst.msk [vmem:[%s5 + $0x98] sm:$0xff] %vm41, 0.0
      %62 = vst.msk [vmem:[%s5 + $0xa0] sm:$0xff] %vm41, 0.0
      %63 = vst.msk [vmem:[%s5 + $0xa8] sm:$0xff] %vm41, 0.0
      %64 = vst.msk [vmem:[%s5 + $0xb0] sm:$0xff] %vm41, 0.0
      %65 = vst.msk [vmem:[%s5 + $0xb8] sm:$0xff] %vm41, 0.0
      %66 = vst.msk [vmem:[%s5 + $0xc0] sm:$0xff] %vm41, 0.0
      %67 = vst.msk [vmem:[%s5 + $0xc8] sm:$0xff] %vm41, 0.0
      %68 = vst.msk [vmem:[%s5 + $0xd0] sm:$0xff] %vm41, 0.0
      %69 = vst.msk [vmem:[%s5 + $0xd8] sm:$0xff] %vm41, 0.0
      %70 = vst.msk [vmem:[%s5 + $0xe0] sm:$0xff] %vm41, 0.0
      %71 = vst.msk [vmem:[%s5 + $0xe8] sm:$0xff] %vm41, 0.0
      %72 = vst.msk [vmem:[%s5 + $0xf0] sm:$0xff] %vm41, 0.0
      %73 = vst.msk [vmem:[%s5 + $0xf8] sm:$0xff] %vm41, 0.0
      %74 = vst.msk [vmem:[%s5 + $0x100] sm:$0xff] %vm41, 0.0
      %75 = vst.msk [vmem:[%s5 + $0x108] sm:$0xff] %vm41, 0.0
      %76 = vst.msk [vmem:[%s5 + $0x110] sm:$0xff] %vm41, 0.0
      %77 = vst.msk [vmem:[%s5 + $0x118] sm:$0xff] %vm41, 0.0
      %78 = vst.msk [vmem:[%s5 + $0x120] sm:$0xff] %vm41, 0.0
      %79 = vst.msk [vmem:[%s5 + $0x128] sm:$0xff] %vm41, 0.0
      %80 = vst.msk [vmem:[%s5 + $0x130] sm:$0xff] %vm41, 0.0
      %81 = vst.msk [vmem:[%s5 + $0x138] sm:$0xff] %vm41, 0.0
      %82 = vst.msk [vmem:[%s5 + $0x140] sm:$0xff] %vm41, 0.0
      %83 = vst.msk [vmem:[%s5 + $0x148] sm:$0xff] %vm41, 0.0
      %84 = vst.msk [vmem:[%s5 + $0x150] sm:$0xff] %vm41, 0.0
      %85 = vst.msk [vmem:[%s5 + $0x158] sm:$0xff] %vm41, 0.0
      %86 = vst.msk [vmem:[%s5 + $0x160] sm:$0xff] %vm41, 0.0
      %87 = vst.msk [vmem:[%s5 + $0x168] sm:$0xff] %vm41, 0.0
      %88 = vst.msk [vmem:[%s5 + $0x170] sm:$0xff] %vm41, 0.0
      %89 = vst.msk [vmem:[%s5 + $0x178] sm:$0xff] %vm41, 0.0
      %90 = vst.msk [vmem:[%s5 + $0x180] sm:$0xff] %vm41, 0.0
      %91 = vst.msk [vmem:[%s5 + $0x188] sm:$0xff] %vm41, 0.0
      %92 = vst.msk [vmem:[%s5 + $0x190] sm:$0xff] %vm41, 0.0
      %93 = vst.msk [vmem:[%s5 + $0x198] sm:$0xff] %vm41, 0.0
      %94 = vst.msk [vmem:[%s5 + $0x1a0] sm:$0xff] %vm41, 0.0
      %95 = vst.msk [vmem:[%s5 + $0x1a8] sm:$0xff] %vm41, 0.0
      %96 = vst.msk [vmem:[%s5 + $0x1b0] sm:$0xff] %vm41, 0.0
      %97 = vst.msk [vmem:[%s5 + $0x1b8] sm:$0xff] %vm41, 0.0
      %98 = vst.msk [vmem:[%s5 + $0x1c0] sm:$0xff] %vm41, 0.0
      %99 = vst.msk [vmem:[%s5 + $0x1c8] sm:$0xff] %vm41, 0.0
      %100 = vst.msk [vmem:[%s5 + $0x1d0] sm:$0xff] %vm41, 0.0
      %101 = vst.msk [vmem:[%s5 + $0x1d8] sm:$0xff] %vm41, 0.0
      %102 = vst.msk [vmem:[%s5 + $0x1e0] sm:$0xff] %vm41, 0.0
      %103 = vst.msk [vmem:[%s5 + $0x1e8] sm:$0xff] %vm41, 0.0
      %104 = vst.msk [vmem:[%s5 + $0x1f0] sm:$0xff] %vm41, 0.0
      %105 = vst.msk [vmem:[%s5 + $0x1f8] sm:$0xff] %vm41, 0.0
    $region29: #{sage_forward.2} parent=1 // pred_fallthru
      _
    %v106 = vld [vmem:[#allocation3] sm:$0xff]
    %v107 = vld [vmem:[#allocation3 + $0x8] sm:$0xff]
    %v108 = vld [vmem:[#allocation3 + $0x10] sm:$0xff]
    %v109 = vld [vmem:[#allocation3 + $0x18] sm:$0xff]
    %v110 = vld [vmem:[#allocation3 + $0x20] sm:$0xff]
    %v111 = vld [vmem:[#allocation3 + $0x28] sm:$0xff]
    %v112 = vld [vmem:[#allocation3 + $0x30] sm:$0xff]
    %v113 = vld [vmem:[#allocation3 + $0x38] sm:$0xff]
    %v114 = vld [vmem:[#allocation3 + $0x40] sm:$0xff]
    %v115 = vld [vmem:[#allocation3 + $0x48] sm:$0xff]
    %v116 = vld [vmem:[#allocation3 + $0x50] sm:$0xff]
    %v117 = vld [vmem:[#allocation3 + $0x58] sm:$0xff]
    %v118 = vld [vmem:[#allocation3 + $0x60] sm:$0xff]
    %v119 = vld [vmem:[#allocation3 + $0x68] sm:$0xff]
    %v120 = vld [vmem:[#allocation3 + $0x70] sm:$0xff]
    %v121 = vld [vmem:[#allocation3 + $0x78] sm:$0xff]
    %v122 = vld [vmem:[#allocation3 + $0x80] sm:$0xff]
    %v123 = vld [vmem:[#allocation3 + $0x88] sm:$0xff]
    %v124 = vld [vmem:[#allocation3 + $0x90] sm:$0xff]
    %v125 = vld [vmem:[#allocation3 + $0x98] sm:$0xff]
    %v126 = vld [vmem:[#allocation3 + $0xa0] sm:$0xff]
    %v127 = vld [vmem:[#allocation3 + $0xa8] sm:$0xff]
    %v128 = vld [vmem:[#allocation3 + $0xb0] sm:$0xff]
    %v129 = vld [vmem:[#allocation3 + $0xb8] sm:$0xff]
    %v130 = vld [vmem:[#allocation3 + $0xc0] sm:$0xff]
    %v131 = vld [vmem:[#allocation3 + $0xc8] sm:$0xff]
    %v132 = vld [vmem:[#allocation3 + $0xd0] sm:$0xff]
    %v133 = vld [vmem:[#allocation3 + $0xd8] sm:$0xff]
    %v134 = vld [vmem:[#allocation3 + $0xe0] sm:$0xff]
    %v135 = vld [vmem:[#allocation3 + $0xe8] sm:$0xff]
    %v136 = vld [vmem:[#allocation3 + $0xf0] sm:$0xff]
    %v137 = vld [vmem:[#allocation3 + $0xf8] sm:$0xff]
    %v138 = vld [vmem:[#allocation3 + $0x100] sm:$0xff]
    %v139 = vld [vmem:[#allocation3 + $0x108] sm:$0xff]
    %v140 = vld [vmem:[#allocation3 + $0x110] sm:$0xff]
    %v141 = vld [vmem:[#allocation3 + $0x118] sm:$0xff]
    %v142 = vld [vmem:[#allocation3 + $0x120] sm:$0xff]
    %v143 = vld [vmem:[#allocation3 + $0x128] sm:$0xff]
    %v144 = vld [vmem:[#allocation3 + $0x130] sm:$0xff]
    %v145 = vld [vmem:[#allocation3 + $0x138] sm:$0xff]
    %v146 = vld [vmem:[#allocation3 + $0x140] sm:$0xff]
    %v147 = vld [vmem:[#allocation3 + $0x148] sm:$0xff]
    %v148 = vld [vmem:[#allocation3 + $0x150] sm:$0xff]
    %v149 = vld [vmem:[#allocation3 + $0x158] sm:$0xff]
    %v150 = vld [vmem:[#allocation3 + $0x160] sm:$0xff]
    %v151 = vld [vmem:[#allocation3 + $0x168] sm:$0xff]
    %v152 = vld [vmem:[#allocation3 + $0x170] sm:$0xff]
    %v153 = vld [vmem:[#allocation3 + $0x178] sm:$0xff]
    %v154 = vld [vmem:[#allocation3 + $0x180] sm:$0xff]
    %v155 = vld [vmem:[#allocation3 + $0x188] sm:$0xff]
    %v156 = vld [vmem:[#allocation3 + $0x190] sm:$0xff]
    %v157 = vld [vmem:[#allocation3 + $0x198] sm:$0xff]
    %v158 = vld [vmem:[#allocation3 + $0x1a0] sm:$0xff]
    %v159 = vld [vmem:[#allocation3 + $0x1a8] sm:$0xff]
    %v160 = vld [vmem:[#allocation3 + $0x1b0] sm:$0xff]
    %v161 = vld [vmem:[#allocation3 + $0x1b8] sm:$0xff]
    %v162 = vld [vmem:[#allocation3 + $0x1c0] sm:$0xff]
    %v163 = vld [vmem:[#allocation3 + $0x1c8] sm:$0xff]
    %v164 = vld [vmem:[#allocation3 + $0x1d0] sm:$0xff]
    %v165 = vld [vmem:[#allocation3 + $0x1d8] sm:$0xff]
    %v166 = vld [vmem:[#allocation3 + $0x1e0] sm:$0xff]
    %v167 = vld [vmem:[#allocation3 + $0x1e8] sm:$0xff]
    %v168 = vld [vmem:[#allocation3 + $0x1f0] sm:$0xff]
    %v169 = vld [vmem:[#allocation3 + $0x1f8] sm:$0xff]
    %v170 = vld [vmem:[#allocation3 + $0x200] sm:$0xff]
    %v171 = vld [vmem:[#allocation3 + $0x208] sm:$0xff]
    %v172 = vld [vmem:[#allocation3 + $0x210] sm:$0xff]
    %v173 = vld [vmem:[#allocation3 + $0x218] sm:$0xff]
    %v174 = vld [vmem:[#allocation3 + $0x220] sm:$0xff]
    %v175 = vld [vmem:[#allocation3 + $0x228] sm:$0xff]
    %v176 = vld [vmem:[#allocation3 + $0x230] sm:$0xff]
    %v177 = vld [vmem:[#allocation3 + $0x238] sm:$0xff]
    %v178 = vld [vmem:[#allocation3 + $0x240] sm:$0xff]
    %v179 = vld [vmem:[#allocation3 + $0x248] sm:$0xff]
    %v180 = vld [vmem:[#allocation3 + $0x250] sm:$0xff]
    %v181 = vld [vmem:[#allocation3 + $0x258] sm:$0xff]
    %v182 = vld [vmem:[#allocation3 + $0x260] sm:$0xff]
    %v183 = vld [vmem:[#allocation3 + $0x268] sm:$0xff]
    %v184 = vld [vmem:[#allocation3 + $0x270] sm:$0xff]
    %v185 = vld [vmem:[#allocation3 + $0x278] sm:$0xff]
    %v186 = vld [vmem:[#allocation3 + $0x280] sm:$0xff]
    %v187 = vld [vmem:[#allocation3 + $0x288] sm:$0xff]
    %v188 = vld [vmem:[#allocation3 + $0x290] sm:$0xff]
    %v189 = vld [vmem:[#allocation3 + $0x298] sm:$0xff]
    %v190 = vld [vmem:[#allocation3 + $0x2a0] sm:$0xff]
    %v191 = vld [vmem:[#allocation3 + $0x2a8] sm:$0xff]
    %v192 = vld [vmem:[#allocation3 + $0x2b0] sm:$0xff]
    %v193 = vld [vmem:[#allocation3 + $0x2b8] sm:$0xff]
    %v194 = vld [vmem:[#allocation3 + $0x2c0] sm:$0xff]
    %v195 = vld [vmem:[#allocation3 + $0x2c8] sm:$0xff]
    %v196 = vld [vmem:[#allocation3 + $0x2d0] sm:$0xff]
    %v197 = vld [vmem:[#allocation3 + $0x2d8] sm:$0xff]
    %v198 = vld [vmem:[#allocation3 + $0x2e0] sm:$0xff]
    %v199 = vld [vmem:[#allocation3 + $0x2e8] sm:$0xff]
    %v200 = vld [vmem:[#allocation3 + $0x2f0] sm:$0xff]
    %v201 = vld [vmem:[#allocation3 + $0x2f8] sm:$0xff]
    %v202 = vld [vmem:[#allocation3 + $0x300] sm:$0xff]
    %v203 = vld [vmem:[#allocation3 + $0x308] sm:$0xff]
    %v204 = vld [vmem:[#allocation3 + $0x310] sm:$0xff]
    %v205 = vld [vmem:[#allocation3 + $0x318] sm:$0xff]
    %v206 = vld [vmem:[#allocation3 + $0x320] sm:$0xff]
    %v207 = vld [vmem:[#allocation3 + $0x328] sm:$0xff]
    %v208 = vld [vmem:[#allocation3 + $0x330] sm:$0xff]
    %v209 = vld [vmem:[#allocation3 + $0x338] sm:$0xff]
    %v210 = vld [vmem:[#allocation3 + $0x340] sm:$0xff]
    %v211 = vld [vmem:[#allocation3 + $0x348] sm:$0xff]
    %v212 = vld [vmem:[#allocation3 + $0x350] sm:$0xff]
    %v213 = vld [vmem:[#allocation3 + $0x358] sm:$0xff]
    %v214 = vld [vmem:[#allocation3 + $0x360] sm:$0xff]
    %v215 = vld [vmem:[#allocation3 + $0x368] sm:$0xff]
    %v216 = vld [vmem:[#allocation3 + $0x370] sm:$0xff]
    %v217 = vld [vmem:[#allocation3 + $0x378] sm:$0xff]
    %v218 = vld [vmem:[#allocation3 + $0x380] sm:$0xff]
    %v219 = vld [vmem:[#allocation3 + $0x388] sm:$0xff]
    %v220 = vld [vmem:[#allocation3 + $0x390] sm:$0xff]
    %v221 = vld [vmem:[#allocation3 + $0x398] sm:$0xff]
    %v222 = vld [vmem:[#allocation3 + $0x3a0] sm:$0xff]
    %v223 = vld [vmem:[#allocation3 + $0x3a8] sm:$0xff]
    %v224 = vld [vmem:[#allocation3 + $0x3b0] sm:$0xff]
    %v225 = vld [vmem:[#allocation3 + $0x3b8] sm:$0xff]
    %v226 = vld [vmem:[#allocation3 + $0x3c0] sm:$0xff]
    %v227 = vld [vmem:[#allocation3 + $0x3c8] sm:$0xff]
    %v228 = vld [vmem:[#allocation3 + $0x3d0] sm:$0xff]
    %v229 = vld [vmem:[#allocation3 + $0x3d8] sm:$0xff]
    %v230 = vld [vmem:[#allocation3 + $0x3e0] sm:$0xff]
    %v231 = vld [vmem:[#allocation3 + $0x3e8] sm:$0xff]
    %v232 = vld [vmem:[#allocation3 + $0x3f0] sm:$0xff]
    %v233 = vld [vmem:[#allocation3 + $0x3f8] sm:$0xff]
    %v234 = vld [vmem:[#allocation3 + $0x400] sm:$0xff]
    %v235 = vld [vmem:[#allocation3 + $0x408] sm:$0xff]
    %v236 = vld [vmem:[#allocation3 + $0x410] sm:$0xff]
    %v237 = vld [vmem:[#allocation3 + $0x418] sm:$0xff]
    %v238 = vld [vmem:[#allocation3 + $0x420] sm:$0xff]
    %v239 = vld [vmem:[#allocation3 + $0x428] sm:$0xff]
    %v240 = vld [vmem:[#allocation3 + $0x430] sm:$0xff]
    %v241 = vld [vmem:[#allocation3 + $0x438] sm:$0xff]
    %v242 = vld [vmem:[#allocation3 + $0x440] sm:$0xff]
    %v243 = vld [vmem:[#allocation3 + $0x448] sm:$0xff]
    %v244 = vld [vmem:[#allocation3 + $0x450] sm:$0xff]
    %v245 = vld [vmem:[#allocation3 + $0x458] sm:$0xff]
    %v246 = vld [vmem:[#allocation3 + $0x460] sm:$0xff]
    %v247 = vld [vmem:[#allocation3 + $0x468] sm:$0xff]
    %v248 = vld [vmem:[#allocation3 + $0x470] sm:$0xff]
    %v249 = vld [vmem:[#allocation3 + $0x478] sm:$0xff]
    %v250 = vld [vmem:[#allocation3 + $0x480] sm:$0xff]
    %v251 = vld [vmem:[#allocation3 + $0x488] sm:$0xff]
    %v252 = vld [vmem:[#allocation3 + $0x490] sm:$0xff]
    %v253 = vld [vmem:[#allocation3 + $0x498] sm:$0xff]
    %v254 = vld [vmem:[#allocation3 + $0x4a0] sm:$0xff]
    %v255 = vld [vmem:[#allocation3 + $0x4a8] sm:$0xff]
    %v256 = vld [vmem:[#allocation3 + $0x4b0] sm:$0xff]
    %v257 = vld [vmem:[#allocation3 + $0x4b8] sm:$0xff]
    %v258 = vld [vmem:[#allocation3 + $0x4c0] sm:$0xff]
    %v259 = vld [vmem:[#allocation3 + $0x4c8] sm:$0xff]
    %v260 = vld [vmem:[#allocation3 + $0x4d0] sm:$0xff]
    %v261 = vld [vmem:[#allocation3 + $0x4d8] sm:$0xff]
    %v262 = vld [vmem:[#allocation3 + $0x4e0] sm:$0xff]
    %v263 = vld [vmem:[#allocation3 + $0x4e8] sm:$0xff]
    %v264 = vld [vmem:[#allocation3 + $0x4f0] sm:$0xff]
    %v265 = vld [vmem:[#allocation3 + $0x4f8] sm:$0xff]
    %v266 = vld [vmem:[#allocation3 + $0x500] sm:$0xff]
    %v267 = vld [vmem:[#allocation3 + $0x508] sm:$0xff]
    %v268 = vld [vmem:[#allocation3 + $0x510] sm:$0xff]
    %v269 = vld [vmem:[#allocation3 + $0x518] sm:$0xff]
    %v270 = vld [vmem:[#allocation3 + $0x520] sm:$0xff]
    %v271 = vld [vmem:[#allocation3 + $0x528] sm:$0xff]
    %v272 = vld [vmem:[#allocation3 + $0x530] sm:$0xff]
    %v273 = vld [vmem:[#allocation3 + $0x538] sm:$0xff]
    %v274 = vld [vmem:[#allocation3 + $0x540] sm:$0xff]
    %v275 = vld [vmem:[#allocation3 + $0x548] sm:$0xff]
    %v276 = vld [vmem:[#allocation3 + $0x550] sm:$0xff]
    %v277 = vld [vmem:[#allocation3 + $0x558] sm:$0xff]
    %v278 = vld [vmem:[#allocation3 + $0x560] sm:$0xff]
    %v279 = vld [vmem:[#allocation3 + $0x568] sm:$0xff]
    %v280 = vld [vmem:[#allocation3 + $0x570] sm:$0xff]
    %v281 = vld [vmem:[#allocation3 + $0x578] sm:$0xff]
    %v282 = vld [vmem:[#allocation3 + $0x580] sm:$0xff]
    %v283 = vld [vmem:[#allocation3 + $0x588] sm:$0xff]
    %v284 = vld [vmem:[#allocation3 + $0x590] sm:$0xff]
    %v285 = vld [vmem:[#allocation3 + $0x598] sm:$0xff]
    %v286 = vld [vmem:[#allocation3 + $0x5a0] sm:$0xff]
    %v287 = vld [vmem:[#allocation3 + $0x5a8] sm:$0xff]
    %v288 = vld [vmem:[#allocation3 + $0x5b0] sm:$0xff]
    %v289 = vld [vmem:[#allocation3 + $0x5b8] sm:$0xff]
    %v290 = vld [vmem:[#allocation3 + $0x5c0] sm:$0xff]
    %v291 = vld [vmem:[#allocation3 + $0x5c8] sm:$0xff]
    %v292 = vld [vmem:[#allocation3 + $0x5d0] sm:$0xff]
    %v293 = vld [vmem:[#allocation3 + $0x5d8] sm:$0xff]
    %v294 = vld [vmem:[#allocation3 + $0x5e0] sm:$0xff]
    %v295 = vld [vmem:[#allocation3 + $0x5e8] sm:$0xff]
    %v296 = vld [vmem:[#allocation3 + $0x5f0] sm:$0xff]
    %v297 = vld [vmem:[#allocation3 + $0x5f8] sm:$0xff]
    %v298 = vld [vmem:[#allocation3 + $0x600] sm:$0xff]
    %v299 = vld [vmem:[#allocation3 + $0x608] sm:$0xff]
    %v300 = vld [vmem:[#allocation3 + $0x610] sm:$0xff]
    %v301 = vld [vmem:[#allocation3 + $0x618] sm:$0xff]
    %v302 = vld [vmem:[#allocation3 + $0x620] sm:$0xff]
    %v303 = vld [vmem:[#allocation3 + $0x628] sm:$0xff]
    %v304 = vld [vmem:[#allocation3 + $0x630] sm:$0xff]
    %v305 = vld [vmem:[#allocation3 + $0x638] sm:$0xff]
    %v306 = vld [vmem:[#allocation3 + $0x640] sm:$0xff]
    %v307 = vld [vmem:[#allocation3 + $0x648] sm:$0xff]
    %v308 = vld [vmem:[#allocation3 + $0x650] sm:$0xff]
    %v309 = vld [vmem:[#allocation3 + $0x658] sm:$0xff]
    %v310 = vld [vmem:[#allocation3 + $0x660] sm:$0xff]
    %v311 = vld [vmem:[#allocation3 + $0x668] sm:$0xff]
    %v312 = vld [vmem:[#allocation3 + $0x670] sm:$0xff]
    %v313 = vld [vmem:[#allocation3 + $0x678] sm:$0xff]
    %v314 = vld [vmem:[#allocation3 + $0x680] sm:$0xff]
    %v315 = vld [vmem:[#allocation3 + $0x688] sm:$0xff]
    %v316 = vld [vmem:[#allocation3 + $0x690] sm:$0xff]
    %v317 = vld [vmem:[#allocation3 + $0x698] sm:$0xff]
    %v318 = vld [vmem:[#allocation3 + $0x6a0] sm:$0xff]
    %v319 = vld [vmem:[#allocation3 + $0x6a8] sm:$0xff]
    %v320 = vld [vmem:[#allocation3 + $0x6b0] sm:$0xff]
    %v321 = vld [vmem:[#allocation3 + $0x6b8] sm:$0xff]
    %v322 = vld [vmem:[#allocation3 + $0x6c0] sm:$0xff]
    %v323 = vld [vmem:[#allocation3 + $0x6c8] sm:$0xff]
    %v324 = vld [vmem:[#allocation3 + $0x6d0] sm:$0xff]
    %v325 = vld [vmem:[#allocation3 + $0x6d8] sm:$0xff]
    %v326 = vld [vmem:[#allocation3 + $0x6e0] sm:$0xff]
    %v327 = vld [vmem:[#allocation3 + $0x6e8] sm:$0xff]
    %v328 = vld [vmem:[#allocation3 + $0x6f0] sm:$0xff]
    %v329 = vld [vmem:[#allocation3 + $0x6f8] sm:$0xff]
    %v330 = vld [vmem:[#allocation3 + $0x700] sm:$0xff]
    %v331 = vld [vmem:[#allocation3 + $0x708] sm:$0xff]
    %v332 = vld [vmem:[#allocation3 + $0x710] sm:$0xff]
    %v333 = vld [vmem:[#allocation3 + $0x718] sm:$0xff]
    %v334 = vld [vmem:[#allocation3 + $0x720] sm:$0xff]
    %v335 = vld [vmem:[#allocation3 + $0x728] sm:$0xff]
    %v336 = vld [vmem:[#allocation3 + $0x730] sm:$0xff]
    %v337 = vld [vmem:[#allocation3 + $0x738] sm:$0xff]
    %v338 = vld [vmem:[#allocation3 + $0x740] sm:$0xff]
    %v339 = vld [vmem:[#allocation3 + $0x748] sm:$0xff]
    %v340 = vld [vmem:[#allocation3 + $0x750] sm:$0xff]
    %v341 = vld [vmem:[#allocation3 + $0x758] sm:$0xff]
    %v342 = vld [vmem:[#allocation3 + $0x760] sm:$0xff]
    %v343 = vld [vmem:[#allocation3 + $0x768] sm:$0xff]
    %v344 = vld [vmem:[#allocation3 + $0x770] sm:$0xff]
    %v345 = vld [vmem:[#allocation3 + $0x778] sm:$0xff]
    %v346 = vld [vmem:[#allocation3 + $0x780] sm:$0xff]
    %v347 = vld [vmem:[#allocation3 + $0x788] sm:$0xff]
    %v348 = vld [vmem:[#allocation3 + $0x790] sm:$0xff]
    %v349 = vld [vmem:[#allocation3 + $0x798] sm:$0xff]
    %v350 = vld [vmem:[#allocation3 + $0x7a0] sm:$0xff]
    %v351 = vld [vmem:[#allocation3 + $0x7a8] sm:$0xff]
    %v352 = vld [vmem:[#allocation3 + $0x7b0] sm:$0xff]
    %v353 = vld [vmem:[#allocation3 + $0x7b8] sm:$0xff]
    %v354 = vld [vmem:[#allocation3 + $0x7c0] sm:$0xff]
    %v355 = vld [vmem:[#allocation3 + $0x7c8] sm:$0xff]
    %v356 = vld [vmem:[#allocation3 + $0x7d0] sm:$0xff]
    %v357 = vld [vmem:[#allocation3 + $0x7d8] sm:$0xff]
    %v358 = vld [vmem:[#allocation3 + $0x7e0] sm:$0xff]
    %v359 = vld [vmem:[#allocation3 + $0x7e8] sm:$0xff]
    %v360 = vld [vmem:[#allocation3 + $0x7f0] sm:$0xff]
    %v361 = vld [vmem:[#allocation3 + $0x7f8] sm:$0xff]
    %v362 = vld [vmem:[%s5] sm:$0xff]
    %v363 = vld [vmem:[%s5 + $0x8] sm:$0xff]
    %v364 = vld [vmem:[%s5 + $0x10] sm:$0xff]
    %v365 = vld [vmem:[%s5 + $0x18] sm:$0xff]
    %v366 = vld [vmem:[%s5 + $0x20] sm:$0xff]
    %v367 = vld [vmem:[%s5 + $0x28] sm:$0xff]
    %v368 = vld [vmem:[%s5 + $0x30] sm:$0xff]
    %v369 = vld [vmem:[%s5 + $0x38] sm:$0xff]
    %v370 = vld [vmem:[%s5 + $0x40] sm:$0xff]
    %v371 = vld [vmem:[%s5 + $0x48] sm:$0xff]
    %v372 = vld [vmem:[%s5 + $0x50] sm:$0xff]
    %v373 = vld [vmem:[%s5 + $0x58] sm:$0xff]
    %v374 = vld [vmem:[%s5 + $0x60] sm:$0xff]
    %v375 = vld [vmem:[%s5 + $0x68] sm:$0xff]
    %v376 = vld [vmem:[%s5 + $0x70] sm:$0xff]
    %v377 = vld [vmem:[%s5 + $0x78] sm:$0xff]
    %v378 = vld [vmem:[%s5 + $0x80] sm:$0xff]
    %v379 = vld [vmem:[%s5 + $0x88] sm:$0xff]
    %v380 = vld [vmem:[%s5 + $0x90] sm:$0xff]
    %v381 = vld [vmem:[%s5 + $0x98] sm:$0xff]
    %v382 = vld [vmem:[%s5 + $0xa0] sm:$0xff]
    %v383 = vld [vmem:[%s5 + $0xa8] sm:$0xff]
    %v384 = vld [vmem:[%s5 + $0xb0] sm:$0xff]
    %v385 = vld [vmem:[%s5 + $0xb8] sm:$0xff]
    %v386 = vld [vmem:[%s5 + $0xc0] sm:$0xff]
    %v387 = vld [vmem:[%s5 + $0xc8] sm:$0xff]
    %v388 = vld [vmem:[%s5 + $0xd0] sm:$0xff]
    %v389 = vld [vmem:[%s5 + $0xd8] sm:$0xff]
    %v390 = vld [vmem:[%s5 + $0xe0] sm:$0xff]
    %v391 = vld [vmem:[%s5 + $0xe8] sm:$0xff]
    %v392 = vld [vmem:[%s5 + $0xf0] sm:$0xff]
    %v393 = vld [vmem:[%s5 + $0xf8] sm:$0xff]
    %v394 = vld [vmem:[%s5 + $0x100] sm:$0xff]
    %v395 = vld [vmem:[%s5 + $0x108] sm:$0xff]
    %v396 = vld [vmem:[%s5 + $0x110] sm:$0xff]
    %v397 = vld [vmem:[%s5 + $0x118] sm:$0xff]
    %v398 = vld [vmem:[%s5 + $0x120] sm:$0xff]
    %v399 = vld [vmem:[%s5 + $0x128] sm:$0xff]
    %v400 = vld [vmem:[%s5 + $0x130] sm:$0xff]
    %v401 = vld [vmem:[%s5 + $0x138] sm:$0xff]
    %v402 = vld [vmem:[%s5 + $0x140] sm:$0xff]
    %v403 = vld [vmem:[%s5 + $0x148] sm:$0xff]
    %v404 = vld [vmem:[%s5 + $0x150] sm:$0xff]
    %v405 = vld [vmem:[%s5 + $0x158] sm:$0xff]
    %v406 = vld [vmem:[%s5 + $0x160] sm:$0xff]
    %v407 = vld [vmem:[%s5 + $0x168] sm:$0xff]
    %v408 = vld [vmem:[%s5 + $0x170] sm:$0xff]
    %v409 = vld [vmem:[%s5 + $0x178] sm:$0xff]
    %v410 = vld [vmem:[%s5 + $0x180] sm:$0xff]
    %v411 = vld [vmem:[%s5 + $0x188] sm:$0xff]
    %v412 = vld [vmem:[%s5 + $0x190] sm:$0xff]
    %v413 = vld [vmem:[%s5 + $0x198] sm:$0xff]
    %v414 = vld [vmem:[%s5 + $0x1a0] sm:$0xff]
    %v415 = vld [vmem:[%s5 + $0x1a8] sm:$0xff]
    %v416 = vld [vmem:[%s5 + $0x1b0] sm:$0xff]
    %v417 = vld [vmem:[%s5 + $0x1b8] sm:$0xff]
    %v418 = vld [vmem:[%s5 + $0x1c0] sm:$0xff]
    %v419 = vld [vmem:[%s5 + $0x1c8] sm:$0xff]
    %v420 = vld [vmem:[%s5 + $0x1d0] sm:$0xff]
    %v421 = vld [vmem:[%s5 + $0x1d8] sm:$0xff]
    %v422 = vld [vmem:[%s5 + $0x1e0] sm:$0xff]
    %v423 = vld [vmem:[%s5 + $0x1e8] sm:$0xff]
    %v424 = vld [vmem:[%s5 + $0x1f0] sm:$0xff]
    %v425 = vld [vmem:[%s5 + $0x1f8] sm:$0xff]
    %v426 = vld [vmem:[%s1] sm:$0xff]
    %v427 = vld [vmem:[%s1 + $0x8] sm:$0xff]
    %v428 = vld [vmem:[%s1 + $0x10] sm:$0xff]
    %v429 = vld [vmem:[%s1 + $0x18] sm:$0xff]
    %v430 = vld [vmem:[%s1 + $0x20] sm:$0xff]
    %v431 = vld [vmem:[%s1 + $0x28] sm:$0xff]
    %v432 = vld [vmem:[%s1 + $0x30] sm:$0xff]
    %v433 = vld [vmem:[%s1 + $0x38] sm:$0xff]
    %v434 = vld [vmem:[%s1 + $0x40] sm:$0xff]
    %v435 = vld [vmem:[%s1 + $0x48] sm:$0xff]
    %v436 = vld [vmem:[%s1 + $0x50] sm:$0xff]
    %v437 = vld [vmem:[%s1 + $0x58] sm:$0xff]
    %v438 = vld [vmem:[%s1 + $0x60] sm:$0xff]
    %v439 = vld [vmem:[%s1 + $0x68] sm:$0xff]
    %v440 = vld [vmem:[%s1 + $0x70] sm:$0xff]
    %v441 = vld [vmem:[%s1 + $0x78] sm:$0xff]
    %v442 = vld [vmem:[%s1 + $0x80] sm:$0xff]
    %v443 = vld [vmem:[%s1 + $0x88] sm:$0xff]
    %v444 = vld [vmem:[%s1 + $0x90] sm:$0xff]
    %v445 = vld [vmem:[%s1 + $0x98] sm:$0xff]
    %v446 = vld [vmem:[%s1 + $0xa0] sm:$0xff]
    %v447 = vld [vmem:[%s1 + $0xa8] sm:$0xff]
    %v448 = vld [vmem:[%s1 + $0xb0] sm:$0xff]
    %v449 = vld [vmem:[%s1 + $0xb8] sm:$0xff]
    %v450 = vld [vmem:[%s1 + $0xc0] sm:$0xff]
    %v451 = vld [vmem:[%s1 + $0xc8] sm:$0xff]
    %v452 = vld [vmem:[%s1 + $0xd0] sm:$0xff]
    %v453 = vld [vmem:[%s1 + $0xd8] sm:$0xff]
    %v454 = vld [vmem:[%s1 + $0xe0] sm:$0xff]
    %v455 = vld [vmem:[%s1 + $0xe8] sm:$0xff]
    %v456 = vld [vmem:[%s1 + $0xf0] sm:$0xff]
    %v457 = vld [vmem:[%s1 + $0xf8] sm:$0xff]
    %v458 = vld [vmem:[%s1 + $0x100] sm:$0xff]
    %v459 = vld [vmem:[%s1 + $0x108] sm:$0xff]
    %v460 = vld [vmem:[%s1 + $0x110] sm:$0xff]
    %v461 = vld [vmem:[%s1 + $0x118] sm:$0xff]
    %v462 = vld [vmem:[%s1 + $0x120] sm:$0xff]
    %v463 = vld [vmem:[%s1 + $0x128] sm:$0xff]
    %v464 = vld [vmem:[%s1 + $0x130] sm:$0xff]
    %v465 = vld [vmem:[%s1 + $0x138] sm:$0xff]
    %v466 = vld [vmem:[%s1 + $0x140] sm:$0xff]
    %v467 = vld [vmem:[%s1 + $0x148] sm:$0xff]
    %v468 = vld [vmem:[%s1 + $0x150] sm:$0xff]
    %v469 = vld [vmem:[%s1 + $0x158] sm:$0xff]
    %v470 = vld [vmem:[%s1 + $0x160] sm:$0xff]
    %v471 = vld [vmem:[%s1 + $0x168] sm:$0xff]
    %v472 = vld [vmem:[%s1 + $0x170] sm:$0xff]
    %v473 = vld [vmem:[%s1 + $0x178] sm:$0xff]
    %v474 = vld [vmem:[%s1 + $0x180] sm:$0xff]
    %v475 = vld [vmem:[%s1 + $0x188] sm:$0xff]
    %v476 = vld [vmem:[%s1 + $0x190] sm:$0xff]
    %v477 = vld [vmem:[%s1 + $0x198] sm:$0xff]
    %v478 = vld [vmem:[%s1 + $0x1a0] sm:$0xff]
    %v479 = vld [vmem:[%s1 + $0x1a8] sm:$0xff]
    %v480 = vld [vmem:[%s1 + $0x1b0] sm:$0xff]
    %v481 = vld [vmem:[%s1 + $0x1b8] sm:$0xff]
    %v482 = vld [vmem:[%s1 + $0x1c0] sm:$0xff]
    %v483 = vld [vmem:[%s1 + $0x1c8] sm:$0xff]
    %v484 = vld [vmem:[%s1 + $0x1d0] sm:$0xff]
    %v485 = vld [vmem:[%s1 + $0x1d8] sm:$0xff]
    %v486 = vld [vmem:[%s1 + $0x1e0] sm:$0xff]
    %v487 = vld [vmem:[%s1 + $0x1e8] sm:$0xff]
    %v488 = vld [vmem:[%s1 + $0x1f0] sm:$0xff]
    %v489 = vld [vmem:[%s1 + $0x1f8] sm:$0xff]
    %490 = vmatpush.msra.mxu0 %v441
    %491 = vmatpush.msra.mxu0 %v440
    %492 = vmatpush.msra.mxu0 %v439
    %493 = vmatpush.msra.mxu0 %v438
    %494 = vmatpush.msra.mxu0 %v437
    %495 = vmatpush.msra.mxu0 %v436
    %496 = vmatpush.msra.mxu0 %v435
    %497 = vmatpush.msra.mxu0 %v434
    %498 = vmatpush.msra.mxu0 %v433
    %499 = vmatpush.msra.mxu0 %v432
    %500 = vmatpush.msra.mxu0 %v431
    %501 = vmatpush.msra.mxu0 %v430
    %502 = vmatpush.msra.mxu0 %v429
    %503 = vmatpush.msra.mxu0 %v428
    %504 = vmatpush.msra.mxu0 %v427
    %505 = vmatpush.msra.mxu0 %v426
    %506 = vmatmul.f32.gmra.mxu0 %v106
    %v507 = vpop.f32.mrf.mxu0
    %v508 = vadd.f32 0.0, %v507
    %509 = vmatmul.f32.gmra.mxu0 %v110
    %v510 = vpop.f32.mrf.mxu0
    %v511 = vadd.f32 0.0, %v510
    %512 = vmatmul.f32.gmra.mxu0 %v114
    %v513 = vpop.f32.mrf.mxu0
    %v514 = vadd.f32 0.0, %v513
    %515 = vmatmul.f32.gmra.mxu0 %v118
    %v516 = vpop.f32.mrf.mxu0
    %v517 = vadd.f32 0.0, %v516
    %518 = vmatmul.f32.gmra.mxu0 %v122
    %v519 = vpop.f32.mrf.mxu0
    %v520 = vadd.f32 0.0, %v519
    %521 = vmatmul.f32.gmra.mxu0 %v126
    %v522 = vpop.f32.mrf.mxu0
    %v523 = vadd.f32 0.0, %v522
    %524 = vmatmul.f32.gmra.mxu0 %v130
    %v525 = vpop.f32.mrf.mxu0
    %v526 = vadd.f32 0.0, %v525
    %527 = vmatmul.f32.gmra.mxu0 %v134
    %v528 = vpop.f32.mrf.mxu0
    %v529 = vadd.f32 0.0, %v528
    %530 = vmatmul.f32.gmra.mxu0 %v138
    %v531 = vpop.f32.mrf.mxu0
    %v532 = vadd.f32 0.0, %v531
    %533 = vmatmul.f32.gmra.mxu0 %v142
    %v534 = vpop.f32.mrf.mxu0
    %v535 = vadd.f32 0.0, %v534
    %536 = vmatmul.f32.gmra.mxu0 %v146
    %v537 = vpop.f32.mrf.mxu0
    %v538 = vadd.f32 0.0, %v537
    %539 = vmatmul.f32.gmra.mxu0 %v150
    %v540 = vpop.f32.mrf.mxu0
    %v541 = vadd.f32 0.0, %v540
    %542 = vmatmul.f32.gmra.mxu0 %v154
    %v543 = vpop.f32.mrf.mxu0
    %v544 = vadd.f32 0.0, %v543
    %545 = vmatmul.f32.gmra.mxu0 %v158
    %v546 = vpop.f32.mrf.mxu0
    %v547 = vadd.f32 0.0, %v546
    %548 = vmatmul.f32.gmra.mxu0 %v162
    %v549 = vpop.f32.mrf.mxu0
    %v550 = vadd.f32 0.0, %v549
    %551 = vmatmul.f32.gmra.mxu0 %v166
    %v552 = vpop.f32.mrf.mxu0
    %v553 = vadd.f32 0.0, %v552
    %554 = vmatmul.f32.gmra.mxu0 %v170
    %v555 = vpop.f32.mrf.mxu0
    %v556 = vadd.f32 0.0, %v555
    %557 = vmatmul.f32.gmra.mxu0 %v174
    %v558 = vpop.f32.mrf.mxu0
    %v559 = vadd.f32 0.0, %v558
    %560 = vmatmul.f32.gmra.mxu0 %v178
    %v561 = vpop.f32.mrf.mxu0
    %v562 = vadd.f32 0.0, %v561
    %563 = vmatmul.f32.gmra.mxu0 %v182
    %v564 = vpop.f32.mrf.mxu0
    %v565 = vadd.f32 0.0, %v564
    %566 = vmatmul.f32.gmra.mxu0 %v186
    %v567 = vpop.f32.mrf.mxu0
    %v568 = vadd.f32 0.0, %v567
    %569 = vmatmul.f32.gmra.mxu0 %v190
    %v570 = vpop.f32.mrf.mxu0
    %v571 = vadd.f32 0.0, %v570
    %572 = vmatmul.f32.gmra.mxu0 %v194
    %v573 = vpop.f32.mrf.mxu0
    %v574 = vadd.f32 0.0, %v573
    %575 = vmatmul.f32.gmra.mxu0 %v198
    %v576 = vpop.f32.mrf.mxu0
    %v577 = vadd.f32 0.0, %v576
    %578 = vmatmul.f32.gmra.mxu0 %v202
    %v579 = vpop.f32.mrf.mxu0
    %v580 = vadd.f32 0.0, %v579
    %581 = vmatmul.f32.gmra.mxu0 %v206
    %v582 = vpop.f32.mrf.mxu0
    %v583 = vadd.f32 0.0, %v582
    %584 = vmatmul.f32.gmra.mxu0 %v210
    %v585 = vpop.f32.mrf.mxu0
    %v586 = vadd.f32 0.0, %v585
    %587 = vmatmul.f32.gmra.mxu0 %v214
    %v588 = vpop.f32.mrf.mxu0
    %v589 = vadd.f32 0.0, %v588
    %590 = vmatmul.f32.gmra.mxu0 %v218
    %v591 = vpop.f32.mrf.mxu0
    %v592 = vadd.f32 0.0, %v591
    %593 = vmatmul.f32.gmra.mxu0 %v222
    %v594 = vpop.f32.mrf.mxu0
    %v595 = vadd.f32 0.0, %v594
    %596 = vmatmul.f32.gmra.mxu0 %v226
    %v597 = vpop.f32.mrf.mxu0
    %v598 = vadd.f32 0.0, %v597
    %599 = vmatmul.f32.gmra.mxu0 %v230
    %v600 = vpop.f32.mrf.mxu0
    %v601 = vadd.f32 0.0, %v600
    %602 = vmatmul.f32.gmra.mxu0 %v234
    %v603 = vpop.f32.mrf.mxu0
    %v604 = vadd.f32 0.0, %v603
    %605 = vmatmul.f32.gmra.mxu0 %v238
    %v606 = vpop.f32.mrf.mxu0
    %v607 = vadd.f32 0.0, %v606
    %608 = vmatmul.f32.gmra.mxu0 %v242
    %v609 = vpop.f32.mrf.mxu0
    %v610 = vadd.f32 0.0, %v609
    %611 = vmatmul.f32.gmra.mxu0 %v246
    %v612 = vpop.f32.mrf.mxu0
    %v613 = vadd.f32 0.0, %v612
    %614 = vmatmul.f32.gmra.mxu0 %v250
    %v615 = vpop.f32.mrf.mxu0
    %v616 = vadd.f32 0.0, %v615
    %617 = vmatmul.f32.gmra.mxu0 %v254
    %v618 = vpop.f32.mrf.mxu0
    %v619 = vadd.f32 0.0, %v618
    %620 = vmatmul.f32.gmra.mxu0 %v258
    %v621 = vpop.f32.mrf.mxu0
    %v622 = vadd.f32 0.0, %v621
    %623 = vmatmul.f32.gmra.mxu0 %v262
    %v624 = vpop.f32.mrf.mxu0
    %v625 = vadd.f32 0.0, %v624
    %626 = vmatmul.f32.gmra.mxu0 %v266
    %v627 = vpop.f32.mrf.mxu0
    %v628 = vadd.f32 0.0, %v627
    %629 = vmatmul.f32.gmra.mxu0 %v270
    %v630 = vpop.f32.mrf.mxu0
    %v631 = vadd.f32 0.0, %v630
    %632 = vmatmul.f32.gmra.mxu0 %v274
    %v633 = vpop.f32.mrf.mxu0
    %v634 = vadd.f32 0.0, %v633
    %635 = vmatmul.f32.gmra.mxu0 %v278
    %v636 = vpop.f32.mrf.mxu0
    %v637 = vadd.f32 0.0, %v636
    %638 = vmatmul.f32.gmra.mxu0 %v282
    %v639 = vpop.f32.mrf.mxu0
    %v640 = vadd.f32 0.0, %v639
    %641 = vmatmul.f32.gmra.mxu0 %v286
    %v642 = vpop.f32.mrf.mxu0
    %v643 = vadd.f32 0.0, %v642
    %644 = vmatmul.f32.gmra.mxu0 %v290
    %v645 = vpop.f32.mrf.mxu0
    %v646 = vadd.f32 0.0, %v645
    %647 = vmatmul.f32.gmra.mxu0 %v294
    %v648 = vpop.f32.mrf.mxu0
    %v649 = vadd.f32 0.0, %v648
    %650 = vmatmul.f32.gmra.mxu0 %v298
    %v651 = vpop.f32.mrf.mxu0
    %v652 = vadd.f32 0.0, %v651
    %653 = vmatmul.f32.gmra.mxu0 %v302
    %v654 = vpop.f32.mrf.mxu0
    %v655 = vadd.f32 0.0, %v654
    %656 = vmatmul.f32.gmra.mxu0 %v306
    %v657 = vpop.f32.mrf.mxu0
    %v658 = vadd.f32 0.0, %v657
    %659 = vmatmul.f32.gmra.mxu0 %v310
    %v660 = vpop.f32.mrf.mxu0
    %v661 = vadd.f32 0.0, %v660
    %662 = vmatmul.f32.gmra.mxu0 %v314
    %v663 = vpop.f32.mrf.mxu0
    %v664 = vadd.f32 0.0, %v663
    %665 = vmatmul.f32.gmra.mxu0 %v318
    %v666 = vpop.f32.mrf.mxu0
    %v667 = vadd.f32 0.0, %v666
    %668 = vmatmul.f32.gmra.mxu0 %v322
    %v669 = vpop.f32.mrf.mxu0
    %v670 = vadd.f32 0.0, %v669
    %671 = vmatmul.f32.gmra.mxu0 %v326
    %v672 = vpop.f32.mrf.mxu0
    %v673 = vadd.f32 0.0, %v672
    %674 = vmatmul.f32.gmra.mxu0 %v330
    %v675 = vpop.f32.mrf.mxu0
    %v676 = vadd.f32 0.0, %v675
    %677 = vmatmul.f32.gmra.mxu0 %v334
    %v678 = vpop.f32.mrf.mxu0
    %v679 = vadd.f32 0.0, %v678
    %680 = vmatmul.f32.gmra.mxu0 %v338
    %v681 = vpop.f32.mrf.mxu0
    %v682 = vadd.f32 0.0, %v681
    %683 = vmatmul.f32.gmra.mxu0 %v342
    %v684 = vpop.f32.mrf.mxu0
    %v685 = vadd.f32 0.0, %v684
    %686 = vmatmul.f32.gmra.mxu0 %v346
    %v687 = vpop.f32.mrf.mxu0
    %v688 = vadd.f32 0.0, %v687
    %689 = vmatmul.f32.gmra.mxu0 %v350
    %v690 = vpop.f32.mrf.mxu0
    %v691 = vadd.f32 0.0, %v690
    %692 = vmatmul.f32.gmra.mxu0 %v354
    %v693 = vpop.f32.mrf.mxu0
    %v694 = vadd.f32 0.0, %v693
    %695 = vmatmul.f32.gmra.mxu0 %v358
    %v696 = vpop.f32.mrf.mxu0
    %v697 = vadd.f32 0.0, %v696
    %698 = vdwg.mxu0
    %699 = vmatpush.msra.mxu0 %v457
    %700 = vmatpush.msra.mxu0 %v456
    %701 = vmatpush.msra.mxu0 %v455
    %702 = vmatpush.msra.mxu0 %v454
    %703 = vmatpush.msra.mxu0 %v453
    %704 = vmatpush.msra.mxu0 %v452
    %705 = vmatpush.msra.mxu0 %v451
    %706 = vmatpush.msra.mxu0 %v450
    %707 = vmatpush.msra.mxu0 %v449
    %708 = vmatpush.msra.mxu0 %v448
    %709 = vmatpush.msra.mxu0 %v447
    %710 = vmatpush.msra.mxu0 %v446
    %711 = vmatpush.msra.mxu0 %v445
    %712 = vmatpush.msra.mxu0 %v444
    %713 = vmatpush.msra.mxu0 %v443
    %714 = vmatpush.msra.mxu0 %v442
    %715 = vmatmul.f32.gmra.mxu0 %v107
    %v716 = vpop.f32.mrf.mxu0
    %v717 = vadd.f32 %v508, %v716
    %718 = vmatmul.f32.gmra.mxu0 %v111
    %v719 = vpop.f32.mrf.mxu0
    %v720 = vadd.f32 %v511, %v719
    %721 = vmatmul.f32.gmra.mxu0 %v115
    %v722 = vpop.f32.mrf.mxu0
    %v723 = vadd.f32 %v514, %v722
    %724 = vmatmul.f32.gmra.mxu0 %v119
    %v725 = vpop.f32.mrf.mxu0
    %v726 = vadd.f32 %v517, %v725
    %727 = vmatmul.f32.gmra.mxu0 %v123
    %v728 = vpop.f32.mrf.mxu0
    %v729 = vadd.f32 %v520, %v728
    %730 = vmatmul.f32.gmra.mxu0 %v127
    %v731 = vpop.f32.mrf.mxu0
    %v732 = vadd.f32 %v523, %v731
    %733 = vmatmul.f32.gmra.mxu0 %v131
    %v734 = vpop.f32.mrf.mxu0
    %v735 = vadd.f32 %v526, %v734
    %736 = vmatmul.f32.gmra.mxu0 %v135
    %v737 = vpop.f32.mrf.mxu0
    %v738 = vadd.f32 %v529, %v737
    %739 = vmatmul.f32.gmra.mxu0 %v139
    %v740 = vpop.f32.mrf.mxu0
    %v741 = vadd.f32 %v532, %v740
    %742 = vmatmul.f32.gmra.mxu0 %v143
    %v743 = vpop.f32.mrf.mxu0
    %v744 = vadd.f32 %v535, %v743
    %745 = vmatmul.f32.gmra.mxu0 %v147
    %v746 = vpop.f32.mrf.mxu0
    %v747 = vadd.f32 %v538, %v746
    %748 = vmatmul.f32.gmra.mxu0 %v151
    %v749 = vpop.f32.mrf.mxu0
    %v750 = vadd.f32 %v541, %v749
    %751 = vmatmul.f32.gmra.mxu0 %v155
    %v752 = vpop.f32.mrf.mxu0
    %v753 = vadd.f32 %v544, %v752
    %754 = vmatmul.f32.gmra.mxu0 %v159
    %v755 = vpop.f32.mrf.mxu0
    %v756 = vadd.f32 %v547, %v755
    %757 = vmatmul.f32.gmra.mxu0 %v163
    %v758 = vpop.f32.mrf.mxu0
    %v759 = vadd.f32 %v550, %v758
    %760 = vmatmul.f32.gmra.mxu0 %v167
    %v761 = vpop.f32.mrf.mxu0
    %v762 = vadd.f32 %v553, %v761
    %763 = vmatmul.f32.gmra.mxu0 %v171
    %v764 = vpop.f32.mrf.mxu0
    %v765 = vadd.f32 %v556, %v764
    %766 = vmatmul.f32.gmra.mxu0 %v175
    %v767 = vpop.f32.mrf.mxu0
    %v768 = vadd.f32 %v559, %v767
    %769 = vmatmul.f32.gmra.mxu0 %v179
    %v770 = vpop.f32.mrf.mxu0
    %v771 = vadd.f32 %v562, %v770
    %772 = vmatmul.f32.gmra.mxu0 %v183
    %v773 = vpop.f32.mrf.mxu0
    %v774 = vadd.f32 %v565, %v773
    %775 = vmatmul.f32.gmra.mxu0 %v187
    %v776 = vpop.f32.mrf.mxu0
    %v777 = vadd.f32 %v568, %v776
    %778 = vmatmul.f32.gmra.mxu0 %v191
    %v779 = vpop.f32.mrf.mxu0
    %v780 = vadd.f32 %v571, %v779
    %781 = vmatmul.f32.gmra.mxu0 %v195
    %v782 = vpop.f32.mrf.mxu0
    %v783 = vadd.f32 %v574, %v782
    %784 = vmatmul.f32.gmra.mxu0 %v199
    %v785 = vpop.f32.mrf.mxu0
    %v786 = vadd.f32 %v577, %v785
    %787 = vmatmul.f32.gmra.mxu0 %v203
    %v788 = vpop.f32.mrf.mxu0
    %v789 = vadd.f32 %v580, %v788
    %790 = vmatmul.f32.gmra.mxu0 %v207
    %v791 = vpop.f32.mrf.mxu0
    %v792 = vadd.f32 %v583, %v791
    %793 = vmatmul.f32.gmra.mxu0 %v211
    %v794 = vpop.f32.mrf.mxu0
    %v795 = vadd.f32 %v586, %v794
    %796 = vmatmul.f32.gmra.mxu0 %v215
    %v797 = vpop.f32.mrf.mxu0
    %v798 = vadd.f32 %v589, %v797
    %799 = vmatmul.f32.gmra.mxu0 %v219
    %v800 = vpop.f32.mrf.mxu0
    %v801 = vadd.f32 %v592, %v800
    %802 = vmatmul.f32.gmra.mxu0 %v223
    %v803 = vpop.f32.mrf.mxu0
    %v804 = vadd.f32 %v595, %v803
    %805 = vmatmul.f32.gmra.mxu0 %v227
    %v806 = vpop.f32.mrf.mxu0
    %v807 = vadd.f32 %v598, %v806
    %808 = vmatmul.f32.gmra.mxu0 %v231
    %v809 = vpop.f32.mrf.mxu0
    %v810 = vadd.f32 %v601, %v809
    %811 = vmatmul.f32.gmra.mxu0 %v235
    %v812 = vpop.f32.mrf.mxu0
    %v813 = vadd.f32 %v604, %v812
    %814 = vmatmul.f32.gmra.mxu0 %v239
    %v815 = vpop.f32.mrf.mxu0
    %v816 = vadd.f32 %v607, %v815
    %817 = vmatmul.f32.gmra.mxu0 %v243
    %v818 = vpop.f32.mrf.mxu0
    %v819 = vadd.f32 %v610, %v818
    %820 = vmatmul.f32.gmra.mxu0 %v247
    %v821 = vpop.f32.mrf.mxu0
    %v822 = vadd.f32 %v613, %v821
    %823 = vmatmul.f32.gmra.mxu0 %v251
    %v824 = vpop.f32.mrf.mxu0
    %v825 = vadd.f32 %v616, %v824
    %826 = vmatmul.f32.gmra.mxu0 %v255
    %v827 = vpop.f32.mrf.mxu0
    %v828 = vadd.f32 %v619, %v827
    %829 = vmatmul.f32.gmra.mxu0 %v259
    %v830 = vpop.f32.mrf.mxu0
    %v831 = vadd.f32 %v622, %v830
    %832 = vmatmul.f32.gmra.mxu0 %v263
    %v833 = vpop.f32.mrf.mxu0
    %v834 = vadd.f32 %v625, %v833
    %835 = vmatmul.f32.gmra.mxu0 %v267
    %v836 = vpop.f32.mrf.mxu0
    %v837 = vadd.f32 %v628, %v836
    %838 = vmatmul.f32.gmra.mxu0 %v271
    %v839 = vpop.f32.mrf.mxu0
    %v840 = vadd.f32 %v631, %v839
    %841 = vmatmul.f32.gmra.mxu0 %v275
    %v842 = vpop.f32.mrf.mxu0
    %v843 = vadd.f32 %v634, %v842
    %844 = vmatmul.f32.gmra.mxu0 %v279
    %v845 = vpop.f32.mrf.mxu0
    %v846 = vadd.f32 %v637, %v845
    %847 = vmatmul.f32.gmra.mxu0 %v283
    %v848 = vpop.f32.mrf.mxu0
    %v849 = vadd.f32 %v640, %v848
    %850 = vmatmul.f32.gmra.mxu0 %v287
    %v851 = vpop.f32.mrf.mxu0
    %v852 = vadd.f32 %v643, %v851
    %853 = vmatmul.f32.gmra.mxu0 %v291
    %v854 = vpop.f32.mrf.mxu0
    %v855 = vadd.f32 %v646, %v854
    %856 = vmatmul.f32.gmra.mxu0 %v295
    %v857 = vpop.f32.mrf.mxu0
    %v858 = vadd.f32 %v649, %v857
    %859 = vmatmul.f32.gmra.mxu0 %v299
    %v860 = vpop.f32.mrf.mxu0
    %v861 = vadd.f32 %v652, %v860
    %862 = vmatmul.f32.gmra.mxu0 %v303
    %v863 = vpop.f32.mrf.mxu0
    %v864 = vadd.f32 %v655, %v863
    %865 = vmatmul.f32.gmra.mxu0 %v307
    %v866 = vpop.f32.mrf.mxu0
    %v867 = vadd.f32 %v658, %v866
    %868 = vmatmul.f32.gmra.mxu0 %v311
    %v869 = vpop.f32.mrf.mxu0
    %v870 = vadd.f32 %v661, %v869
    %871 = vmatmul.f32.gmra.mxu0 %v315
    %v872 = vpop.f32.mrf.mxu0
    %v873 = vadd.f32 %v664, %v872
    %874 = vmatmul.f32.gmra.mxu0 %v319
    %v875 = vpop.f32.mrf.mxu0
    %v876 = vadd.f32 %v667, %v875
    %877 = vmatmul.f32.gmra.mxu0 %v323
    %v878 = vpop.f32.mrf.mxu0
    %v879 = vadd.f32 %v670, %v878
    %880 = vmatmul.f32.gmra.mxu0 %v327
    %v881 = vpop.f32.mrf.mxu0
    %v882 = vadd.f32 %v673, %v881
    %883 = vmatmul.f32.gmra.mxu0 %v331
    %v884 = vpop.f32.mrf.mxu0
    %v885 = vadd.f32 %v676, %v884
    %886 = vmatmul.f32.gmra.mxu0 %v335
    %v887 = vpop.f32.mrf.mxu0
    %v888 = vadd.f32 %v679, %v887
    %889 = vmatmul.f32.gmra.mxu0 %v339
    %v890 = vpop.f32.mrf.mxu0
    %v891 = vadd.f32 %v682, %v890
    %892 = vmatmul.f32.gmra.mxu0 %v343
    %v893 = vpop.f32.mrf.mxu0
    %v894 = vadd.f32 %v685, %v893
    %895 = vmatmul.f32.gmra.mxu0 %v347
    %v896 = vpop.f32.mrf.mxu0
    %v897 = vadd.f32 %v688, %v896
    %898 = vmatmul.f32.gmra.mxu0 %v351
    %v899 = vpop.f32.mrf.mxu0
    %v900 = vadd.f32 %v691, %v899
    %901 = vmatmul.f32.gmra.mxu0 %v355
    %v902 = vpop.f32.mrf.mxu0
    %v903 = vadd.f32 %v694, %v902
    %904 = vmatmul.f32.gmra.mxu0 %v359
    %v905 = vpop.f32.mrf.mxu0
    %v906 = vadd.f32 %v697, %v905
    %907 = vdwg.mxu0
    %908 = vmatpush.msra.mxu0 %v473
    %909 = vmatpush.msra.mxu0 %v472
    %910 = vmatpush.msra.mxu0 %v471
    %911 = vmatpush.msra.mxu0 %v470
    %912 = vmatpush.msra.mxu0 %v469
    %913 = vmatpush.msra.mxu0 %v468
    %914 = vmatpush.msra.mxu0 %v467
    %915 = vmatpush.msra.mxu0 %v466
    %916 = vmatpush.msra.mxu0 %v465
    %917 = vmatpush.msra.mxu0 %v464
    %918 = vmatpush.msra.mxu0 %v463
    %919 = vmatpush.msra.mxu0 %v462
    %920 = vmatpush.msra.mxu0 %v461
    %921 = vmatpush.msra.mxu0 %v460
    %922 = vmatpush.msra.mxu0 %v459
    %923 = vmatpush.msra.mxu0 %v458
    %924 = vmatmul.f32.gmra.mxu0 %v108
    %v925 = vpop.f32.mrf.mxu0
    %v926 = vadd.f32 %v717, %v925
    %927 = vmatmul.f32.gmra.mxu0 %v112
    %v928 = vpop.f32.mrf.mxu0
    %v929 = vadd.f32 %v720, %v928
    %930 = vmatmul.f32.gmra.mxu0 %v116
    %v931 = vpop.f32.mrf.mxu0
    %v932 = vadd.f32 %v723, %v931
    %933 = vmatmul.f32.gmra.mxu0 %v120
    %v934 = vpop.f32.mrf.mxu0
    %v935 = vadd.f32 %v726, %v934
    %936 = vmatmul.f32.gmra.mxu0 %v124
    %v937 = vpop.f32.mrf.mxu0
    %v938 = vadd.f32 %v729, %v937
    %939 = vmatmul.f32.gmra.mxu0 %v128
    %v940 = vpop.f32.mrf.mxu0
    %v941 = vadd.f32 %v732, %v940
    %942 = vmatmul.f32.gmra.mxu0 %v132
    %v943 = vpop.f32.mrf.mxu0
    %v944 = vadd.f32 %v735, %v943
    %945 = vmatmul.f32.gmra.mxu0 %v136
    %v946 = vpop.f32.mrf.mxu0
    %v947 = vadd.f32 %v738, %v946
    %948 = vmatmul.f32.gmra.mxu0 %v140
    %v949 = vpop.f32.mrf.mxu0
    %v950 = vadd.f32 %v741, %v949
    %951 = vmatmul.f32.gmra.mxu0 %v144
    %v952 = vpop.f32.mrf.mxu0
    %v953 = vadd.f32 %v744, %v952
    %954 = vmatmul.f32.gmra.mxu0 %v148
    %v955 = vpop.f32.mrf.mxu0
    %v956 = vadd.f32 %v747, %v955
    %957 = vmatmul.f32.gmra.mxu0 %v152
    %v958 = vpop.f32.mrf.mxu0
    %v959 = vadd.f32 %v750, %v958
    %960 = vmatmul.f32.gmra.mxu0 %v156
    %v961 = vpop.f32.mrf.mxu0
    %v962 = vadd.f32 %v753, %v961
    %963 = vmatmul.f32.gmra.mxu0 %v160
    %v964 = vpop.f32.mrf.mxu0
    %v965 = vadd.f32 %v756, %v964
    %966 = vmatmul.f32.gmra.mxu0 %v164
    %v967 = vpop.f32.mrf.mxu0
    %v968 = vadd.f32 %v759, %v967
    %969 = vmatmul.f32.gmra.mxu0 %v168
    %v970 = vpop.f32.mrf.mxu0
    %v971 = vadd.f32 %v762, %v970
    %972 = vmatmul.f32.gmra.mxu0 %v172
    %v973 = vpop.f32.mrf.mxu0
    %v974 = vadd.f32 %v765, %v973
    %975 = vmatmul.f32.gmra.mxu0 %v176
    %v976 = vpop.f32.mrf.mxu0
    %v977 = vadd.f32 %v768, %v976
    %978 = vmatmul.f32.gmra.mxu0 %v180
    %v979 = vpop.f32.mrf.mxu0
    %v980 = vadd.f32 %v771, %v979
    %981 = vmatmul.f32.gmra.mxu0 %v184
    %v982 = vpop.f32.mrf.mxu0
    %v983 = vadd.f32 %v774, %v982
    %984 = vmatmul.f32.gmra.mxu0 %v188
    %v985 = vpop.f32.mrf.mxu0
    %v986 = vadd.f32 %v777, %v985
    %987 = vmatmul.f32.gmra.mxu0 %v192
    %v988 = vpop.f32.mrf.mxu0
    %v989 = vadd.f32 %v780, %v988
    %990 = vmatmul.f32.gmra.mxu0 %v196
    %v991 = vpop.f32.mrf.mxu0
    %v992 = vadd.f32 %v783, %v991
    %993 = vmatmul.f32.gmra.mxu0 %v200
    %v994 = vpop.f32.mrf.mxu0
    %v995 = vadd.f32 %v786, %v994
    %996 = vmatmul.f32.gmra.mxu0 %v204
    %v997 = vpop.f32.mrf.mxu0
    %v998 = vadd.f32 %v789, %v997
    %999 = vmatmul.f32.gmra.mxu0 %v208
    %v1000 = vpop.f32.mrf.mxu0
    %v1001 = vadd.f32 %v792, %v1000
    %1002 = vmatmul.f32.gmra.mxu0 %v212
    %v1003 = vpop.f32.mrf.mxu0
    %v1004 = vadd.f32 %v795, %v1003
    %1005 = vmatmul.f32.gmra.mxu0 %v216
    %v1006 = vpop.f32.mrf.mxu0
    %v1007 = vadd.f32 %v798, %v1006
    %1008 = vmatmul.f32.gmra.mxu0 %v220
    %v1009 = vpop.f32.mrf.mxu0
    %v1010 = vadd.f32 %v801, %v1009
    %1011 = vmatmul.f32.gmra.mxu0 %v224
    %v1012 = vpop.f32.mrf.mxu0
    %v1013 = vadd.f32 %v804, %v1012
    %1014 = vmatmul.f32.gmra.mxu0 %v228
    %v1015 = vpop.f32.mrf.mxu0
    %v1016 = vadd.f32 %v807, %v1015
    %1017 = vmatmul.f32.gmra.mxu0 %v232
    %v1018 = vpop.f32.mrf.mxu0
    %v1019 = vadd.f32 %v810, %v1018
    %1020 = vmatmul.f32.gmra.mxu0 %v236
    %v1021 = vpop.f32.mrf.mxu0
    %v1022 = vadd.f32 %v813, %v1021
    %1023 = vmatmul.f32.gmra.mxu0 %v240
    %v1024 = vpop.f32.mrf.mxu0
    %v1025 = vadd.f32 %v816, %v1024
    %1026 = vmatmul.f32.gmra.mxu0 %v244
    %v1027 = vpop.f32.mrf.mxu0
    %v1028 = vadd.f32 %v819, %v1027
    %1029 = vmatmul.f32.gmra.mxu0 %v248
    %v1030 = vpop.f32.mrf.mxu0
    %v1031 = vadd.f32 %v822, %v1030
    %1032 = vmatmul.f32.gmra.mxu0 %v252
    %v1033 = vpop.f32.mrf.mxu0
    %v1034 = vadd.f32 %v825, %v1033
    %1035 = vmatmul.f32.gmra.mxu0 %v256
    %v1036 = vpop.f32.mrf.mxu0
    %v1037 = vadd.f32 %v828, %v1036
    %1038 = vmatmul.f32.gmra.mxu0 %v260
    %v1039 = vpop.f32.mrf.mxu0
    %v1040 = vadd.f32 %v831, %v1039
    %1041 = vmatmul.f32.gmra.mxu0 %v264
    %v1042 = vpop.f32.mrf.mxu0
    %v1043 = vadd.f32 %v834, %v1042
    %1044 = vmatmul.f32.gmra.mxu0 %v268
    %v1045 = vpop.f32.mrf.mxu0
    %v1046 = vadd.f32 %v837, %v1045
    %1047 = vmatmul.f32.gmra.mxu0 %v272
    %v1048 = vpop.f32.mrf.mxu0
    %v1049 = vadd.f32 %v840, %v1048
    %1050 = vmatmul.f32.gmra.mxu0 %v276
    %v1051 = vpop.f32.mrf.mxu0
    %v1052 = vadd.f32 %v843, %v1051
    %1053 = vmatmul.f32.gmra.mxu0 %v280
    %v1054 = vpop.f32.mrf.mxu0
    %v1055 = vadd.f32 %v846, %v1054
    %1056 = vmatmul.f32.gmra.mxu0 %v284
    %v1057 = vpop.f32.mrf.mxu0
    %v1058 = vadd.f32 %v849, %v1057
    %1059 = vmatmul.f32.gmra.mxu0 %v288
    %v1060 = vpop.f32.mrf.mxu0
    %v1061 = vadd.f32 %v852, %v1060
    %1062 = vmatmul.f32.gmra.mxu0 %v292
    %v1063 = vpop.f32.mrf.mxu0
    %v1064 = vadd.f32 %v855, %v1063
    %1065 = vmatmul.f32.gmra.mxu0 %v296
    %v1066 = vpop.f32.mrf.mxu0
    %v1067 = vadd.f32 %v858, %v1066
    %1068 = vmatmul.f32.gmra.mxu0 %v300
    %v1069 = vpop.f32.mrf.mxu0
    %v1070 = vadd.f32 %v861, %v1069
    %1071 = vmatmul.f32.gmra.mxu0 %v304
    %v1072 = vpop.f32.mrf.mxu0
    %v1073 = vadd.f32 %v864, %v1072
    %1074 = vmatmul.f32.gmra.mxu0 %v308
    %v1075 = vpop.f32.mrf.mxu0
    %v1076 = vadd.f32 %v867, %v1075
    %1077 = vmatmul.f32.gmra.mxu0 %v312
    %v1078 = vpop.f32.mrf.mxu0
    %v1079 = vadd.f32 %v870, %v1078
    %1080 = vmatmul.f32.gmra.mxu0 %v316
    %v1081 = vpop.f32.mrf.mxu0
    %v1082 = vadd.f32 %v873, %v1081
    %1083 = vmatmul.f32.gmra.mxu0 %v320
    %v1084 = vpop.f32.mrf.mxu0
    %v1085 = vadd.f32 %v876, %v1084
    %1086 = vmatmul.f32.gmra.mxu0 %v324
    %v1087 = vpop.f32.mrf.mxu0
    %v1088 = vadd.f32 %v879, %v1087
    %1089 = vmatmul.f32.gmra.mxu0 %v328
    %v1090 = vpop.f32.mrf.mxu0
    %v1091 = vadd.f32 %v882, %v1090
    %1092 = vmatmul.f32.gmra.mxu0 %v332
    %v1093 = vpop.f32.mrf.mxu0
    %v1094 = vadd.f32 %v885, %v1093
    %1095 = vmatmul.f32.gmra.mxu0 %v336
    %v1096 = vpop.f32.mrf.mxu0
    %v1097 = vadd.f32 %v888, %v1096
    %1098 = vmatmul.f32.gmra.mxu0 %v340
    %v1099 = vpop.f32.mrf.mxu0
    %v1100 = vadd.f32 %v891, %v1099
    %1101 = vmatmul.f32.gmra.mxu0 %v344
    %v1102 = vpop.f32.mrf.mxu0
    %v1103 = vadd.f32 %v894, %v1102
    %1104 = vmatmul.f32.gmra.mxu0 %v348
    %v1105 = vpop.f32.mrf.mxu0
    %v1106 = vadd.f32 %v897, %v1105
    %1107 = vmatmul.f32.gmra.mxu0 %v352
    %v1108 = vpop.f32.mrf.mxu0
    %v1109 = vadd.f32 %v900, %v1108
    %1110 = vmatmul.f32.gmra.mxu0 %v356
    %v1111 = vpop.f32.mrf.mxu0
    %v1112 = vadd.f32 %v903, %v1111
    %1113 = vmatmul.f32.gmra.mxu0 %v360
    %v1114 = vpop.f32.mrf.mxu0
    %v1115 = vadd.f32 %v906, %v1114
    %1116 = vdwg.mxu0
    %1117 = vmatpush.msra.mxu0 %v489
    %1118 = vmatpush.msra.mxu0 %v488
    %1119 = vmatpush.msra.mxu0 %v487
    %1120 = vmatpush.msra.mxu0 %v486
    %1121 = vmatpush.msra.mxu0 %v485
    %1122 = vmatpush.msra.mxu0 %v484
    %1123 = vmatpush.msra.mxu0 %v483
    %1124 = vmatpush.msra.mxu0 %v482
    %1125 = vmatpush.msra.mxu0 %v481
    %1126 = vmatpush.msra.mxu0 %v480
    %1127 = vmatpush.msra.mxu0 %v479
    %1128 = vmatpush.msra.mxu0 %v478
    %1129 = vmatpush.msra.mxu0 %v477
    %1130 = vmatpush.msra.mxu0 %v476
    %1131 = vmatpush.msra.mxu0 %v475
    %1132 = vmatpush.msra.mxu0 %v474
    %1133 = vmatmul.f32.gmra.mxu0 %v109
    %v1134 = vpop.f32.mrf.mxu0
    %v1135 = vadd.f32 %v926, %v1134
    %1136 = vmatmul.f32.gmra.mxu0 %v113
    %v1137 = vpop.f32.mrf.mxu0
    %v1138 = vadd.f32 %v929, %v1137
    %1139 = vmatmul.f32.gmra.mxu0 %v117
    %v1140 = vpop.f32.mrf.mxu0
    %v1141 = vadd.f32 %v932, %v1140
    %1142 = vmatmul.f32.gmra.mxu0 %v121
    %v1143 = vpop.f32.mrf.mxu0
    %v1144 = vadd.f32 %v935, %v1143
    %1145 = vmatmul.f32.gmra.mxu0 %v125
    %v1146 = vpop.f32.mrf.mxu0
    %v1147 = vadd.f32 %v938, %v1146
    %1148 = vmatmul.f32.gmra.mxu0 %v129
    %v1149 = vpop.f32.mrf.mxu0
    %v1150 = vadd.f32 %v941, %v1149
    %1151 = vmatmul.f32.gmra.mxu0 %v133
    %v1152 = vpop.f32.mrf.mxu0
    %v1153 = vadd.f32 %v944, %v1152
    %1154 = vmatmul.f32.gmra.mxu0 %v137
    %v1155 = vpop.f32.mrf.mxu0
    %v1156 = vadd.f32 %v947, %v1155
    %1157 = vmatmul.f32.gmra.mxu0 %v141
    %v1158 = vpop.f32.mrf.mxu0
    %v1159 = vadd.f32 %v950, %v1158
    %1160 = vmatmul.f32.gmra.mxu0 %v145
    %v1161 = vpop.f32.mrf.mxu0
    %v1162 = vadd.f32 %v953, %v1161
    %1163 = vmatmul.f32.gmra.mxu0 %v149
    %v1164 = vpop.f32.mrf.mxu0
    %v1165 = vadd.f32 %v956, %v1164
    %1166 = vmatmul.f32.gmra.mxu0 %v153
    %v1167 = vpop.f32.mrf.mxu0
    %v1168 = vadd.f32 %v959, %v1167
    %1169 = vmatmul.f32.gmra.mxu0 %v157
    %v1170 = vpop.f32.mrf.mxu0
    %v1171 = vadd.f32 %v962, %v1170
    %1172 = vmatmul.f32.gmra.mxu0 %v161
    %v1173 = vpop.f32.mrf.mxu0
    %v1174 = vadd.f32 %v965, %v1173
    %1175 = vmatmul.f32.gmra.mxu0 %v165
    %v1176 = vpop.f32.mrf.mxu0
    %v1177 = vadd.f32 %v968, %v1176
    %1178 = vmatmul.f32.gmra.mxu0 %v169
    %v1179 = vpop.f32.mrf.mxu0
    %v1180 = vadd.f32 %v971, %v1179
    %1181 = vmatmul.f32.gmra.mxu0 %v173
    %v1182 = vpop.f32.mrf.mxu0
    %v1183 = vadd.f32 %v974, %v1182
    %1184 = vmatmul.f32.gmra.mxu0 %v177
    %v1185 = vpop.f32.mrf.mxu0
    %v1186 = vadd.f32 %v977, %v1185
    %1187 = vmatmul.f32.gmra.mxu0 %v181
    %v1188 = vpop.f32.mrf.mxu0
    %v1189 = vadd.f32 %v980, %v1188
    %1190 = vmatmul.f32.gmra.mxu0 %v185
    %v1191 = vpop.f32.mrf.mxu0
    %v1192 = vadd.f32 %v983, %v1191
    %1193 = vmatmul.f32.gmra.mxu0 %v189
    %v1194 = vpop.f32.mrf.mxu0
    %v1195 = vadd.f32 %v986, %v1194
    %1196 = vmatmul.f32.gmra.mxu0 %v193
    %v1197 = vpop.f32.mrf.mxu0
    %v1198 = vadd.f32 %v989, %v1197
    %1199 = vmatmul.f32.gmra.mxu0 %v197
    %v1200 = vpop.f32.mrf.mxu0
    %v1201 = vadd.f32 %v992, %v1200
    %1202 = vmatmul.f32.gmra.mxu0 %v201
    %v1203 = vpop.f32.mrf.mxu0
    %v1204 = vadd.f32 %v995, %v1203
    %1205 = vmatmul.f32.gmra.mxu0 %v205
    %v1206 = vpop.f32.mrf.mxu0
    %v1207 = vadd.f32 %v998, %v1206
    %1208 = vmatmul.f32.gmra.mxu0 %v209
    %v1209 = vpop.f32.mrf.mxu0
    %v1210 = vadd.f32 %v1001, %v1209
    %1211 = vmatmul.f32.gmra.mxu0 %v213
    %v1212 = vpop.f32.mrf.mxu0
    %v1213 = vadd.f32 %v1004, %v1212
    %1214 = vmatmul.f32.gmra.mxu0 %v217
    %v1215 = vpop.f32.mrf.mxu0
    %v1216 = vadd.f32 %v1007, %v1215
    %1217 = vmatmul.f32.gmra.mxu0 %v221
    %v1218 = vpop.f32.mrf.mxu0
    %v1219 = vadd.f32 %v1010, %v1218
    %1220 = vmatmul.f32.gmra.mxu0 %v225
    %v1221 = vpop.f32.mrf.mxu0
    %v1222 = vadd.f32 %v1013, %v1221
    %1223 = vmatmul.f32.gmra.mxu0 %v229
    %v1224 = vpop.f32.mrf.mxu0
    %v1225 = vadd.f32 %v1016, %v1224
    %1226 = vmatmul.f32.gmra.mxu0 %v233
    %v1227 = vpop.f32.mrf.mxu0
    %v1228 = vadd.f32 %v1019, %v1227
    %1229 = vmatmul.f32.gmra.mxu0 %v237
    %v1230 = vpop.f32.mrf.mxu0
    %v1231 = vadd.f32 %v1022, %v1230
    %1232 = vmatmul.f32.gmra.mxu0 %v241
    %v1233 = vpop.f32.mrf.mxu0
    %v1234 = vadd.f32 %v1025, %v1233
    %1235 = vmatmul.f32.gmra.mxu0 %v245
    %v1236 = vpop.f32.mrf.mxu0
    %v1237 = vadd.f32 %v1028, %v1236
    %1238 = vmatmul.f32.gmra.mxu0 %v249
    %v1239 = vpop.f32.mrf.mxu0
    %v1240 = vadd.f32 %v1031, %v1239
    %1241 = vmatmul.f32.gmra.mxu0 %v253
    %v1242 = vpop.f32.mrf.mxu0
    %v1243 = vadd.f32 %v1034, %v1242
    %1244 = vmatmul.f32.gmra.mxu0 %v257
    %v1245 = vpop.f32.mrf.mxu0
    %v1246 = vadd.f32 %v1037, %v1245
    %1247 = vmatmul.f32.gmra.mxu0 %v261
    %v1248 = vpop.f32.mrf.mxu0
    %v1249 = vadd.f32 %v1040, %v1248
    %1250 = vmatmul.f32.gmra.mxu0 %v265
    %v1251 = vpop.f32.mrf.mxu0
    %v1252 = vadd.f32 %v1043, %v1251
    %1253 = vmatmul.f32.gmra.mxu0 %v269
    %v1254 = vpop.f32.mrf.mxu0
    %v1255 = vadd.f32 %v1046, %v1254
    %1256 = vmatmul.f32.gmra.mxu0 %v273
    %v1257 = vpop.f32.mrf.mxu0
    %v1258 = vadd.f32 %v1049, %v1257
    %1259 = vmatmul.f32.gmra.mxu0 %v277
    %v1260 = vpop.f32.mrf.mxu0
    %v1261 = vadd.f32 %v1052, %v1260
    %1262 = vmatmul.f32.gmra.mxu0 %v281
    %v1263 = vpop.f32.mrf.mxu0
    %v1264 = vadd.f32 %v1055, %v1263
    %1265 = vmatmul.f32.gmra.mxu0 %v285
    %v1266 = vpop.f32.mrf.mxu0
    %v1267 = vadd.f32 %v1058, %v1266
    %1268 = vmatmul.f32.gmra.mxu0 %v289
    %v1269 = vpop.f32.mrf.mxu0
    %v1270 = vadd.f32 %v1061, %v1269
    %1271 = vmatmul.f32.gmra.mxu0 %v293
    %v1272 = vpop.f32.mrf.mxu0
    %v1273 = vadd.f32 %v1064, %v1272
    %1274 = vmatmul.f32.gmra.mxu0 %v297
    %v1275 = vpop.f32.mrf.mxu0
    %v1276 = vadd.f32 %v1067, %v1275
    %1277 = vmatmul.f32.gmra.mxu0 %v301
    %v1278 = vpop.f32.mrf.mxu0
    %v1279 = vadd.f32 %v1070, %v1278
    %1280 = vmatmul.f32.gmra.mxu0 %v305
    %v1281 = vpop.f32.mrf.mxu0
    %v1282 = vadd.f32 %v1073, %v1281
    %1283 = vmatmul.f32.gmra.mxu0 %v309
    %v1284 = vpop.f32.mrf.mxu0
    %v1285 = vadd.f32 %v1076, %v1284
    %1286 = vmatmul.f32.gmra.mxu0 %v313
    %v1287 = vpop.f32.mrf.mxu0
    %v1288 = vadd.f32 %v1079, %v1287
    %1289 = vmatmul.f32.gmra.mxu0 %v317
    %v1290 = vpop.f32.mrf.mxu0
    %v1291 = vadd.f32 %v1082, %v1290
    %1292 = vmatmul.f32.gmra.mxu0 %v321
    %v1293 = vpop.f32.mrf.mxu0
    %v1294 = vadd.f32 %v1085, %v1293
    %1295 = vmatmul.f32.gmra.mxu0 %v325
    %v1296 = vpop.f32.mrf.mxu0
    %v1297 = vadd.f32 %v1088, %v1296
    %1298 = vmatmul.f32.gmra.mxu0 %v329
    %v1299 = vpop.f32.mrf.mxu0
    %v1300 = vadd.f32 %v1091, %v1299
    %1301 = vmatmul.f32.gmra.mxu0 %v333
    %v1302 = vpop.f32.mrf.mxu0
    %v1303 = vadd.f32 %v1094, %v1302
    %1304 = vmatmul.f32.gmra.mxu0 %v337
    %v1305 = vpop.f32.mrf.mxu0
    %v1306 = vadd.f32 %v1097, %v1305
    %1307 = vmatmul.f32.gmra.mxu0 %v341
    %v1308 = vpop.f32.mrf.mxu0
    %v1309 = vadd.f32 %v1100, %v1308
    %1310 = vmatmul.f32.gmra.mxu0 %v345
    %v1311 = vpop.f32.mrf.mxu0
    %v1312 = vadd.f32 %v1103, %v1311
    %1313 = vmatmul.f32.gmra.mxu0 %v349
    %v1314 = vpop.f32.mrf.mxu0
    %v1315 = vadd.f32 %v1106, %v1314
    %1316 = vmatmul.f32.gmra.mxu0 %v353
    %v1317 = vpop.f32.mrf.mxu0
    %v1318 = vadd.f32 %v1109, %v1317
    %1319 = vmatmul.f32.gmra.mxu0 %v357
    %v1320 = vpop.f32.mrf.mxu0
    %v1321 = vadd.f32 %v1112, %v1320
    %1322 = vmatmul.f32.gmra.mxu0 %v361
    %v1323 = vpop.f32.mrf.mxu0
    %v1324 = vadd.f32 %v1115, %v1323
    %1325 = vdwg.mxu0
    %v1326 = vadd.f32 %v362, %v1135
    %v1327 = vadd.f32 %v363, %v1138
    %v1328 = vadd.f32 %v364, %v1141
    %v1329 = vadd.f32 %v365, %v1144
    %v1330 = vadd.f32 %v366, %v1147
    %v1331 = vadd.f32 %v367, %v1150
    %v1332 = vadd.f32 %v368, %v1153
    %v1333 = vadd.f32 %v369, %v1156
    %v1334 = vadd.f32 %v370, %v1159
    %v1335 = vadd.f32 %v371, %v1162
    %v1336 = vadd.f32 %v372, %v1165
    %v1337 = vadd.f32 %v373, %v1168
    %v1338 = vadd.f32 %v374, %v1171
    %v1339 = vadd.f32 %v375, %v1174
    %v1340 = vadd.f32 %v376, %v1177
    %v1341 = vadd.f32 %v377, %v1180
    %v1342 = vadd.f32 %v378, %v1183
    %v1343 = vadd.f32 %v379, %v1186
    %v1344 = vadd.f32 %v380, %v1189
    %v1345 = vadd.f32 %v381, %v1192
    %v1346 = vadd.f32 %v382, %v1195
    %v1347 = vadd.f32 %v383, %v1198
    %v1348 = vadd.f32 %v384, %v1201
    %v1349 = vadd.f32 %v385, %v1204
    %v1350 = vadd.f32 %v386, %v1207
    %v1351 = vadd.f32 %v387, %v1210
    %v1352 = vadd.f32 %v388, %v1213
    %v1353 = vadd.f32 %v389, %v1216
    %v1354 = vadd.f32 %v390, %v1219
    %v1355 = vadd.f32 %v391, %v1222
    %v1356 = vadd.f32 %v392, %v1225
    %v1357 = vadd.f32 %v393, %v1228
    %v1358 = vadd.f32 %v394, %v1231
    %v1359 = vadd.f32 %v395, %v1234
    %v1360 = vadd.f32 %v396, %v1237
    %v1361 = vadd.f32 %v397, %v1240
    %v1362 = vadd.f32 %v398, %v1243
    %v1363 = vadd.f32 %v399, %v1246
    %v1364 = vadd.f32 %v400, %v1249
    %v1365 = vadd.f32 %v401, %v1252
    %v1366 = vadd.f32 %v402, %v1255
    %v1367 = vadd.f32 %v403, %v1258
    %v1368 = vadd.f32 %v404, %v1261
    %v1369 = vadd.f32 %v405, %v1264
    %v1370 = vadd.f32 %v406, %v1267
    %v1371 = vadd.f32 %v407, %v1270
    %v1372 = vadd.f32 %v408, %v1273
    %v1373 = vadd.f32 %v409, %v1276
    %v1374 = vadd.f32 %v410, %v1279
    %v1375 = vadd.f32 %v411, %v1282
    %v1376 = vadd.f32 %v412, %v1285
    %v1377 = vadd.f32 %v413, %v1288
    %v1378 = vadd.f32 %v414, %v1291
    %v1379 = vadd.f32 %v415, %v1294
    %v1380 = vadd.f32 %v416, %v1297
    %v1381 = vadd.f32 %v417, %v1300
    %v1382 = vadd.f32 %v418, %v1303
    %v1383 = vadd.f32 %v419, %v1306
    %v1384 = vadd.f32 %v420, %v1309
    %v1385 = vadd.f32 %v421, %v1312
    %v1386 = vadd.f32 %v422, %v1315
    %v1387 = vadd.f32 %v423, %v1318
    %v1388 = vadd.f32 %v424, %v1321
    %v1389 = vadd.f32 %v425, %v1324
    %vm1390 = vcmask 261120
    %1391 = vst.msk [vmem:[%s5] sm:$0xff] %vm1390, %v1326
    %1392 = vst.msk [vmem:[%s5 + $0x8] sm:$0xff] %vm1390, %v1327
    %1393 = vst.msk [vmem:[%s5 + $0x10] sm:$0xff] %vm1390, %v1328
    %1394 = vst.msk [vmem:[%s5 + $0x18] sm:$0xff] %vm1390, %v1329
    %1395 = vst.msk [vmem:[%s5 + $0x20] sm:$0xff] %vm1390, %v1330
    %1396 = vst.msk [vmem:[%s5 + $0x28] sm:$0xff] %vm1390, %v1331
    %1397 = vst.msk [vmem:[%s5 + $0x30] sm:$0xff] %vm1390, %v1332
    %1398 = vst.msk [vmem:[%s5 + $0x38] sm:$0xff] %vm1390, %v1333
    %1399 = vst.msk [vmem:[%s5 + $0x40] sm:$0xff] %vm1390, %v1334
    %1400 = vst.msk [vmem:[%s5 + $0x48] sm:$0xff] %vm1390, %v1335
    %1401 = vst.msk [vmem:[%s5 + $0x50] sm:$0xff] %vm1390, %v1336
    %1402 = vst.msk [vmem:[%s5 + $0x58] sm:$0xff] %vm1390, %v1337
    %1403 = vst.msk [vmem:[%s5 + $0x60] sm:$0xff] %vm1390, %v1338
    %1404 = vst.msk [vmem:[%s5 + $0x68] sm:$0xff] %vm1390, %v1339
    %1405 = vst.msk [vmem:[%s5 + $0x70] sm:$0xff] %vm1390, %v1340
    %1406 = vst.msk [vmem:[%s5 + $0x78] sm:$0xff] %vm1390, %v1341
    %1407 = vst.msk [vmem:[%s5 + $0x80] sm:$0xff] %vm1390, %v1342
    %1408 = vst.msk [vmem:[%s5 + $0x88] sm:$0xff] %vm1390, %v1343
    %1409 = vst.msk [vmem:[%s5 + $0x90] sm:$0xff] %vm1390, %v1344
    %1410 = vst.msk [vmem:[%s5 + $0x98] sm:$0xff] %vm1390, %v1345
    %1411 = vst.msk [vmem:[%s5 + $0xa0] sm:$0xff] %vm1390, %v1346
    %1412 = vst.msk [vmem:[%s5 + $0xa8] sm:$0xff] %vm1390, %v1347
    %1413 = vst.msk [vmem:[%s5 + $0xb0] sm:$0xff] %vm1390, %v1348
    %1414 = vst.msk [vmem:[%s5 + $0xb8] sm:$0xff] %vm1390, %v1349
    %1415 = vst.msk [vmem:[%s5 + $0xc0] sm:$0xff] %vm1390, %v1350
    %1416 = vst.msk [vmem:[%s5 + $0xc8] sm:$0xff] %vm1390, %v1351
    %1417 = vst.msk [vmem:[%s5 + $0xd0] sm:$0xff] %vm1390, %v1352
    %1418 = vst.msk [vmem:[%s5 + $0xd8] sm:$0xff] %vm1390, %v1353
    %1419 = vst.msk [vmem:[%s5 + $0xe0] sm:$0xff] %vm1390, %v1354
    %1420 = vst.msk [vmem:[%s5 + $0xe8] sm:$0xff] %vm1390, %v1355
    %1421 = vst.msk [vmem:[%s5 + $0xf0] sm:$0xff] %vm1390, %v1356
    %1422 = vst.msk [vmem:[%s5 + $0xf8] sm:$0xff] %vm1390, %v1357
    %1423 = vst.msk [vmem:[%s5 + $0x100] sm:$0xff] %vm1390, %v1358
    %1424 = vst.msk [vmem:[%s5 + $0x108] sm:$0xff] %vm1390, %v1359
    %1425 = vst.msk [vmem:[%s5 + $0x110] sm:$0xff] %vm1390, %v1360
    %1426 = vst.msk [vmem:[%s5 + $0x118] sm:$0xff] %vm1390, %v1361
    %1427 = vst.msk [vmem:[%s5 + $0x120] sm:$0xff] %vm1390, %v1362
    %1428 = vst.msk [vmem:[%s5 + $0x128] sm:$0xff] %vm1390, %v1363
    %1429 = vst.msk [vmem:[%s5 + $0x130] sm:$0xff] %vm1390, %v1364
    %1430 = vst.msk [vmem:[%s5 + $0x138] sm:$0xff] %vm1390, %v1365
    %1431 = vst.msk [vmem:[%s5 + $0x140] sm:$0xff] %vm1390, %v1366
    %1432 = vst.msk [vmem:[%s5 + $0x148] sm:$0xff] %vm1390, %v1367
    %1433 = vst.msk [vmem:[%s5 + $0x150] sm:$0xff] %vm1390, %v1368
    %1434 = vst.msk [vmem:[%s5 + $0x158] sm:$0xff] %vm1390, %v1369
    %1435 = vst.msk [vmem:[%s5 + $0x160] sm:$0xff] %vm1390, %v1370
    %1436 = vst.msk [vmem:[%s5 + $0x168] sm:$0xff] %vm1390, %v1371
    %1437 = vst.msk [vmem:[%s5 + $0x170] sm:$0xff] %vm1390, %v1372
    %1438 = vst.msk [vmem:[%s5 + $0x178] sm:$0xff] %vm1390, %v1373
    %1439 = vst.msk [vmem:[%s5 + $0x180] sm:$0xff] %vm1390, %v1374
    %1440 = vst.msk [vmem:[%s5 + $0x188] sm:$0xff] %vm1390, %v1375
    %1441 = vst.msk [vmem:[%s5 + $0x190] sm:$0xff] %vm1390, %v1376
    %1442 = vst.msk [vmem:[%s5 + $0x198] sm:$0xff] %vm1390, %v1377
    %1443 = vst.msk [vmem:[%s5 + $0x1a0] sm:$0xff] %vm1390, %v1378
    %1444 = vst.msk [vmem:[%s5 + $0x1a8] sm:$0xff] %vm1390, %v1379
    %1445 = vst.msk [vmem:[%s5 + $0x1b0] sm:$0xff] %vm1390, %v1380
    %1446 = vst.msk [vmem:[%s5 + $0x1b8] sm:$0xff] %vm1390, %v1381
    %1447 = vst.msk [vmem:[%s5 + $0x1c0] sm:$0xff] %vm1390, %v1382
    %1448 = vst.msk [vmem:[%s5 + $0x1c8] sm:$0xff] %vm1390, %v1383
    %1449 = vst.msk [vmem:[%s5 + $0x1d0] sm:$0xff] %vm1390, %v1384
    %1450 = vst.msk [vmem:[%s5 + $0x1d8] sm:$0xff] %vm1390, %v1385
    %1451 = vst.msk [vmem:[%s5 + $0x1e0] sm:$0xff] %vm1390, %v1386
    %1452 = vst.msk [vmem:[%s5 + $0x1e8] sm:$0xff] %vm1390, %v1387
    %1453 = vst.msk [vmem:[%s5 + $0x1f0] sm:$0xff] %vm1390, %v1388
    %1454 = vst.msk [vmem:[%s5 + $0x1f8] sm:$0xff] %vm1390, %v1389
    // Predicated region
    $region30: #{sage_forward.2} parent=1 // pred_check
      %p1455 = pneg %p37
    $region31: #{sage_forward.2} parent=1 // pred_check_branch
      %1457 = sbr.rel (%p1455) target = $region33
    $region32: #{sage_forward.2} parent=1 // pred_region
      %v1458 = vld [vmem:[%s2] sm:$0xff]
      %v1459 = vld [vmem:[%s2 + $0x8] sm:$0xff]
      %v1460 = vld [vmem:[%s2 + $0x10] sm:$0xff]
      %v1461 = vld [vmem:[%s2 + $0x18] sm:$0xff]
      %v1462 = vld [vmem:[%s2 + $0x20] sm:$0xff]
      %v1463 = vld [vmem:[%s2 + $0x28] sm:$0xff]
      %v1464 = vld [vmem:[%s2 + $0x30] sm:$0xff]
      %v1465 = vld [vmem:[%s2 + $0x38] sm:$0xff]
      %v1466 = vld [vmem:[%s2 + $0x40] sm:$0xff]
      %v1467 = vld [vmem:[%s2 + $0x48] sm:$0xff]
      %v1468 = vld [vmem:[%s2 + $0x50] sm:$0xff]
      %v1469 = vld [vmem:[%s2 + $0x58] sm:$0xff]
      %v1470 = vld [vmem:[%s2 + $0x60] sm:$0xff]
      %v1471 = vld [vmem:[%s2 + $0x68] sm:$0xff]
      %v1472 = vld [vmem:[%s2 + $0x70] sm:$0xff]
      %v1473 = vld [vmem:[%s2 + $0x78] sm:$0xff]
      %v1474 = vld [vmem:[%s2 + $0x80] sm:$0xff]
      %v1475 = vld [vmem:[%s2 + $0x88] sm:$0xff]
      %v1476 = vld [vmem:[%s2 + $0x90] sm:$0xff]
      %v1477 = vld [vmem:[%s2 + $0x98] sm:$0xff]
      %v1478 = vld [vmem:[%s2 + $0xa0] sm:$0xff]
      %v1479 = vld [vmem:[%s2 + $0xa8] sm:$0xff]
      %v1480 = vld [vmem:[%s2 + $0xb0] sm:$0xff]
      %v1481 = vld [vmem:[%s2 + $0xb8] sm:$0xff]
      %v1482 = vld [vmem:[%s2 + $0xc0] sm:$0xff]
      %v1483 = vld [vmem:[%s2 + $0xc8] sm:$0xff]
      %v1484 = vld [vmem:[%s2 + $0xd0] sm:$0xff]
      %v1485 = vld [vmem:[%s2 + $0xd8] sm:$0xff]
      %v1486 = vld [vmem:[%s2 + $0xe0] sm:$0xff]
      %v1487 = vld [vmem:[%s2 + $0xe8] sm:$0xff]
      %v1488 = vld [vmem:[%s2 + $0xf0] sm:$0xff]
      %v1489 = vld [vmem:[%s2 + $0xf8] sm:$0xff]
      %v1490 = vld [vmem:[%s2 + $0x100] sm:$0xff]
      %v1491 = vld [vmem:[%s2 + $0x108] sm:$0xff]
      %v1492 = vld [vmem:[%s2 + $0x110] sm:$0xff]
      %v1493 = vld [vmem:[%s2 + $0x118] sm:$0xff]
      %v1494 = vld [vmem:[%s2 + $0x120] sm:$0xff]
      %v1495 = vld [vmem:[%s2 + $0x128] sm:$0xff]
      %v1496 = vld [vmem:[%s2 + $0x130] sm:$0xff]
      %v1497 = vld [vmem:[%s2 + $0x138] sm:$0xff]
      %v1498 = vld [vmem:[%s2 + $0x140] sm:$0xff]
      %v1499 = vld [vmem:[%s2 + $0x148] sm:$0xff]
      %v1500 = vld [vmem:[%s2 + $0x150] sm:$0xff]
      %v1501 = vld [vmem:[%s2 + $0x158] sm:$0xff]
      %v1502 = vld [vmem:[%s2 + $0x160] sm:$0xff]
      %v1503 = vld [vmem:[%s2 + $0x168] sm:$0xff]
      %v1504 = vld [vmem:[%s2 + $0x170] sm:$0xff]
      %v1505 = vld [vmem:[%s2 + $0x178] sm:$0xff]
      %v1506 = vld [vmem:[%s2 + $0x180] sm:$0xff]
      %v1507 = vld [vmem:[%s2 + $0x188] sm:$0xff]
      %v1508 = vld [vmem:[%s2 + $0x190] sm:$0xff]
      %v1509 = vld [vmem:[%s2 + $0x198] sm:$0xff]
      %v1510 = vld [vmem:[%s2 + $0x1a0] sm:$0xff]
      %v1511 = vld [vmem:[%s2 + $0x1a8] sm:$0xff]
      %v1512 = vld [vmem:[%s2 + $0x1b0] sm:$0xff]
      %v1513 = vld [vmem:[%s2 + $0x1b8] sm:$0xff]
      %v1514 = vld [vmem:[%s2 + $0x1c0] sm:$0xff]
      %v1515 = vld [vmem:[%s2 + $0x1c8] sm:$0xff]
      %v1516 = vld [vmem:[%s2 + $0x1d0] sm:$0xff]
      %v1517 = vld [vmem:[%s2 + $0x1d8] sm:$0xff]
      %v1518 = vld [vmem:[%s2 + $0x1e0] sm:$0xff]
      %v1519 = vld [vmem:[%s2 + $0x1e8] sm:$0xff]
      %v1520 = vld [vmem:[%s2 + $0x1f0] sm:$0xff]
      %v1521 = vld [vmem:[%s2 + $0x1f8] sm:$0xff]
      %v1522 = vld [vmem:[%s3] sm:$0xff]
      %v1523 = vld [vmem:[%s3 + $0x8] sm:$0xff]
      %v1524 = vld [vmem:[%s3 + $0x10] sm:$0xff]
      %v1525 = vld [vmem:[%s3 + $0x18] sm:$0xff]
      %v1526 = vld [vmem:[%s3 + $0x20] sm:$0xff]
      %v1527 = vld [vmem:[%s3 + $0x28] sm:$0xff]
      %v1528 = vld [vmem:[%s3 + $0x30] sm:$0xff]
      %v1529 = vld [vmem:[%s3 + $0x38] sm:$0xff]
      %v1530 = vld [vmem:[%s3 + $0x40] sm:$0xff]
      %v1531 = vld [vmem:[%s3 + $0x48] sm:$0xff]
      %v1532 = vld [vmem:[%s3 + $0x50] sm:$0xff]
      %v1533 = vld [vmem:[%s3 + $0x58] sm:$0xff]
      %v1534 = vld [vmem:[%s3 + $0x60] sm:$0xff]
      %v1535 = vld [vmem:[%s3 + $0x68] sm:$0xff]
      %v1536 = vld [vmem:[%s3 + $0x70] sm:$0xff]
      %v1537 = vld [vmem:[%s3 + $0x78] sm:$0xff]
      %v1538 = vld [vmem:[%s3 + $0x80] sm:$0xff]
      %v1539 = vld [vmem:[%s3 + $0x88] sm:$0xff]
      %v1540 = vld [vmem:[%s3 + $0x90] sm:$0xff]
      %v1541 = vld [vmem:[%s3 + $0x98] sm:$0xff]
      %v1542 = vld [vmem:[%s3 + $0xa0] sm:$0xff]
      %v1543 = vld [vmem:[%s3 + $0xa8] sm:$0xff]
      %v1544 = vld [vmem:[%s3 + $0xb0] sm:$0xff]
      %v1545 = vld [vmem:[%s3 + $0xb8] sm:$0xff]
      %v1546 = vld [vmem:[%s3 + $0xc0] sm:$0xff]
      %v1547 = vld [vmem:[%s3 + $0xc8] sm:$0xff]
      %v1548 = vld [vmem:[%s3 + $0xd0] sm:$0xff]
      %v1549 = vld [vmem:[%s3 + $0xd8] sm:$0xff]
      %v1550 = vld [vmem:[%s3 + $0xe0] sm:$0xff]
      %v1551 = vld [vmem:[%s3 + $0xe8] sm:$0xff]
      %v1552 = vld [vmem:[%s3 + $0xf0] sm:$0xff]
      %v1553 = vld [vmem:[%s3 + $0xf8] sm:$0xff]
      %v1554 = vld [vmem:[%s3 + $0x100] sm:$0xff]
      %v1555 = vld [vmem:[%s3 + $0x108] sm:$0xff]
      %v1556 = vld [vmem:[%s3 + $0x110] sm:$0xff]
      %v1557 = vld [vmem:[%s3 + $0x118] sm:$0xff]
      %v1558 = vld [vmem:[%s3 + $0x120] sm:$0xff]
      %v1559 = vld [vmem:[%s3 + $0x128] sm:$0xff]
      %v1560 = vld [vmem:[%s3 + $0x130] sm:$0xff]
      %v1561 = vld [vmem:[%s3 + $0x138] sm:$0xff]
      %v1562 = vld [vmem:[%s3 + $0x140] sm:$0xff]
      %v1563 = vld [vmem:[%s3 + $0x148] sm:$0xff]
      %v1564 = vld [vmem:[%s3 + $0x150] sm:$0xff]
      %v1565 = vld [vmem:[%s3 + $0x158] sm:$0xff]
      %v1566 = vld [vmem:[%s3 + $0x160] sm:$0xff]
      %v1567 = vld [vmem:[%s3 + $0x168] sm:$0xff]
      %v1568 = vld [vmem:[%s3 + $0x170] sm:$0xff]
      %v1569 = vld [vmem:[%s3 + $0x178] sm:$0xff]
      %v1570 = vld [vmem:[%s3 + $0x180] sm:$0xff]
      %v1571 = vld [vmem:[%s3 + $0x188] sm:$0xff]
      %v1572 = vld [vmem:[%s3 + $0x190] sm:$0xff]
      %v1573 = vld [vmem:[%s3 + $0x198] sm:$0xff]
      %v1574 = vld [vmem:[%s3 + $0x1a0] sm:$0xff]
      %v1575 = vld [vmem:[%s3 + $0x1a8] sm:$0xff]
      %v1576 = vld [vmem:[%s3 + $0x1b0] sm:$0xff]
      %v1577 = vld [vmem:[%s3 + $0x1b8] sm:$0xff]
      %v1578 = vld [vmem:[%s3 + $0x1c0] sm:$0xff]
      %v1579 = vld [vmem:[%s3 + $0x1c8] sm:$0xff]
      %v1580 = vld [vmem:[%s3 + $0x1d0] sm:$0xff]
      %v1581 = vld [vmem:[%s3 + $0x1d8] sm:$0xff]
      %v1582 = vld [vmem:[%s3 + $0x1e0] sm:$0xff]
      %v1583 = vld [vmem:[%s3 + $0x1e8] sm:$0xff]
      %v1584 = vld [vmem:[%s3 + $0x1f0] sm:$0xff]
      %v1585 = vld [vmem:[%s3 + $0x1f8] sm:$0xff]
      %v1586 = vld [vmem:[%s5] sm:$0xff]
      %v1587 = vld [vmem:[%s5 + $0x8] sm:$0xff]
      %v1588 = vld [vmem:[%s5 + $0x10] sm:$0xff]
      %v1589 = vld [vmem:[%s5 + $0x18] sm:$0xff]
      %v1590 = vld [vmem:[%s5 + $0x20] sm:$0xff]
      %v1591 = vld [vmem:[%s5 + $0x28] sm:$0xff]
      %v1592 = vld [vmem:[%s5 + $0x30] sm:$0xff]
      %v1593 = vld [vmem:[%s5 + $0x38] sm:$0xff]
      %v1594 = vld [vmem:[%s5 + $0x40] sm:$0xff]
      %v1595 = vld [vmem:[%s5 + $0x48] sm:$0xff]
      %v1596 = vld [vmem:[%s5 + $0x50] sm:$0xff]
      %v1597 = vld [vmem:[%s5 + $0x58] sm:$0xff]
      %v1598 = vld [vmem:[%s5 + $0x60] sm:$0xff]
      %v1599 = vld [vmem:[%s5 + $0x68] sm:$0xff]
      %v1600 = vld [vmem:[%s5 + $0x70] sm:$0xff]
      %v1601 = vld [vmem:[%s5 + $0x78] sm:$0xff]
      %v1602 = vld [vmem:[%s5 + $0x80] sm:$0xff]
      %v1603 = vld [vmem:[%s5 + $0x88] sm:$0xff]
      %v1604 = vld [vmem:[%s5 + $0x90] sm:$0xff]
      %v1605 = vld [vmem:[%s5 + $0x98] sm:$0xff]
      %v1606 = vld [vmem:[%s5 + $0xa0] sm:$0xff]
      %v1607 = vld [vmem:[%s5 + $0xa8] sm:$0xff]
      %v1608 = vld [vmem:[%s5 + $0xb0] sm:$0xff]
      %v1609 = vld [vmem:[%s5 + $0xb8] sm:$0xff]
      %v1610 = vld [vmem:[%s5 + $0xc0] sm:$0xff]
      %v1611 = vld [vmem:[%s5 + $0xc8] sm:$0xff]
      %v1612 = vld [vmem:[%s5 + $0xd0] sm:$0xff]
      %v1613 = vld [vmem:[%s5 + $0xd8] sm:$0xff]
      %v1614 = vld [vmem:[%s5 + $0xe0] sm:$0xff]
      %v1615 = vld [vmem:[%s5 + $0xe8] sm:$0xff]
      %v1616 = vld [vmem:[%s5 + $0xf0] sm:$0xff]
      %v1617 = vld [vmem:[%s5 + $0xf8] sm:$0xff]
      %v1618 = vld [vmem:[%s5 + $0x100] sm:$0xff]
      %v1619 = vld [vmem:[%s5 + $0x108] sm:$0xff]
      %v1620 = vld [vmem:[%s5 + $0x110] sm:$0xff]
      %v1621 = vld [vmem:[%s5 + $0x118] sm:$0xff]
      %v1622 = vld [vmem:[%s5 + $0x120] sm:$0xff]
      %v1623 = vld [vmem:[%s5 + $0x128] sm:$0xff]
      %v1624 = vld [vmem:[%s5 + $0x130] sm:$0xff]
      %v1625 = vld [vmem:[%s5 + $0x138] sm:$0xff]
      %v1626 = vld [vmem:[%s5 + $0x140] sm:$0xff]
      %v1627 = vld [vmem:[%s5 + $0x148] sm:$0xff]
      %v1628 = vld [vmem:[%s5 + $0x150] sm:$0xff]
      %v1629 = vld [vmem:[%s5 + $0x158] sm:$0xff]
      %v1630 = vld [vmem:[%s5 + $0x160] sm:$0xff]
      %v1631 = vld [vmem:[%s5 + $0x168] sm:$0xff]
      %v1632 = vld [vmem:[%s5 + $0x170] sm:$0xff]
      %v1633 = vld [vmem:[%s5 + $0x178] sm:$0xff]
      %v1634 = vld [vmem:[%s5 + $0x180] sm:$0xff]
      %v1635 = vld [vmem:[%s5 + $0x188] sm:$0xff]
      %v1636 = vld [vmem:[%s5 + $0x190] sm:$0xff]
      %v1637 = vld [vmem:[%s5 + $0x198] sm:$0xff]
      %v1638 = vld [vmem:[%s5 + $0x1a0] sm:$0xff]
      %v1639 = vld [vmem:[%s5 + $0x1a8] sm:$0xff]
      %v1640 = vld [vmem:[%s5 + $0x1b0] sm:$0xff]
      %v1641 = vld [vmem:[%s5 + $0x1b8] sm:$0xff]
      %v1642 = vld [vmem:[%s5 + $0x1c0] sm:$0xff]
      %v1643 = vld [vmem:[%s5 + $0x1c8] sm:$0xff]
      %v1644 = vld [vmem:[%s5 + $0x1d0] sm:$0xff]
      %v1645 = vld [vmem:[%s5 + $0x1d8] sm:$0xff]
      %v1646 = vld [vmem:[%s5 + $0x1e0] sm:$0xff]
      %v1647 = vld [vmem:[%s5 + $0x1e8] sm:$0xff]
      %v1648 = vld [vmem:[%s5 + $0x1f0] sm:$0xff]
      %v1649 = vld [vmem:[%s5 + $0x1f8] sm:$0xff]
      %1651 = vset.pattern.permute.xlu0 0
      %1652 = vperm.xlu0 %1651, %v1522
      %v1653 = vpop.permute.xlu0 %1652
      %1656 = vset.pattern.permute.xlu0 0
      %1657 = vperm.xlu0 %1656, %v1523
      %v1658 = vpop.permute.xlu0 %1657
      %1661 = vset.pattern.permute.xlu0 0
      %1662 = vperm.xlu0 %1661, %v1524
      %v1663 = vpop.permute.xlu0 %1662
      %1666 = vset.pattern.permute.xlu0 0
      %1667 = vperm.xlu0 %1666, %v1525
      %v1668 = vpop.permute.xlu0 %1667
      %1671 = vset.pattern.permute.xlu0 0
      %1672 = vperm.xlu0 %1671, %v1526
      %v1673 = vpop.permute.xlu0 %1672
      %1676 = vset.pattern.permute.xlu0 0
      %1677 = vperm.xlu0 %1676, %v1527
      %v1678 = vpop.permute.xlu0 %1677
      %1681 = vset.pattern.permute.xlu0 0
      %1682 = vperm.xlu0 %1681, %v1528
      %v1683 = vpop.permute.xlu0 %1682
      %1686 = vset.pattern.permute.xlu0 0
      %1687 = vperm.xlu0 %1686, %v1529
      %v1688 = vpop.permute.xlu0 %1687
      %1691 = vset.pattern.permute.xlu0 0
      %1692 = vperm.xlu0 %1691, %v1530
      %v1693 = vpop.permute.xlu0 %1692
      %1696 = vset.pattern.permute.xlu0 0
      %1697 = vperm.xlu0 %1696, %v1531
      %v1698 = vpop.permute.xlu0 %1697
      %1701 = vset.pattern.permute.xlu0 0
      %1702 = vperm.xlu0 %1701, %v1532
      %v1703 = vpop.permute.xlu0 %1702
      %1706 = vset.pattern.permute.xlu0 0
      %1707 = vperm.xlu0 %1706, %v1533
      %v1708 = vpop.permute.xlu0 %1707
      %1711 = vset.pattern.permute.xlu0 0
      %1712 = vperm.xlu0 %1711, %v1534
      %v1713 = vpop.permute.xlu0 %1712
      %1716 = vset.pattern.permute.xlu0 0
      %1717 = vperm.xlu0 %1716, %v1535
      %v1718 = vpop.permute.xlu0 %1717
      %1721 = vset.pattern.permute.xlu0 0
      %1722 = vperm.xlu0 %1721, %v1536
      %v1723 = vpop.permute.xlu0 %1722
      %1726 = vset.pattern.permute.xlu0 0
      %1727 = vperm.xlu0 %1726, %v1537
      %v1728 = vpop.permute.xlu0 %1727
      %1731 = vset.pattern.permute.xlu0 0
      %1732 = vperm.xlu0 %1731, %v1538
      %v1733 = vpop.permute.xlu0 %1732
      %1736 = vset.pattern.permute.xlu0 0
      %1737 = vperm.xlu0 %1736, %v1539
      %v1738 = vpop.permute.xlu0 %1737
      %1741 = vset.pattern.permute.xlu0 0
      %1742 = vperm.xlu0 %1741, %v1540
      %v1743 = vpop.permute.xlu0 %1742
      %1746 = vset.pattern.permute.xlu0 0
      %1747 = vperm.xlu0 %1746, %v1541
      %v1748 = vpop.permute.xlu0 %1747
      %1751 = vset.pattern.permute.xlu0 0
      %1752 = vperm.xlu0 %1751, %v1542
      %v1753 = vpop.permute.xlu0 %1752
      %1756 = vset.pattern.permute.xlu0 0
      %1757 = vperm.xlu0 %1756, %v1543
      %v1758 = vpop.permute.xlu0 %1757
      %1761 = vset.pattern.permute.xlu0 0
      %1762 = vperm.xlu0 %1761, %v1544
      %v1763 = vpop.permute.xlu0 %1762
      %1766 = vset.pattern.permute.xlu0 0
      %1767 = vperm.xlu0 %1766, %v1545
      %v1768 = vpop.permute.xlu0 %1767
      %1771 = vset.pattern.permute.xlu0 0
      %1772 = vperm.xlu0 %1771, %v1546
      %v1773 = vpop.permute.xlu0 %1772
      %1776 = vset.pattern.permute.xlu0 0
      %1777 = vperm.xlu0 %1776, %v1547
      %v1778 = vpop.permute.xlu0 %1777
      %1781 = vset.pattern.permute.xlu0 0
      %1782 = vperm.xlu0 %1781, %v1548
      %v1783 = vpop.permute.xlu0 %1782
      %1786 = vset.pattern.permute.xlu0 0
      %1787 = vperm.xlu0 %1786, %v1549
      %v1788 = vpop.permute.xlu0 %1787
      %1791 = vset.pattern.permute.xlu0 0
      %1792 = vperm.xlu0 %1791, %v1550
      %v1793 = vpop.permute.xlu0 %1792
      %1796 = vset.pattern.permute.xlu0 0
      %1797 = vperm.xlu0 %1796, %v1551
      %v1798 = vpop.permute.xlu0 %1797
      %1801 = vset.pattern.permute.xlu0 0
      %1802 = vperm.xlu0 %1801, %v1552
      %v1803 = vpop.permute.xlu0 %1802
      %1806 = vset.pattern.permute.xlu0 0
      %1807 = vperm.xlu0 %1806, %v1553
      %v1808 = vpop.permute.xlu0 %1807
      %1811 = vset.pattern.permute.xlu0 0
      %1812 = vperm.xlu0 %1811, %v1554
      %v1813 = vpop.permute.xlu0 %1812
      %1816 = vset.pattern.permute.xlu0 0
      %1817 = vperm.xlu0 %1816, %v1555
      %v1818 = vpop.permute.xlu0 %1817
      %1821 = vset.pattern.permute.xlu0 0
      %1822 = vperm.xlu0 %1821, %v1556
      %v1823 = vpop.permute.xlu0 %1822
      %1826 = vset.pattern.permute.xlu0 0
      %1827 = vperm.xlu0 %1826, %v1557
      %v1828 = vpop.permute.xlu0 %1827
      %1831 = vset.pattern.permute.xlu0 0
      %1832 = vperm.xlu0 %1831, %v1558
      %v1833 = vpop.permute.xlu0 %1832
      %1836 = vset.pattern.permute.xlu0 0
      %1837 = vperm.xlu0 %1836, %v1559
      %v1838 = vpop.permute.xlu0 %1837
      %1841 = vset.pattern.permute.xlu0 0
      %1842 = vperm.xlu0 %1841, %v1560
      %v1843 = vpop.permute.xlu0 %1842
      %1846 = vset.pattern.permute.xlu0 0
      %1847 = vperm.xlu0 %1846, %v1561
      %v1848 = vpop.permute.xlu0 %1847
      %1851 = vset.pattern.permute.xlu0 0
      %1852 = vperm.xlu0 %1851, %v1562
      %v1853 = vpop.permute.xlu0 %1852
      %1856 = vset.pattern.permute.xlu0 0
      %1857 = vperm.xlu0 %1856, %v1563
      %v1858 = vpop.permute.xlu0 %1857
      %1861 = vset.pattern.permute.xlu0 0
      %1862 = vperm.xlu0 %1861, %v1564
      %v1863 = vpop.permute.xlu0 %1862
      %1866 = vset.pattern.permute.xlu0 0
      %1867 = vperm.xlu0 %1866, %v1565
      %v1868 = vpop.permute.xlu0 %1867
      %1871 = vset.pattern.permute.xlu0 0
      %1872 = vperm.xlu0 %1871, %v1566
      %v1873 = vpop.permute.xlu0 %1872
      %1876 = vset.pattern.permute.xlu0 0
      %1877 = vperm.xlu0 %1876, %v1567
      %v1878 = vpop.permute.xlu0 %1877
      %1881 = vset.pattern.permute.xlu0 0
      %1882 = vperm.xlu0 %1881, %v1568
      %v1883 = vpop.permute.xlu0 %1882
      %1886 = vset.pattern.permute.xlu0 0
      %1887 = vperm.xlu0 %1886, %v1569
      %v1888 = vpop.permute.xlu0 %1887
      %1891 = vset.pattern.permute.xlu0 0
      %1892 = vperm.xlu0 %1891, %v1570
      %v1893 = vpop.permute.xlu0 %1892
      %1896 = vset.pattern.permute.xlu0 0
      %1897 = vperm.xlu0 %1896, %v1571
      %v1898 = vpop.permute.xlu0 %1897
      %1901 = vset.pattern.permute.xlu0 0
      %1902 = vperm.xlu0 %1901, %v1572
      %v1903 = vpop.permute.xlu0 %1902
      %1906 = vset.pattern.permute.xlu0 0
      %1907 = vperm.xlu0 %1906, %v1573
      %v1908 = vpop.permute.xlu0 %1907
      %1911 = vset.pattern.permute.xlu0 0
      %1912 = vperm.xlu0 %1911, %v1574
      %v1913 = vpop.permute.xlu0 %1912
      %1916 = vset.pattern.permute.xlu0 0
      %1917 = vperm.xlu0 %1916, %v1575
      %v1918 = vpop.permute.xlu0 %1917
      %1921 = vset.pattern.permute.xlu0 0
      %1922 = vperm.xlu0 %1921, %v1576
      %v1923 = vpop.permute.xlu0 %1922
      %1926 = vset.pattern.permute.xlu0 0
      %1927 = vperm.xlu0 %1926, %v1577
      %v1928 = vpop.permute.xlu0 %1927
      %1931 = vset.pattern.permute.xlu0 0
      %1932 = vperm.xlu0 %1931, %v1578
      %v1933 = vpop.permute.xlu0 %1932
      %1936 = vset.pattern.permute.xlu0 0
      %1937 = vperm.xlu0 %1936, %v1579
      %v1938 = vpop.permute.xlu0 %1937
      %1941 = vset.pattern.permute.xlu0 0
      %1942 = vperm.xlu0 %1941, %v1580
      %v1943 = vpop.permute.xlu0 %1942
      %1946 = vset.pattern.permute.xlu0 0
      %1947 = vperm.xlu0 %1946, %v1581
      %v1948 = vpop.permute.xlu0 %1947
      %1951 = vset.pattern.permute.xlu0 0
      %1952 = vperm.xlu0 %1951, %v1582
      %v1953 = vpop.permute.xlu0 %1952
      %1956 = vset.pattern.permute.xlu0 0
      %1957 = vperm.xlu0 %1956, %v1583
      %v1958 = vpop.permute.xlu0 %1957
      %1961 = vset.pattern.permute.xlu0 0
      %1962 = vperm.xlu0 %1961, %v1584
      %v1963 = vpop.permute.xlu0 %1962
      %1966 = vset.pattern.permute.xlu0 0
      %1967 = vperm.xlu0 %1966, %v1585
      %v1968 = vpop.permute.xlu0 %1967
      %v1970 = vmul.f32 %v1653, %v1586
      %v1971 = vmul.f32 %v1658, %v1587
      %v1972 = vmul.f32 %v1663, %v1588
      %v1973 = vmul.f32 %v1668, %v1589
      %v1974 = vmul.f32 %v1673, %v1590
      %v1975 = vmul.f32 %v1678, %v1591
      %v1976 = vmul.f32 %v1683, %v1592
      %v1977 = vmul.f32 %v1688, %v1593
      %v1978 = vmul.f32 %v1693, %v1594
      %v1979 = vmul.f32 %v1698, %v1595
      %v1980 = vmul.f32 %v1703, %v1596
      %v1981 = vmul.f32 %v1708, %v1597
      %v1982 = vmul.f32 %v1713, %v1598
      %v1983 = vmul.f32 %v1718, %v1599
      %v1984 = vmul.f32 %v1723, %v1600
      %v1985 = vmul.f32 %v1728, %v1601
      %v1986 = vmul.f32 %v1733, %v1602
      %v1987 = vmul.f32 %v1738, %v1603
      %v1988 = vmul.f32 %v1743, %v1604
      %v1989 = vmul.f32 %v1748, %v1605
      %v1990 = vmul.f32 %v1753, %v1606
      %v1991 = vmul.f32 %v1758, %v1607
      %v1992 = vmul.f32 %v1763, %v1608
      %v1993 = vmul.f32 %v1768, %v1609
      %v1994 = vmul.f32 %v1773, %v1610
      %v1995 = vmul.f32 %v1778, %v1611
      %v1996 = vmul.f32 %v1783, %v1612
      %v1997 = vmul.f32 %v1788, %v1613
      %v1998 = vmul.f32 %v1793, %v1614
      %v1999 = vmul.f32 %v1798, %v1615
      %v2000 = vmul.f32 %v1803, %v1616
      %v2001 = vmul.f32 %v1808, %v1617
      %v2002 = vmul.f32 %v1813, %v1618
      %v2003 = vmul.f32 %v1818, %v1619
      %v2004 = vmul.f32 %v1823, %v1620
      %v2005 = vmul.f32 %v1828, %v1621
      %v2006 = vmul.f32 %v1833, %v1622
      %v2007 = vmul.f32 %v1838, %v1623
      %v2008 = vmul.f32 %v1843, %v1624
      %v2009 = vmul.f32 %v1848, %v1625
      %v2010 = vmul.f32 %v1853, %v1626
      %v2011 = vmul.f32 %v1858, %v1627
      %v2012 = vmul.f32 %v1863, %v1628
      %v2013 = vmul.f32 %v1868, %v1629
      %v2014 = vmul.f32 %v1873, %v1630
      %v2015 = vmul.f32 %v1878, %v1631
      %v2016 = vmul.f32 %v1883, %v1632
      %v2017 = vmul.f32 %v1888, %v1633
      %v2018 = vmul.f32 %v1893, %v1634
      %v2019 = vmul.f32 %v1898, %v1635
      %v2020 = vmul.f32 %v1903, %v1636
      %v2021 = vmul.f32 %v1908, %v1637
      %v2022 = vmul.f32 %v1913, %v1638
      %v2023 = vmul.f32 %v1918, %v1639
      %v2024 = vmul.f32 %v1923, %v1640
      %v2025 = vmul.f32 %v1928, %v1641
      %v2026 = vmul.f32 %v1933, %v1642
      %v2027 = vmul.f32 %v1938, %v1643
      %v2028 = vmul.f32 %v1943, %v1644
      %v2029 = vmul.f32 %v1948, %v1645
      %v2030 = vmul.f32 %v1953, %v1646
      %v2031 = vmul.f32 %v1958, %v1647
      %v2032 = vmul.f32 %v1963, %v1648
      %v2033 = vmul.f32 %v1968, %v1649
      %v2034 = vadd.f32 %v1458, %v1970
      %v2035 = vadd.f32 %v1459, %v1971
      %v2036 = vadd.f32 %v1460, %v1972
      %v2037 = vadd.f32 %v1461, %v1973
      %v2038 = vadd.f32 %v1462, %v1974
      %v2039 = vadd.f32 %v1463, %v1975
      %v2040 = vadd.f32 %v1464, %v1976
      %v2041 = vadd.f32 %v1465, %v1977
      %v2042 = vadd.f32 %v1466, %v1978
      %v2043 = vadd.f32 %v1467, %v1979
      %v2044 = vadd.f32 %v1468, %v1980
      %v2045 = vadd.f32 %v1469, %v1981
      %v2046 = vadd.f32 %v1470, %v1982
      %v2047 = vadd.f32 %v1471, %v1983
      %v2048 = vadd.f32 %v1472, %v1984
      %v2049 = vadd.f32 %v1473, %v1985
      %v2050 = vadd.f32 %v1474, %v1986
      %v2051 = vadd.f32 %v1475, %v1987
      %v2052 = vadd.f32 %v1476, %v1988
      %v2053 = vadd.f32 %v1477, %v1989
      %v2054 = vadd.f32 %v1478, %v1990
      %v2055 = vadd.f32 %v1479, %v1991
      %v2056 = vadd.f32 %v1480, %v1992
      %v2057 = vadd.f32 %v1481, %v1993
      %v2058 = vadd.f32 %v1482, %v1994
      %v2059 = vadd.f32 %v1483, %v1995
      %v2060 = vadd.f32 %v1484, %v1996
      %v2061 = vadd.f32 %v1485, %v1997
      %v2062 = vadd.f32 %v1486, %v1998
      %v2063 = vadd.f32 %v1487, %v1999
      %v2064 = vadd.f32 %v1488, %v2000
      %v2065 = vadd.f32 %v1489, %v2001
      %v2066 = vadd.f32 %v1490, %v2002
      %v2067 = vadd.f32 %v1491, %v2003
      %v2068 = vadd.f32 %v1492, %v2004
      %v2069 = vadd.f32 %v1493, %v2005
      %v2070 = vadd.f32 %v1494, %v2006
      %v2071 = vadd.f32 %v1495, %v2007
      %v2072 = vadd.f32 %v1496, %v2008
      %v2073 = vadd.f32 %v1497, %v2009
      %v2074 = vadd.f32 %v1498, %v2010
      %v2075 = vadd.f32 %v1499, %v2011
      %v2076 = vadd.f32 %v1500, %v2012
      %v2077 = vadd.f32 %v1501, %v2013
      %v2078 = vadd.f32 %v1502, %v2014
      %v2079 = vadd.f32 %v1503, %v2015
      %v2080 = vadd.f32 %v1504, %v2016
      %v2081 = vadd.f32 %v1505, %v2017
      %v2082 = vadd.f32 %v1506, %v2018
      %v2083 = vadd.f32 %v1507, %v2019
      %v2084 = vadd.f32 %v1508, %v2020
      %v2085 = vadd.f32 %v1509, %v2021
      %v2086 = vadd.f32 %v1510, %v2022
      %v2087 = vadd.f32 %v1511, %v2023
      %v2088 = vadd.f32 %v1512, %v2024
      %v2089 = vadd.f32 %v1513, %v2025
      %v2090 = vadd.f32 %v1514, %v2026
      %v2091 = vadd.f32 %v1515, %v2027
      %v2092 = vadd.f32 %v1516, %v2028
      %v2093 = vadd.f32 %v1517, %v2029
      %v2094 = vadd.f32 %v1518, %v2030
      %v2095 = vadd.f32 %v1519, %v2031
      %v2096 = vadd.f32 %v1520, %v2032
      %v2097 = vadd.f32 %v1521, %v2033
      %s2098 = sld [smem:[#allocation2]]
      %vm2099 = vcmp.gt.f32.partialorder %v2034, 0.0
      %vm2100 = vcmp.gt.f32.partialorder %v2035, 0.0
      %vm2101 = vcmp.gt.f32.partialorder %v2036, 0.0
      %vm2102 = vcmp.gt.f32.partialorder %v2037, 0.0
      %vm2103 = vcmp.gt.f32.partialorder %v2038, 0.0
      %vm2104 = vcmp.gt.f32.partialorder %v2039, 0.0
      %vm2105 = vcmp.gt.f32.partialorder %v2040, 0.0
      %vm2106 = vcmp.gt.f32.partialorder %v2041, 0.0
      %vm2107 = vcmp.gt.f32.partialorder %v2042, 0.0
      %vm2108 = vcmp.gt.f32.partialorder %v2043, 0.0
      %vm2109 = vcmp.gt.f32.partialorder %v2044, 0.0
      %vm2110 = vcmp.gt.f32.partialorder %v2045, 0.0
      %vm2111 = vcmp.gt.f32.partialorder %v2046, 0.0
      %vm2112 = vcmp.gt.f32.partialorder %v2047, 0.0
      %vm2113 = vcmp.gt.f32.partialorder %v2048, 0.0
      %vm2114 = vcmp.gt.f32.partialorder %v2049, 0.0
      %vm2115 = vcmp.gt.f32.partialorder %v2050, 0.0
      %vm2116 = vcmp.gt.f32.partialorder %v2051, 0.0
      %vm2117 = vcmp.gt.f32.partialorder %v2052, 0.0
      %vm2118 = vcmp.gt.f32.partialorder %v2053, 0.0
      %vm2119 = vcmp.gt.f32.partialorder %v2054, 0.0
      %vm2120 = vcmp.gt.f32.partialorder %v2055, 0.0
      %vm2121 = vcmp.gt.f32.partialorder %v2056, 0.0
      %vm2122 = vcmp.gt.f32.partialorder %v2057, 0.0
      %vm2123 = vcmp.gt.f32.partialorder %v2058, 0.0
      %vm2124 = vcmp.gt.f32.partialorder %v2059, 0.0
      %vm2125 = vcmp.gt.f32.partialorder %v2060, 0.0
      %vm2126 = vcmp.gt.f32.partialorder %v2061, 0.0
      %vm2127 = vcmp.gt.f32.partialorder %v2062, 0.0
      %vm2128 = vcmp.gt.f32.partialorder %v2063, 0.0
      %vm2129 = vcmp.gt.f32.partialorder %v2064, 0.0
      %vm2130 = vcmp.gt.f32.partialorder %v2065, 0.0
      %vm2131 = vcmp.gt.f32.partialorder %v2066, 0.0
      %vm2132 = vcmp.gt.f32.partialorder %v2067, 0.0
      %vm2133 = vcmp.gt.f32.partialorder %v2068, 0.0
      %vm2134 = vcmp.gt.f32.partialorder %v2069, 0.0
      %vm2135 = vcmp.gt.f32.partialorder %v2070, 0.0
      %vm2136 = vcmp.gt.f32.partialorder %v2071, 0.0
      %vm2137 = vcmp.gt.f32.partialorder %v2072, 0.0
      %vm2138 = vcmp.gt.f32.partialorder %v2073, 0.0
      %vm2139 = vcmp.gt.f32.partialorder %v2074, 0.0
      %vm2140 = vcmp.gt.f32.partialorder %v2075, 0.0
      %vm2141 = vcmp.gt.f32.partialorder %v2076, 0.0
      %vm2142 = vcmp.gt.f32.partialorder %v2077, 0.0
      %vm2143 = vcmp.gt.f32.partialorder %v2078, 0.0
      %vm2144 = vcmp.gt.f32.partialorder %v2079, 0.0
      %vm2145 = vcmp.gt.f32.partialorder %v2080, 0.0
      %vm2146 = vcmp.gt.f32.partialorder %v2081, 0.0
      %vm2147 = vcmp.gt.f32.partialorder %v2082, 0.0
      %vm2148 = vcmp.gt.f32.partialorder %v2083, 0.0
      %vm2149 = vcmp.gt.f32.partialorder %v2084, 0.0
      %vm2150 = vcmp.gt.f32.partialorder %v2085, 0.0
      %vm2151 = vcmp.gt.f32.partialorder %v2086, 0.0
      %vm2152 = vcmp.gt.f32.partialorder %v2087, 0.0
      %vm2153 = vcmp.gt.f32.partialorder %v2088, 0.0
      %vm2154 = vcmp.gt.f32.partialorder %v2089, 0.0
      %vm2155 = vcmp.gt.f32.partialorder %v2090, 0.0
      %vm2156 = vcmp.gt.f32.partialorder %v2091, 0.0
      %vm2157 = vcmp.gt.f32.partialorder %v2092, 0.0
      %vm2158 = vcmp.gt.f32.partialorder %v2093, 0.0
      %vm2159 = vcmp.gt.f32.partialorder %v2094, 0.0
      %vm2160 = vcmp.gt.f32.partialorder %v2095, 0.0
      %vm2161 = vcmp.gt.f32.partialorder %v2096, 0.0
      %vm2162 = vcmp.gt.f32.partialorder %v2097, 0.0
      %v2163 = vstv %s2098
      %v2164 = vmul.f32 %v2163, %v2034
      %v2165 = vmul.f32 %v2163, %v2035
      %v2166 = vmul.f32 %v2163, %v2036
      %v2167 = vmul.f32 %v2163, %v2037
      %v2168 = vmul.f32 %v2163, %v2038
      %v2169 = vmul.f32 %v2163, %v2039
      %v2170 = vmul.f32 %v2163, %v2040
      %v2171 = vmul.f32 %v2163, %v2041
      %v2172 = vmul.f32 %v2163, %v2042
      %v2173 = vmul.f32 %v2163, %v2043
      %v2174 = vmul.f32 %v2163, %v2044
      %v2175 = vmul.f32 %v2163, %v2045
      %v2176 = vmul.f32 %v2163, %v2046
      %v2177 = vmul.f32 %v2163, %v2047
      %v2178 = vmul.f32 %v2163, %v2048
      %v2179 = vmul.f32 %v2163, %v2049
      %v2180 = vmul.f32 %v2163, %v2050
      %v2181 = vmul.f32 %v2163, %v2051
      %v2182 = vmul.f32 %v2163, %v2052
      %v2183 = vmul.f32 %v2163, %v2053
      %v2184 = vmul.f32 %v2163, %v2054
      %v2185 = vmul.f32 %v2163, %v2055
      %v2186 = vmul.f32 %v2163, %v2056
      %v2187 = vmul.f32 %v2163, %v2057
      %v2188 = vmul.f32 %v2163, %v2058
      %v2189 = vmul.f32 %v2163, %v2059
      %v2190 = vmul.f32 %v2163, %v2060
      %v2191 = vmul.f32 %v2163, %v2061
      %v2192 = vmul.f32 %v2163, %v2062
      %v2193 = vmul.f32 %v2163, %v2063
      %v2194 = vmul.f32 %v2163, %v2064
      %v2195 = vmul.f32 %v2163, %v2065
      %v2196 = vmul.f32 %v2163, %v2066
      %v2197 = vmul.f32 %v2163, %v2067
      %v2198 = vmul.f32 %v2163, %v2068
      %v2199 = vmul.f32 %v2163, %v2069
      %v2200 = vmul.f32 %v2163, %v2070
      %v2201 = vmul.f32 %v2163, %v2071
      %v2202 = vmul.f32 %v2163, %v2072
      %v2203 = vmul.f32 %v2163, %v2073
      %v2204 = vmul.f32 %v2163, %v2074
      %v2205 = vmul.f32 %v2163, %v2075
      %v2206 = vmul.f32 %v2163, %v2076
      %v2207 = vmul.f32 %v2163, %v2077
      %v2208 = vmul.f32 %v2163, %v2078
      %v2209 = vmul.f32 %v2163, %v2079
      %v2210 = vmul.f32 %v2163, %v2080
      %v2211 = vmul.f32 %v2163, %v2081
      %v2212 = vmul.f32 %v2163, %v2082
      %v2213 = vmul.f32 %v2163, %v2083
      %v2214 = vmul.f32 %v2163, %v2084
      %v2215 = vmul.f32 %v2163, %v2085
      %v2216 = vmul.f32 %v2163, %v2086
      %v2217 = vmul.f32 %v2163, %v2087
      %v2218 = vmul.f32 %v2163, %v2088
      %v2219 = vmul.f32 %v2163, %v2089
      %v2220 = vmul.f32 %v2163, %v2090
      %v2221 = vmul.f32 %v2163, %v2091
      %v2222 = vmul.f32 %v2163, %v2092
      %v2223 = vmul.f32 %v2163, %v2093
      %v2224 = vmul.f32 %v2163, %v2094
      %v2225 = vmul.f32 %v2163, %v2095
      %v2226 = vmul.f32 %v2163, %v2096
      %v2227 = vmul.f32 %v2163, %v2097
      %v2228 = vsel %vm2099, %v2034, %v2164
      %v2229 = vsel %vm2100, %v2035, %v2165
      %v2230 = vsel %vm2101, %v2036, %v2166
      %v2231 = vsel %vm2102, %v2037, %v2167
      %v2232 = vsel %vm2103, %v2038, %v2168
      %v2233 = vsel %vm2104, %v2039, %v2169
      %v2234 = vsel %vm2105, %v2040, %v2170
      %v2235 = vsel %vm2106, %v2041, %v2171
      %v2236 = vsel %vm2107, %v2042, %v2172
      %v2237 = vsel %vm2108, %v2043, %v2173
      %v2238 = vsel %vm2109, %v2044, %v2174
      %v2239 = vsel %vm2110, %v2045, %v2175
      %v2240 = vsel %vm2111, %v2046, %v2176
      %v2241 = vsel %vm2112, %v2047, %v2177
      %v2242 = vsel %vm2113, %v2048, %v2178
      %v2243 = vsel %vm2114, %v2049, %v2179
      %v2244 = vsel %vm2115, %v2050, %v2180
      %v2245 = vsel %vm2116, %v2051, %v2181
      %v2246 = vsel %vm2117, %v2052, %v2182
      %v2247 = vsel %vm2118, %v2053, %v2183
      %v2248 = vsel %vm2119, %v2054, %v2184
      %v2249 = vsel %vm2120, %v2055, %v2185
      %v2250 = vsel %vm2121, %v2056, %v2186
      %v2251 = vsel %vm2122, %v2057, %v2187
      %v2252 = vsel %vm2123, %v2058, %v2188
      %v2253 = vsel %vm2124, %v2059, %v2189
      %v2254 = vsel %vm2125, %v2060, %v2190
      %v2255 = vsel %vm2126, %v2061, %v2191
      %v2256 = vsel %vm2127, %v2062, %v2192
      %v2257 = vsel %vm2128, %v2063, %v2193
      %v2258 = vsel %vm2129, %v2064, %v2194
      %v2259 = vsel %vm2130, %v2065, %v2195
      %v2260 = vsel %vm2131, %v2066, %v2196
      %v2261 = vsel %vm2132, %v2067, %v2197
      %v2262 = vsel %vm2133, %v2068, %v2198
      %v2263 = vsel %vm2134, %v2069, %v2199
      %v2264 = vsel %vm2135, %v2070, %v2200
      %v2265 = vsel %vm2136, %v2071, %v2201
      %v2266 = vsel %vm2137, %v2072, %v2202
      %v2267 = vsel %vm2138, %v2073, %v2203
      %v2268 = vsel %vm2139, %v2074, %v2204
      %v2269 = vsel %vm2140, %v2075, %v2205
      %v2270 = vsel %vm2141, %v2076, %v2206
      %v2271 = vsel %vm2142, %v2077, %v2207
      %v2272 = vsel %vm2143, %v2078, %v2208
      %v2273 = vsel %vm2144, %v2079, %v2209
      %v2274 = vsel %vm2145, %v2080, %v2210
      %v2275 = vsel %vm2146, %v2081, %v2211
      %v2276 = vsel %vm2147, %v2082, %v2212
      %v2277 = vsel %vm2148, %v2083, %v2213
      %v2278 = vsel %vm2149, %v2084, %v2214
      %v2279 = vsel %vm2150, %v2085, %v2215
      %v2280 = vsel %vm2151, %v2086, %v2216
      %v2281 = vsel %vm2152, %v2087, %v2217
      %v2282 = vsel %vm2153, %v2088, %v2218
      %v2283 = vsel %vm2154, %v2089, %v2219
      %v2284 = vsel %vm2155, %v2090, %v2220
      %v2285 = vsel %vm2156, %v2091, %v2221
      %v2286 = vsel %vm2157, %v2092, %v2222
      %v2287 = vsel %vm2158, %v2093, %v2223
      %v2288 = vsel %vm2159, %v2094, %v2224
      %v2289 = vsel %vm2160, %v2095, %v2225
      %v2290 = vsel %vm2161, %v2096, %v2226
      %v2291 = vsel %vm2162, %v2097, %v2227
      %2292 = vst.msk [vmem:[%s5] sm:$0xff] %vm1390, %v2228
      %2293 = vst.msk [vmem:[%s5 + $0x8] sm:$0xff] %vm1390, %v2229
      %2294 = vst.msk [vmem:[%s5 + $0x10] sm:$0xff] %vm1390, %v2230
      %2295 = vst.msk [vmem:[%s5 + $0x18] sm:$0xff] %vm1390, %v2231
      %2296 = vst.msk [vmem:[%s5 + $0x20] sm:$0xff] %vm1390, %v2232
      %2297 = vst.msk [vmem:[%s5 + $0x28] sm:$0xff] %vm1390, %v2233
      %2298 = vst.msk [vmem:[%s5 + $0x30] sm:$0xff] %vm1390, %v2234
      %2299 = vst.msk [vmem:[%s5 + $0x38] sm:$0xff] %vm1390, %v2235
      %2300 = vst.msk [vmem:[%s5 + $0x40] sm:$0xff] %vm1390, %v2236
      %2301 = vst.msk [vmem:[%s5 + $0x48] sm:$0xff] %vm1390, %v2237
      %2302 = vst.msk [vmem:[%s5 + $0x50] sm:$0xff] %vm1390, %v2238
      %2303 = vst.msk [vmem:[%s5 + $0x58] sm:$0xff] %vm1390, %v2239
      %2304 = vst.msk [vmem:[%s5 + $0x60] sm:$0xff] %vm1390, %v2240
      %2305 = vst.msk [vmem:[%s5 + $0x68] sm:$0xff] %vm1390, %v2241
      %2306 = vst.msk [vmem:[%s5 + $0x70] sm:$0xff] %vm1390, %v2242
      %2307 = vst.msk [vmem:[%s5 + $0x78] sm:$0xff] %vm1390, %v2243
      %2308 = vst.msk [vmem:[%s5 + $0x80] sm:$0xff] %vm1390, %v2244
      %2309 = vst.msk [vmem:[%s5 + $0x88] sm:$0xff] %vm1390, %v2245
      %2310 = vst.msk [vmem:[%s5 + $0x90] sm:$0xff] %vm1390, %v2246
      %2311 = vst.msk [vmem:[%s5 + $0x98] sm:$0xff] %vm1390, %v2247
      %2312 = vst.msk [vmem:[%s5 + $0xa0] sm:$0xff] %vm1390, %v2248
      %2313 = vst.msk [vmem:[%s5 + $0xa8] sm:$0xff] %vm1390, %v2249
      %2314 = vst.msk [vmem:[%s5 + $0xb0] sm:$0xff] %vm1390, %v2250
      %2315 = vst.msk [vmem:[%s5 + $0xb8] sm:$0xff] %vm1390, %v2251
      %2316 = vst.msk [vmem:[%s5 + $0xc0] sm:$0xff] %vm1390, %v2252
      %2317 = vst.msk [vmem:[%s5 + $0xc8] sm:$0xff] %vm1390, %v2253
      %2318 = vst.msk [vmem:[%s5 + $0xd0] sm:$0xff] %vm1390, %v2254
      %2319 = vst.msk [vmem:[%s5 + $0xd8] sm:$0xff] %vm1390, %v2255
      %2320 = vst.msk [vmem:[%s5 + $0xe0] sm:$0xff] %vm1390, %v2256
      %2321 = vst.msk [vmem:[%s5 + $0xe8] sm:$0xff] %vm1390, %v2257
      %2322 = vst.msk [vmem:[%s5 + $0xf0] sm:$0xff] %vm1390, %v2258
      %2323 = vst.msk [vmem:[%s5 + $0xf8] sm:$0xff] %vm1390, %v2259
      %2324 = vst.msk [vmem:[%s5 + $0x100] sm:$0xff] %vm1390, %v2260
      %2325 = vst.msk [vmem:[%s5 + $0x108] sm:$0xff] %vm1390, %v2261
      %2326 = vst.msk [vmem:[%s5 + $0x110] sm:$0xff] %vm1390, %v2262
      %2327 = vst.msk [vmem:[%s5 + $0x118] sm:$0xff] %vm1390, %v2263
      %2328 = vst.msk [vmem:[%s5 + $0x120] sm:$0xff] %vm1390, %v2264
      %2329 = vst.msk [vmem:[%s5 + $0x128] sm:$0xff] %vm1390, %v2265
      %2330 = vst.msk [vmem:[%s5 + $0x130] sm:$0xff] %vm1390, %v2266
      %2331 = vst.msk [vmem:[%s5 + $0x138] sm:$0xff] %vm1390, %v2267
      %2332 = vst.msk [vmem:[%s5 + $0x140] sm:$0xff] %vm1390, %v2268
      %2333 = vst.msk [vmem:[%s5 + $0x148] sm:$0xff] %vm1390, %v2269
      %2334 = vst.msk [vmem:[%s5 + $0x150] sm:$0xff] %vm1390, %v2270
      %2335 = vst.msk [vmem:[%s5 + $0x158] sm:$0xff] %vm1390, %v2271
      %2336 = vst.msk [vmem:[%s5 + $0x160] sm:$0xff] %vm1390, %v2272
      %2337 = vst.msk [vmem:[%s5 + $0x168] sm:$0xff] %vm1390, %v2273
      %2338 = vst.msk [vmem:[%s5 + $0x170] sm:$0xff] %vm1390, %v2274
      %2339 = vst.msk [vmem:[%s5 + $0x178] sm:$0xff] %vm1390, %v2275
      %2340 = vst.msk [vmem:[%s5 + $0x180] sm:$0xff] %vm1390, %v2276
      %2341 = vst.msk [vmem:[%s5 + $0x188] sm:$0xff] %vm1390, %v2277
      %2342 = vst.msk [vmem:[%s5 + $0x190] sm:$0xff] %vm1390, %v2278
      %2343 = vst.msk [vmem:[%s5 + $0x198] sm:$0xff] %vm1390, %v2279
      %2344 = vst.msk [vmem:[%s5 + $0x1a0] sm:$0xff] %vm1390, %v2280
      %2345 = vst.msk [vmem:[%s5 + $0x1a8] sm:$0xff] %vm1390, %v2281
      %2346 = vst.msk [vmem:[%s5 + $0x1b0] sm:$0xff] %vm1390, %v2282
      %2347 = vst.msk [vmem:[%s5 + $0x1b8] sm:$0xff] %vm1390, %v2283
      %2348 = vst.msk [vmem:[%s5 + $0x1c0] sm:$0xff] %vm1390, %v2284
      %2349 = vst.msk [vmem:[%s5 + $0x1c8] sm:$0xff] %vm1390, %v2285
      %2350 = vst.msk [vmem:[%s5 + $0x1d0] sm:$0xff] %vm1390, %v2286
      %2351 = vst.msk [vmem:[%s5 + $0x1d8] sm:$0xff] %vm1390, %v2287
      %2352 = vst.msk [vmem:[%s5 + $0x1e0] sm:$0xff] %vm1390, %v2288
      %2353 = vst.msk [vmem:[%s5 + $0x1e8] sm:$0xff] %vm1390, %v2289
      %2354 = vst.msk [vmem:[%s5 + $0x1f0] sm:$0xff] %vm1390, %v2290
      %2355 = vst.msk [vmem:[%s5 + $0x1f8] sm:$0xff] %vm1390, %v2291
    $region33: #{sage_forward.2} parent=1 // pred_fallthru
      _
    // Predicated region
    $region34: #{sage_forward.2} parent=1 // pred_check
      _
    $region35: #{sage_forward.2} parent=1 // pred_check_branch
      %2357 = sbr.rel (0) target = $region37
    $region36: #{sage_forward.2} parent=1 // pred_region
      _
    $region37: #{sage_forward.2} parent=1 // pred_fallthru
      _
    // Predicated region
    $region38: #{sage_forward.2} parent=1 // pred_check
      _
    $region39: #{sage_forward.2} parent=1 // pred_check_branch
      %2359 = sbr.rel (0) target = $region41
    $region40: #{sage_forward.2} parent=1 // pred_region
      _
    $region41: #{sage_forward.2} parent=1 // pred_fallthru
      _
    %2360 = vsyncpa [#allocation4], 1

// kernel: sage_forward.3
$region0: #{sage_forward.3}
  #allocation0 [shape = 'u32[]', space=smem, size = 0x4, offset = 0x4, fixed_abs, tag = 'smem constant byte address 0x4 - core index']
  #allocation1 [shape = 'u32[72,128]{1,0:T(1,128)}', space=vmem, size = 0x9000, scoped, tag = 'internal scratch']
  #allocation2 [shape = 'f32[1]{0:T(128)S(6)}', space=smem, size = 0x200, scoped, tag = 'scoped memory for sage_forward.3']
  %s0 = inlined_call_operand.vmem [shape: f32[512,512], index: 0, kind: input, shape index: {}]
  %s1 = inlined_call_operand.vmem [shape: f32[512,16], index: 1, kind: input, shape index: {}]
  %s2 = inlined_call_operand.vmem [shape: f32[512,16], index: 2, kind: input, shape index: {}]
  %s3 = inlined_call_operand.vmem [shape: f32[512,1], index: 3, kind: input, shape index: {}]
  %s4 = inlined_call_operand.<no memory space> [shape: f32[1], index: 4, kind: input, shape index: {}]
  %s5 = inlined_call_operand.vmem [shape: f32[512,16], index: 5, kind: output, shape index: {}]
  %s6 = sld [smem:[#allocation0]]
  $region38: #{sage_forward.3} parent=0
    _
  %s8 = ssub.s32 1, %s6
  %s9 = scalar_select 0, %s8, %s6
  %10 = sst [smem:[#allocation2]] %s4
  // Predicated region
  $region2: #{sage_forward.3} parent=0 // pred_check
    _
  $region3: #{sage_forward.3} parent=0 // pred_check_branch
    %12 = sbr.rel (0) target = $region5
  $region4: #{sage_forward.3} parent=0 // pred_region
    _
  $region5: #{sage_forward.3} parent=0 // pred_fallthru
    _
  // Predicated region
  $region6: #{sage_forward.3} parent=0 // pred_check
    _
  $region7: #{sage_forward.3} parent=0 // pred_check_branch
    %14 = sbr.rel (0) target = $region9
  $region8: #{sage_forward.3} parent=0 // pred_region
    _
  $region9: #{sage_forward.3} parent=0 // pred_fallthru
    _
  // Predicated region
  $region10: #{sage_forward.3} parent=0 // pred_check
    _
  $region11: #{sage_forward.3} parent=0 // pred_check_branch
    %16 = sbr.rel (0) target = $region13
  $region12: #{sage_forward.3} parent=0 // pred_region
    _
  $region13: #{sage_forward.3} parent=0 // pred_fallthru
    _
  // Predicated region
  $region14: #{sage_forward.3} parent=0 // pred_check
    _
  $region15: #{sage_forward.3} parent=0 // pred_check_branch
    %18 = sbr.rel (0) target = $region17
  $region16: #{sage_forward.3} parent=0 // pred_region
    _
  $region17: #{sage_forward.3} parent=0 // pred_fallthru
    _
  // Predicated region
  $region18: #{sage_forward.3} parent=0 // pred_check
    _
  $region19: #{sage_forward.3} parent=0 // pred_check_branch
    %20 = sbr.rel (0) target = $region21
  $region20: #{sage_forward.3} parent=0 // pred_region
    _
  $region21: #{sage_forward.3} parent=0 // pred_fallthru
    _
  %p21 = scmp.eq.s32.totalorder 0, 0
  // Predicated region
  $region22: #{sage_forward.3} parent=0 // pred_check
    %p22 = pneg %p21
  $region23: #{sage_forward.3} parent=0 // pred_check_branch
    %24 = sbr.rel (%p22) target = $region25
  $region24: #{sage_forward.3} parent=0 // pred_region
    %vm25 = vcmask 130048
    %26 = vst.msk [vmem:[%s5] sm:$0xff] %vm25, 0.0
    %27 = vst.msk [vmem:[%s5 + $0x8] sm:$0xff] %vm25, 0.0
    %28 = vst.msk [vmem:[%s5 + $0x10] sm:$0xff] %vm25, 0.0
    %29 = vst.msk [vmem:[%s5 + $0x18] sm:$0xff] %vm25, 0.0
    %30 = vst.msk [vmem:[%s5 + $0x20] sm:$0xff] %vm25, 0.0
    %31 = vst.msk [vmem:[%s5 + $0x28] sm:$0xff] %vm25, 0.0
    %32 = vst.msk [vmem:[%s5 + $0x30] sm:$0xff] %vm25, 0.0
    %33 = vst.msk [vmem:[%s5 + $0x38] sm:$0xff] %vm25, 0.0
    %34 = vst.msk [vmem:[%s5 + $0x40] sm:$0xff] %vm25, 0.0
    %35 = vst.msk [vmem:[%s5 + $0x48] sm:$0xff] %vm25, 0.0
    %36 = vst.msk [vmem:[%s5 + $0x50] sm:$0xff] %vm25, 0.0
    %37 = vst.msk [vmem:[%s5 + $0x58] sm:$0xff] %vm25, 0.0
    %38 = vst.msk [vmem:[%s5 + $0x60] sm:$0xff] %vm25, 0.0
    %39 = vst.msk [vmem:[%s5 + $0x68] sm:$0xff] %vm25, 0.0
    %40 = vst.msk [vmem:[%s5 + $0x70] sm:$0xff] %vm25, 0.0
    %41 = vst.msk [vmem:[%s5 + $0x78] sm:$0xff] %vm25, 0.0
    %42 = vst.msk [vmem:[%s5 + $0x80] sm:$0xff] %vm25, 0.0
    %43 = vst.msk [vmem:[%s5 + $0x88] sm:$0xff] %vm25, 0.0
    %44 = vst.msk [vmem:[%s5 + $0x90] sm:$0xff] %vm25, 0.0
    %45 = vst.msk [vmem:[%s5 + $0x98] sm:$0xff] %vm25, 0.0
    %46 = vst.msk [vmem:[%s5 + $0xa0] sm:$0xff] %vm25, 0.0
    %47 = vst.msk [vmem:[%s5 + $0xa8] sm:$0xff] %vm25, 0.0
    %48 = vst.msk [vmem:[%s5 + $0xb0] sm:$0xff] %vm25, 0.0
    %49 = vst.msk [vmem:[%s5 + $0xb8] sm:$0xff] %vm25, 0.0
    %50 = vst.msk [vmem:[%s5 + $0xc0] sm:$0xff] %vm25, 0.0
    %51 = vst.msk [vmem:[%s5 + $0xc8] sm:$0xff] %vm25, 0.0
    %52 = vst.msk [vmem:[%s5 + $0xd0] sm:$0xff] %vm25, 0.0
    %53 = vst.msk [vmem:[%s5 + $0xd8] sm:$0xff] %vm25, 0.0
    %54 = vst.msk [vmem:[%s5 + $0xe0] sm:$0xff] %vm25, 0.0
    %55 = vst.msk [vmem:[%s5 + $0xe8] sm:$0xff] %vm25, 0.0
    %56 = vst.msk [vmem:[%s5 + $0xf0] sm:$0xff] %vm25, 0.0
    %57 = vst.msk [vmem:[%s5 + $0xf8] sm:$0xff] %vm25, 0.0
    %58 = vst.msk [vmem:[%s5 + $0x100] sm:$0xff] %vm25, 0.0
    %59 = vst.msk [vmem:[%s5 + $0x108] sm:$0xff] %vm25, 0.0
    %60 = vst.msk [vmem:[%s5 + $0x110] sm:$0xff] %vm25, 0.0
    %61 = vst.msk [vmem:[%s5 + $0x118] sm:$0xff] %vm25, 0.0
    %62 = vst.msk [vmem:[%s5 + $0x120] sm:$0xff] %vm25, 0.0
    %63 = vst.msk [vmem:[%s5 + $0x128] sm:$0xff] %vm25, 0.0
    %64 = vst.msk [vmem:[%s5 + $0x130] sm:$0xff] %vm25, 0.0
    %65 = vst.msk [vmem:[%s5 + $0x138] sm:$0xff] %vm25, 0.0
    %66 = vst.msk [vmem:[%s5 + $0x140] sm:$0xff] %vm25, 0.0
    %67 = vst.msk [vmem:[%s5 + $0x148] sm:$0xff] %vm25, 0.0
    %68 = vst.msk [vmem:[%s5 + $0x150] sm:$0xff] %vm25, 0.0
    %69 = vst.msk [vmem:[%s5 + $0x158] sm:$0xff] %vm25, 0.0
    %70 = vst.msk [vmem:[%s5 + $0x160] sm:$0xff] %vm25, 0.0
    %71 = vst.msk [vmem:[%s5 + $0x168] sm:$0xff] %vm25, 0.0
    %72 = vst.msk [vmem:[%s5 + $0x170] sm:$0xff] %vm25, 0.0
    %73 = vst.msk [vmem:[%s5 + $0x178] sm:$0xff] %vm25, 0.0
    %74 = vst.msk [vmem:[%s5 + $0x180] sm:$0xff] %vm25, 0.0
    %75 = vst.msk [vmem:[%s5 + $0x188] sm:$0xff] %vm25, 0.0
    %76 = vst.msk [vmem:[%s5 + $0x190] sm:$0xff] %vm25, 0.0
    %77 = vst.msk [vmem:[%s5 + $0x198] sm:$0xff] %vm25, 0.0
    %78 = vst.msk [vmem:[%s5 + $0x1a0] sm:$0xff] %vm25, 0.0
    %79 = vst.msk [vmem:[%s5 + $0x1a8] sm:$0xff] %vm25, 0.0
    %80 = vst.msk [vmem:[%s5 + $0x1b0] sm:$0xff] %vm25, 0.0
    %81 = vst.msk [vmem:[%s5 + $0x1b8] sm:$0xff] %vm25, 0.0
    %82 = vst.msk [vmem:[%s5 + $0x1c0] sm:$0xff] %vm25, 0.0
    %83 = vst.msk [vmem:[%s5 + $0x1c8] sm:$0xff] %vm25, 0.0
    %84 = vst.msk [vmem:[%s5 + $0x1d0] sm:$0xff] %vm25, 0.0
    %85 = vst.msk [vmem:[%s5 + $0x1d8] sm:$0xff] %vm25, 0.0
    %86 = vst.msk [vmem:[%s5 + $0x1e0] sm:$0xff] %vm25, 0.0
    %87 = vst.msk [vmem:[%s5 + $0x1e8] sm:$0xff] %vm25, 0.0
    %88 = vst.msk [vmem:[%s5 + $0x1f0] sm:$0xff] %vm25, 0.0
    %89 = vst.msk [vmem:[%s5 + $0x1f8] sm:$0xff] %vm25, 0.0
  $region25: #{sage_forward.3} parent=0 // pred_fallthru
    _
  %v90 = vld [vmem:[%s0] sm:$0xff]
  %v91 = vld [vmem:[%s0 + $0x8] sm:$0xff]
  %v92 = vld [vmem:[%s0 + $0x10] sm:$0xff]
  %v93 = vld [vmem:[%s0 + $0x18] sm:$0xff]
  %v94 = vld [vmem:[%s0 + $0x20] sm:$0xff]
  %v95 = vld [vmem:[%s0 + $0x28] sm:$0xff]
  %v96 = vld [vmem:[%s0 + $0x30] sm:$0xff]
  %v97 = vld [vmem:[%s0 + $0x38] sm:$0xff]
  %v98 = vld [vmem:[%s0 + $0x40] sm:$0xff]
  %v99 = vld [vmem:[%s0 + $0x48] sm:$0xff]
  %v100 = vld [vmem:[%s0 + $0x50] sm:$0xff]
  %v101 = vld [vmem:[%s0 + $0x58] sm:$0xff]
  %v102 = vld [vmem:[%s0 + $0x60] sm:$0xff]
  %v103 = vld [vmem:[%s0 + $0x68] sm:$0xff]
  %v104 = vld [vmem:[%s0 + $0x70] sm:$0xff]
  %v105 = vld [vmem:[%s0 + $0x78] sm:$0xff]
  %v106 = vld [vmem:[%s0 + $0x80] sm:$0xff]
  %v107 = vld [vmem:[%s0 + $0x88] sm:$0xff]
  %v108 = vld [vmem:[%s0 + $0x90] sm:$0xff]
  %v109 = vld [vmem:[%s0 + $0x98] sm:$0xff]
  %v110 = vld [vmem:[%s0 + $0xa0] sm:$0xff]
  %v111 = vld [vmem:[%s0 + $0xa8] sm:$0xff]
  %v112 = vld [vmem:[%s0 + $0xb0] sm:$0xff]
  %v113 = vld [vmem:[%s0 + $0xb8] sm:$0xff]
  %v114 = vld [vmem:[%s0 + $0xc0] sm:$0xff]
  %v115 = vld [vmem:[%s0 + $0xc8] sm:$0xff]
  %v116 = vld [vmem:[%s0 + $0xd0] sm:$0xff]
  %v117 = vld [vmem:[%s0 + $0xd8] sm:$0xff]
  %v118 = vld [vmem:[%s0 + $0xe0] sm:$0xff]
  %v119 = vld [vmem:[%s0 + $0xe8] sm:$0xff]
  %v120 = vld [vmem:[%s0 + $0xf0] sm:$0xff]
  %v121 = vld [vmem:[%s0 + $0xf8] sm:$0xff]
  %v122 = vld [vmem:[%s0 + $0x100] sm:$0xff]
  %v123 = vld [vmem:[%s0 + $0x108] sm:$0xff]
  %v124 = vld [vmem:[%s0 + $0x110] sm:$0xff]
  %v125 = vld [vmem:[%s0 + $0x118] sm:$0xff]
  %v126 = vld [vmem:[%s0 + $0x120] sm:$0xff]
  %v127 = vld [vmem:[%s0 + $0x128] sm:$0xff]
  %v128 = vld [vmem:[%s0 + $0x130] sm:$0xff]
  %v129 = vld [vmem:[%s0 + $0x138] sm:$0xff]
  %v130 = vld [vmem:[%s0 + $0x140] sm:$0xff]
  %v131 = vld [vmem:[%s0 + $0x148] sm:$0xff]
  %v132 = vld [vmem:[%s0 + $0x150] sm:$0xff]
  %v133 = vld [vmem:[%s0 + $0x158] sm:$0xff]
  %v134 = vld [vmem:[%s0 + $0x160] sm:$0xff]
  %v135 = vld [vmem:[%s0 + $0x168] sm:$0xff]
  %v136 = vld [vmem:[%s0 + $0x170] sm:$0xff]
  %v137 = vld [vmem:[%s0 + $0x178] sm:$0xff]
  %v138 = vld [vmem:[%s0 + $0x180] sm:$0xff]
  %v139 = vld [vmem:[%s0 + $0x188] sm:$0xff]
  %v140 = vld [vmem:[%s0 + $0x190] sm:$0xff]
  %v141 = vld [vmem:[%s0 + $0x198] sm:$0xff]
  %v142 = vld [vmem:[%s0 + $0x1a0] sm:$0xff]
  %v143 = vld [vmem:[%s0 + $0x1a8] sm:$0xff]
  %v144 = vld [vmem:[%s0 + $0x1b0] sm:$0xff]
  %v145 = vld [vmem:[%s0 + $0x1b8] sm:$0xff]
  %v146 = vld [vmem:[%s0 + $0x1c0] sm:$0xff]
  %v147 = vld [vmem:[%s0 + $0x1c8] sm:$0xff]
  %v148 = vld [vmem:[%s0 + $0x1d0] sm:$0xff]
  %v149 = vld [vmem:[%s0 + $0x1d8] sm:$0xff]
  %v150 = vld [vmem:[%s0 + $0x1e0] sm:$0xff]
  %v151 = vld [vmem:[%s0 + $0x1e8] sm:$0xff]
  %v152 = vld [vmem:[%s0 + $0x1f0] sm:$0xff]
  %v153 = vld [vmem:[%s0 + $0x1f8] sm:$0xff]
  %v154 = vld [vmem:[%s0 + $0x200] sm:$0xff]
  %v155 = vld [vmem:[%s0 + $0x208] sm:$0xff]
  %v156 = vld [vmem:[%s0 + $0x210] sm:$0xff]
  %v157 = vld [vmem:[%s0 + $0x218] sm:$0xff]
  %v158 = vld [vmem:[%s0 + $0x220] sm:$0xff]
  %v159 = vld [vmem:[%s0 + $0x228] sm:$0xff]
  %v160 = vld [vmem:[%s0 + $0x230] sm:$0xff]
  %v161 = vld [vmem:[%s0 + $0x238] sm:$0xff]
  %v162 = vld [vmem:[%s0 + $0x240] sm:$0xff]
  %v163 = vld [vmem:[%s0 + $0x248] sm:$0xff]
  %v164 = vld [vmem:[%s0 + $0x250] sm:$0xff]
  %v165 = vld [vmem:[%s0 + $0x258] sm:$0xff]
  %v166 = vld [vmem:[%s0 + $0x260] sm:$0xff]
  %v167 = vld [vmem:[%s0 + $0x268] sm:$0xff]
  %v168 = vld [vmem:[%s0 + $0x270] sm:$0xff]
  %v169 = vld [vmem:[%s0 + $0x278] sm:$0xff]
  %v170 = vld [vmem:[%s0 + $0x280] sm:$0xff]
  %v171 = vld [vmem:[%s0 + $0x288] sm:$0xff]
  %v172 = vld [vmem:[%s0 + $0x290] sm:$0xff]
  %v173 = vld [vmem:[%s0 + $0x298] sm:$0xff]
  %v174 = vld [vmem:[%s0 + $0x2a0] sm:$0xff]
  %v175 = vld [vmem:[%s0 + $0x2a8] sm:$0xff]
  %v176 = vld [vmem:[%s0 + $0x2b0] sm:$0xff]
  %v177 = vld [vmem:[%s0 + $0x2b8] sm:$0xff]
  %v178 = vld [vmem:[%s0 + $0x2c0] sm:$0xff]
  %v179 = vld [vmem:[%s0 + $0x2c8] sm:$0xff]
  %v180 = vld [vmem:[%s0 + $0x2d0] sm:$0xff]
  %v181 = vld [vmem:[%s0 + $0x2d8] sm:$0xff]
  %v182 = vld [vmem:[%s0 + $0x2e0] sm:$0xff]
  %v183 = vld [vmem:[%s0 + $0x2e8] sm:$0xff]
  %v184 = vld [vmem:[%s0 + $0x2f0] sm:$0xff]
  %v185 = vld [vmem:[%s0 + $0x2f8] sm:$0xff]
  %v186 = vld [vmem:[%s0 + $0x300] sm:$0xff]
  %v187 = vld [vmem:[%s0 + $0x308] sm:$0xff]
  %v188 = vld [vmem:[%s0 + $0x310] sm:$0xff]
  %v189 = vld [vmem:[%s0 + $0x318] sm:$0xff]
  %v190 = vld [vmem:[%s0 + $0x320] sm:$0xff]
  %v191 = vld [vmem:[%s0 + $0x328] sm:$0xff]
  %v192 = vld [vmem:[%s0 + $0x330] sm:$0xff]
  %v193 = vld [vmem:[%s0 + $0x338] sm:$0xff]
  %v194 = vld [vmem:[%s0 + $0x340] sm:$0xff]
  %v195 = vld [vmem:[%s0 + $0x348] sm:$0xff]
  %v196 = vld [vmem:[%s0 + $0x350] sm:$0xff]
  %v197 = vld [vmem:[%s0 + $0x358] sm:$0xff]
  %v198 = vld [vmem:[%s0 + $0x360] sm:$0xff]
  %v199 = vld [vmem:[%s0 + $0x368] sm:$0xff]
  %v200 = vld [vmem:[%s0 + $0x370] sm:$0xff]
  %v201 = vld [vmem:[%s0 + $0x378] sm:$0xff]
  %v202 = vld [vmem:[%s0 + $0x380] sm:$0xff]
  %v203 = vld [vmem:[%s0 + $0x388] sm:$0xff]
  %v204 = vld [vmem:[%s0 + $0x390] sm:$0xff]
  %v205 = vld [vmem:[%s0 + $0x398] sm:$0xff]
  %v206 = vld [vmem:[%s0 + $0x3a0] sm:$0xff]
  %v207 = vld [vmem:[%s0 + $0x3a8] sm:$0xff]
  %v208 = vld [vmem:[%s0 + $0x3b0] sm:$0xff]
  %v209 = vld [vmem:[%s0 + $0x3b8] sm:$0xff]
  %v210 = vld [vmem:[%s0 + $0x3c0] sm:$0xff]
  %v211 = vld [vmem:[%s0 + $0x3c8] sm:$0xff]
  %v212 = vld [vmem:[%s0 + $0x3d0] sm:$0xff]
  %v213 = vld [vmem:[%s0 + $0x3d8] sm:$0xff]
  %v214 = vld [vmem:[%s0 + $0x3e0] sm:$0xff]
  %v215 = vld [vmem:[%s0 + $0x3e8] sm:$0xff]
  %v216 = vld [vmem:[%s0 + $0x3f0] sm:$0xff]
  %v217 = vld [vmem:[%s0 + $0x3f8] sm:$0xff]
  %v218 = vld [vmem:[%s0 + $0x400] sm:$0xff]
  %v219 = vld [vmem:[%s0 + $0x408] sm:$0xff]
  %v220 = vld [vmem:[%s0 + $0x410] sm:$0xff]
  %v221 = vld [vmem:[%s0 + $0x418] sm:$0xff]
  %v222 = vld [vmem:[%s0 + $0x420] sm:$0xff]
  %v223 = vld [vmem:[%s0 + $0x428] sm:$0xff]
  %v224 = vld [vmem:[%s0 + $0x430] sm:$0xff]
  %v225 = vld [vmem:[%s0 + $0x438] sm:$0xff]
  %v226 = vld [vmem:[%s0 + $0x440] sm:$0xff]
  %v227 = vld [vmem:[%s0 + $0x448] sm:$0xff]
  %v228 = vld [vmem:[%s0 + $0x450] sm:$0xff]
  %v229 = vld [vmem:[%s0 + $0x458] sm:$0xff]
  %v230 = vld [vmem:[%s0 + $0x460] sm:$0xff]
  %v231 = vld [vmem:[%s0 + $0x468] sm:$0xff]
  %v232 = vld [vmem:[%s0 + $0x470] sm:$0xff]
  %v233 = vld [vmem:[%s0 + $0x478] sm:$0xff]
  %v234 = vld [vmem:[%s0 + $0x480] sm:$0xff]
  %v235 = vld [vmem:[%s0 + $0x488] sm:$0xff]
  %v236 = vld [vmem:[%s0 + $0x490] sm:$0xff]
  %v237 = vld [vmem:[%s0 + $0x498] sm:$0xff]
  %v238 = vld [vmem:[%s0 + $0x4a0] sm:$0xff]
  %v239 = vld [vmem:[%s0 + $0x4a8] sm:$0xff]
  %v240 = vld [vmem:[%s0 + $0x4b0] sm:$0xff]
  %v241 = vld [vmem:[%s0 + $0x4b8] sm:$0xff]
  %v242 = vld [vmem:[%s0 + $0x4c0] sm:$0xff]
  %v243 = vld [vmem:[%s0 + $0x4c8] sm:$0xff]
  %v244 = vld [vmem:[%s0 + $0x4d0] sm:$0xff]
  %v245 = vld [vmem:[%s0 + $0x4d8] sm:$0xff]
  %v246 = vld [vmem:[%s0 + $0x4e0] sm:$0xff]
  %v247 = vld [vmem:[%s0 + $0x4e8] sm:$0xff]
  %v248 = vld [vmem:[%s0 + $0x4f0] sm:$0xff]
  %v249 = vld [vmem:[%s0 + $0x4f8] sm:$0xff]
  %v250 = vld [vmem:[%s0 + $0x500] sm:$0xff]
  %v251 = vld [vmem:[%s0 + $0x508] sm:$0xff]
  %v252 = vld [vmem:[%s0 + $0x510] sm:$0xff]
  %v253 = vld [vmem:[%s0 + $0x518] sm:$0xff]
  %v254 = vld [vmem:[%s0 + $0x520] sm:$0xff]
  %v255 = vld [vmem:[%s0 + $0x528] sm:$0xff]
  %v256 = vld [vmem:[%s0 + $0x530] sm:$0xff]
  %v257 = vld [vmem:[%s0 + $0x538] sm:$0xff]
  %v258 = vld [vmem:[%s0 + $0x540] sm:$0xff]
  %v259 = vld [vmem:[%s0 + $0x548] sm:$0xff]
  %v260 = vld [vmem:[%s0 + $0x550] sm:$0xff]
  %v261 = vld [vmem:[%s0 + $0x558] sm:$0xff]
  %v262 = vld [vmem:[%s0 + $0x560] sm:$0xff]
  %v263 = vld [vmem:[%s0 + $0x568] sm:$0xff]
  %v264 = vld [vmem:[%s0 + $0x570] sm:$0xff]
  %v265 = vld [vmem:[%s0 + $0x578] sm:$0xff]
  %v266 = vld [vmem:[%s0 + $0x580] sm:$0xff]
  %v267 = vld [vmem:[%s0 + $0x588] sm:$0xff]
  %v268 = vld [vmem:[%s0 + $0x590] sm:$0xff]
  %v269 = vld [vmem:[%s0 + $0x598] sm:$0xff]
  %v270 = vld [vmem:[%s0 + $0x5a0] sm:$0xff]
  %v271 = vld [vmem:[%s0 + $0x5a8] sm:$0xff]
  %v272 = vld [vmem:[%s0 + $0x5b0] sm:$0xff]
  %v273 = vld [vmem:[%s0 + $0x5b8] sm:$0xff]
  %v274 = vld [vmem:[%s0 + $0x5c0] sm:$0xff]
  %v275 = vld [vmem:[%s0 + $0x5c8] sm:$0xff]
  %v276 = vld [vmem:[%s0 + $0x5d0] sm:$0xff]
  %v277 = vld [vmem:[%s0 + $0x5d8] sm:$0xff]
  %v278 = vld [vmem:[%s0 + $0x5e0] sm:$0xff]
  %v279 = vld [vmem:[%s0 + $0x5e8] sm:$0xff]
  %v280 = vld [vmem:[%s0 + $0x5f0] sm:$0xff]
  %v281 = vld [vmem:[%s0 + $0x5f8] sm:$0xff]
  %v282 = vld [vmem:[%s0 + $0x600] sm:$0xff]
  %v283 = vld [vmem:[%s0 + $0x608] sm:$0xff]
  %v284 = vld [vmem:[%s0 + $0x610] sm:$0xff]
  %v285 = vld [vmem:[%s0 + $0x618] sm:$0xff]
  %v286 = vld [vmem:[%s0 + $0x620] sm:$0xff]
  %v287 = vld [vmem:[%s0 + $0x628] sm:$0xff]
  %v288 = vld [vmem:[%s0 + $0x630] sm:$0xff]
  %v289 = vld [vmem:[%s0 + $0x638] sm:$0xff]
  %v290 = vld [vmem:[%s0 + $0x640] sm:$0xff]
  %v291 = vld [vmem:[%s0 + $0x648] sm:$0xff]
  %v292 = vld [vmem:[%s0 + $0x650] sm:$0xff]
  %v293 = vld [vmem:[%s0 + $0x658] sm:$0xff]
  %v294 = vld [vmem:[%s0 + $0x660] sm:$0xff]
  %v295 = vld [vmem:[%s0 + $0x668] sm:$0xff]
  %v296 = vld [vmem:[%s0 + $0x670] sm:$0xff]
  %v297 = vld [vmem:[%s0 + $0x678] sm:$0xff]
  %v298 = vld [vmem:[%s0 + $0x680] sm:$0xff]
  %v299 = vld [vmem:[%s0 + $0x688] sm:$0xff]
  %v300 = vld [vmem:[%s0 + $0x690] sm:$0xff]
  %v301 = vld [vmem:[%s0 + $0x698] sm:$0xff]
  %v302 = vld [vmem:[%s0 + $0x6a0] sm:$0xff]
  %v303 = vld [vmem:[%s0 + $0x6a8] sm:$0xff]
  %v304 = vld [vmem:[%s0 + $0x6b0] sm:$0xff]
  %v305 = vld [vmem:[%s0 + $0x6b8] sm:$0xff]
  %v306 = vld [vmem:[%s0 + $0x6c0] sm:$0xff]
  %v307 = vld [vmem:[%s0 + $0x6c8] sm:$0xff]
  %v308 = vld [vmem:[%s0 + $0x6d0] sm:$0xff]
  %v309 = vld [vmem:[%s0 + $0x6d8] sm:$0xff]
  %v310 = vld [vmem:[%s0 + $0x6e0] sm:$0xff]
  %v311 = vld [vmem:[%s0 + $0x6e8] sm:$0xff]
  %v312 = vld [vmem:[%s0 + $0x6f0] sm:$0xff]
  %v313 = vld [vmem:[%s0 + $0x6f8] sm:$0xff]
  %v314 = vld [vmem:[%s0 + $0x700] sm:$0xff]
  %v315 = vld [vmem:[%s0 + $0x708] sm:$0xff]
  %v316 = vld [vmem:[%s0 + $0x710] sm:$0xff]
  %v317 = vld [vmem:[%s0 + $0x718] sm:$0xff]
  %v318 = vld [vmem:[%s0 + $0x720] sm:$0xff]
  %v319 = vld [vmem:[%s0 + $0x728] sm:$0xff]
  %v320 = vld [vmem:[%s0 + $0x730] sm:$0xff]
  %v321 = vld [vmem:[%s0 + $0x738] sm:$0xff]
  %v322 = vld [vmem:[%s0 + $0x740] sm:$0xff]
  %v323 = vld [vmem:[%s0 + $0x748] sm:$0xff]
  %v324 = vld [vmem:[%s0 + $0x750] sm:$0xff]
  %v325 = vld [vmem:[%s0 + $0x758] sm:$0xff]
  %v326 = vld [vmem:[%s0 + $0x760] sm:$0xff]
  %v327 = vld [vmem:[%s0 + $0x768] sm:$0xff]
  %v328 = vld [vmem:[%s0 + $0x770] sm:$0xff]
  %v329 = vld [vmem:[%s0 + $0x778] sm:$0xff]
  %v330 = vld [vmem:[%s0 + $0x780] sm:$0xff]
  %v331 = vld [vmem:[%s0 + $0x788] sm:$0xff]
  %v332 = vld [vmem:[%s0 + $0x790] sm:$0xff]
  %v333 = vld [vmem:[%s0 + $0x798] sm:$0xff]
  %v334 = vld [vmem:[%s0 + $0x7a0] sm:$0xff]
  %v335 = vld [vmem:[%s0 + $0x7a8] sm:$0xff]
  %v336 = vld [vmem:[%s0 + $0x7b0] sm:$0xff]
  %v337 = vld [vmem:[%s0 + $0x7b8] sm:$0xff]
  %v338 = vld [vmem:[%s0 + $0x7c0] sm:$0xff]
  %v339 = vld [vmem:[%s0 + $0x7c8] sm:$0xff]
  %v340 = vld [vmem:[%s0 + $0x7d0] sm:$0xff]
  %v341 = vld [vmem:[%s0 + $0x7d8] sm:$0xff]
  %v342 = vld [vmem:[%s0 + $0x7e0] sm:$0xff]
  %v343 = vld [vmem:[%s0 + $0x7e8] sm:$0xff]
  %v344 = vld [vmem:[%s0 + $0x7f0] sm:$0xff]
  %v345 = vld [vmem:[%s0 + $0x7f8] sm:$0xff]
  %v346 = vld [vmem:[%s5] sm:$0xff]
  %v347 = vld [vmem:[%s5 + $0x8] sm:$0xff]
  %v348 = vld [vmem:[%s5 + $0x10] sm:$0xff]
  %v349 = vld [vmem:[%s5 + $0x18] sm:$0xff]
  %v350 = vld [vmem:[%s5 + $0x20] sm:$0xff]
  %v351 = vld [vmem:[%s5 + $0x28] sm:$0xff]
  %v352 = vld [vmem:[%s5 + $0x30] sm:$0xff]
  %v353 = vld [vmem:[%s5 + $0x38] sm:$0xff]
  %v354 = vld [vmem:[%s5 + $0x40] sm:$0xff]
  %v355 = vld [vmem:[%s5 + $0x48] sm:$0xff]
  %v356 = vld [vmem:[%s5 + $0x50] sm:$0xff]
  %v357 = vld [vmem:[%s5 + $0x58] sm:$0xff]
  %v358 = vld [vmem:[%s5 + $0x60] sm:$0xff]
  %v359 = vld [vmem:[%s5 + $0x68] sm:$0xff]
  %v360 = vld [vmem:[%s5 + $0x70] sm:$0xff]
  %v361 = vld [vmem:[%s5 + $0x78] sm:$0xff]
  %v362 = vld [vmem:[%s5 + $0x80] sm:$0xff]
  %v363 = vld [vmem:[%s5 + $0x88] sm:$0xff]
  %v364 = vld [vmem:[%s5 + $0x90] sm:$0xff]
  %v365 = vld [vmem:[%s5 + $0x98] sm:$0xff]
  %v366 = vld [vmem:[%s5 + $0xa0] sm:$0xff]
  %v367 = vld [vmem:[%s5 + $0xa8] sm:$0xff]
  %v368 = vld [vmem:[%s5 + $0xb0] sm:$0xff]
  %v369 = vld [vmem:[%s5 + $0xb8] sm:$0xff]
  %v370 = vld [vmem:[%s5 + $0xc0] sm:$0xff]
  %v371 = vld [vmem:[%s5 + $0xc8] sm:$0xff]
  %v372 = vld [vmem:[%s5 + $0xd0] sm:$0xff]
  %v373 = vld [vmem:[%s5 + $0xd8] sm:$0xff]
  %v374 = vld [vmem:[%s5 + $0xe0] sm:$0xff]
  %v375 = vld [vmem:[%s5 + $0xe8] sm:$0xff]
  %v376 = vld [vmem:[%s5 + $0xf0] sm:$0xff]
  %v377 = vld [vmem:[%s5 + $0xf8] sm:$0xff]
  %v378 = vld [vmem:[%s5 + $0x100] sm:$0xff]
  %v379 = vld [vmem:[%s5 + $0x108] sm:$0xff]
  %v380 = vld [vmem:[%s5 + $0x110] sm:$0xff]
  %v381 = vld [vmem:[%s5 + $0x118] sm:$0xff]
  %v382 = vld [vmem:[%s5 + $0x120] sm:$0xff]
  %v383 = vld [vmem:[%s5 + $0x128] sm:$0xff]
  %v384 = vld [vmem:[%s5 + $0x130] sm:$0xff]
  %v385 = vld [vmem:[%s5 + $0x138] sm:$0xff]
  %v386 = vld [vmem:[%s5 + $0x140] sm:$0xff]
  %v387 = vld [vmem:[%s5 + $0x148] sm:$0xff]
  %v388 = vld [vmem:[%s5 + $0x150] sm:$0xff]
  %v389 = vld [vmem:[%s5 + $0x158] sm:$0xff]
  %v390 = vld [vmem:[%s5 + $0x160] sm:$0xff]
  %v391 = vld [vmem:[%s5 + $0x168] sm:$0xff]
  %v392 = vld [vmem:[%s5 + $0x170] sm:$0xff]
  %v393 = vld [vmem:[%s5 + $0x178] sm:$0xff]
  %v394 = vld [vmem:[%s5 + $0x180] sm:$0xff]
  %v395 = vld [vmem:[%s5 + $0x188] sm:$0xff]
  %v396 = vld [vmem:[%s5 + $0x190] sm:$0xff]
  %v397 = vld [vmem:[%s5 + $0x198] sm:$0xff]
  %v398 = vld [vmem:[%s5 + $0x1a0] sm:$0xff]
  %v399 = vld [vmem:[%s5 + $0x1a8] sm:$0xff]
  %v400 = vld [vmem:[%s5 + $0x1b0] sm:$0xff]
  %v401 = vld [vmem:[%s5 + $0x1b8] sm:$0xff]
  %v402 = vld [vmem:[%s5 + $0x1c0] sm:$0xff]
  %v403 = vld [vmem:[%s5 + $0x1c8] sm:$0xff]
  %v404 = vld [vmem:[%s5 + $0x1d0] sm:$0xff]
  %v405 = vld [vmem:[%s5 + $0x1d8] sm:$0xff]
  %v406 = vld [vmem:[%s5 + $0x1e0] sm:$0xff]
  %v407 = vld [vmem:[%s5 + $0x1e8] sm:$0xff]
  %v408 = vld [vmem:[%s5 + $0x1f0] sm:$0xff]
  %v409 = vld [vmem:[%s5 + $0x1f8] sm:$0xff]
  %v410 = vld [vmem:[%s1] sm:$0xff]
  %v411 = vld [vmem:[%s1 + $0x8] sm:$0xff]
  %v412 = vld [vmem:[%s1 + $0x10] sm:$0xff]
  %v413 = vld [vmem:[%s1 + $0x18] sm:$0xff]
  %v414 = vld [vmem:[%s1 + $0x20] sm:$0xff]
  %v415 = vld [vmem:[%s1 + $0x28] sm:$0xff]
  %v416 = vld [vmem:[%s1 + $0x30] sm:$0xff]
  %v417 = vld [vmem:[%s1 + $0x38] sm:$0xff]
  %v418 = vld [vmem:[%s1 + $0x40] sm:$0xff]
  %v419 = vld [vmem:[%s1 + $0x48] sm:$0xff]
  %v420 = vld [vmem:[%s1 + $0x50] sm:$0xff]
  %v421 = vld [vmem:[%s1 + $0x58] sm:$0xff]
  %v422 = vld [vmem:[%s1 + $0x60] sm:$0xff]
  %v423 = vld [vmem:[%s1 + $0x68] sm:$0xff]
  %v424 = vld [vmem:[%s1 + $0x70] sm:$0xff]
  %v425 = vld [vmem:[%s1 + $0x78] sm:$0xff]
  %v426 = vld [vmem:[%s1 + $0x80] sm:$0xff]
  %v427 = vld [vmem:[%s1 + $0x88] sm:$0xff]
  %v428 = vld [vmem:[%s1 + $0x90] sm:$0xff]
  %v429 = vld [vmem:[%s1 + $0x98] sm:$0xff]
  %v430 = vld [vmem:[%s1 + $0xa0] sm:$0xff]
  %v431 = vld [vmem:[%s1 + $0xa8] sm:$0xff]
  %v432 = vld [vmem:[%s1 + $0xb0] sm:$0xff]
  %v433 = vld [vmem:[%s1 + $0xb8] sm:$0xff]
  %v434 = vld [vmem:[%s1 + $0xc0] sm:$0xff]
  %v435 = vld [vmem:[%s1 + $0xc8] sm:$0xff]
  %v436 = vld [vmem:[%s1 + $0xd0] sm:$0xff]
  %v437 = vld [vmem:[%s1 + $0xd8] sm:$0xff]
  %v438 = vld [vmem:[%s1 + $0xe0] sm:$0xff]
  %v439 = vld [vmem:[%s1 + $0xe8] sm:$0xff]
  %v440 = vld [vmem:[%s1 + $0xf0] sm:$0xff]
  %v441 = vld [vmem:[%s1 + $0xf8] sm:$0xff]
  %v442 = vld [vmem:[%s1 + $0x100] sm:$0xff]
  %v443 = vld [vmem:[%s1 + $0x108] sm:$0xff]
  %v444 = vld [vmem:[%s1 + $0x110] sm:$0xff]
  %v445 = vld [vmem:[%s1 + $0x118] sm:$0xff]
  %v446 = vld [vmem:[%s1 + $0x120] sm:$0xff]
  %v447 = vld [vmem:[%s1 + $0x128] sm:$0xff]
  %v448 = vld [vmem:[%s1 + $0x130] sm:$0xff]
  %v449 = vld [vmem:[%s1 + $0x138] sm:$0xff]
  %v450 = vld [vmem:[%s1 + $0x140] sm:$0xff]
  %v451 = vld [vmem:[%s1 + $0x148] sm:$0xff]
  %v452 = vld [vmem:[%s1 + $0x150] sm:$0xff]
  %v453 = vld [vmem:[%s1 + $0x158] sm:$0xff]
  %v454 = vld [vmem:[%s1 + $0x160] sm:$0xff]
  %v455 = vld [vmem:[%s1 + $0x168] sm:$0xff]
  %v456 = vld [vmem:[%s1 + $0x170] sm:$0xff]
  %v457 = vld [vmem:[%s1 + $0x178] sm:$0xff]
  %v458 = vld [vmem:[%s1 + $0x180] sm:$0xff]
  %v459 = vld [vmem:[%s1 + $0x188] sm:$0xff]
  %v460 = vld [vmem:[%s1 + $0x190] sm:$0xff]
  %v461 = vld [vmem:[%s1 + $0x198] sm:$0xff]
  %v462 = vld [vmem:[%s1 + $0x1a0] sm:$0xff]
  %v463 = vld [vmem:[%s1 + $0x1a8] sm:$0xff]
  %v464 = vld [vmem:[%s1 + $0x1b0] sm:$0xff]
  %v465 = vld [vmem:[%s1 + $0x1b8] sm:$0xff]
  %v466 = vld [vmem:[%s1 + $0x1c0] sm:$0xff]
  %v467 = vld [vmem:[%s1 + $0x1c8] sm:$0xff]
  %v468 = vld [vmem:[%s1 + $0x1d0] sm:$0xff]
  %v469 = vld [vmem:[%s1 + $0x1d8] sm:$0xff]
  %v470 = vld [vmem:[%s1 + $0x1e0] sm:$0xff]
  %v471 = vld [vmem:[%s1 + $0x1e8] sm:$0xff]
  %v472 = vld [vmem:[%s1 + $0x1f0] sm:$0xff]
  %v473 = vld [vmem:[%s1 + $0x1f8] sm:$0xff]
  %474 = vmatpush.msra.mxu0 %v425
  %475 = vmatpush.msra.mxu0 %v424
  %476 = vmatpush.msra.mxu0 %v423
  %477 = vmatpush.msra.mxu0 %v422
  %478 = vmatpush.msra.mxu0 %v421
  %479 = vmatpush.msra.mxu0 %v420
  %480 = vmatpush.msra.mxu0 %v419
  %481 = vmatpush.msra.mxu0 %v418
  %482 = vmatpush.msra.mxu0 %v417
  %483 = vmatpush.msra.mxu0 %v416
  %484 = vmatpush.msra.mxu0 %v415
  %485 = vmatpush.msra.mxu0 %v414
  %486 = vmatpush.msra.mxu0 %v413
  %487 = vmatpush.msra.mxu0 %v412
  %488 = vmatpush.msra.mxu0 %v411
  %489 = vmatpush.msra.mxu0 %v410
  %490 = vmatmul.f32.gmra.mxu0 %v90
  %v491 = vpop.f32.mrf.mxu0
  %v492 = vadd.f32 0.0, %v491
  %493 = vmatmul.f32.gmra.mxu0 %v94
  %v494 = vpop.f32.mrf.mxu0
  %v495 = vadd.f32 0.0, %v494
  %496 = vmatmul.f32.gmra.mxu0 %v98
  %v497 = vpop.f32.mrf.mxu0
  %v498 = vadd.f32 0.0, %v497
  %499 = vmatmul.f32.gmra.mxu0 %v102
  %v500 = vpop.f32.mrf.mxu0
  %v501 = vadd.f32 0.0, %v500
  %502 = vmatmul.f32.gmra.mxu0 %v106
  %v503 = vpop.f32.mrf.mxu0
  %v504 = vadd.f32 0.0, %v503
  %505 = vmatmul.f32.gmra.mxu0 %v110
  %v506 = vpop.f32.mrf.mxu0
  %v507 = vadd.f32 0.0, %v506
  %508 = vmatmul.f32.gmra.mxu0 %v114
  %v509 = vpop.f32.mrf.mxu0
  %v510 = vadd.f32 0.0, %v509
  %511 = vmatmul.f32.gmra.mxu0 %v118
  %v512 = vpop.f32.mrf.mxu0
  %v513 = vadd.f32 0.0, %v512
  %514 = vmatmul.f32.gmra.mxu0 %v122
  %v515 = vpop.f32.mrf.mxu0
  %v516 = vadd.f32 0.0, %v515
  %517 = vmatmul.f32.gmra.mxu0 %v126
  %v518 = vpop.f32.mrf.mxu0
  %v519 = vadd.f32 0.0, %v518
  %520 = vmatmul.f32.gmra.mxu0 %v130
  %v521 = vpop.f32.mrf.mxu0
  %v522 = vadd.f32 0.0, %v521
  %523 = vmatmul.f32.gmra.mxu0 %v134
  %v524 = vpop.f32.mrf.mxu0
  %v525 = vadd.f32 0.0, %v524
  %526 = vmatmul.f32.gmra.mxu0 %v138
  %v527 = vpop.f32.mrf.mxu0
  %v528 = vadd.f32 0.0, %v527
  %529 = vmatmul.f32.gmra.mxu0 %v142
  %v530 = vpop.f32.mrf.mxu0
  %v531 = vadd.f32 0.0, %v530
  %532 = vmatmul.f32.gmra.mxu0 %v146
  %v533 = vpop.f32.mrf.mxu0
  %v534 = vadd.f32 0.0, %v533
  %535 = vmatmul.f32.gmra.mxu0 %v150
  %v536 = vpop.f32.mrf.mxu0
  %v537 = vadd.f32 0.0, %v536
  %538 = vmatmul.f32.gmra.mxu0 %v154
  %v539 = vpop.f32.mrf.mxu0
  %v540 = vadd.f32 0.0, %v539
  %541 = vmatmul.f32.gmra.mxu0 %v158
  %v542 = vpop.f32.mrf.mxu0
  %v543 = vadd.f32 0.0, %v542
  %544 = vmatmul.f32.gmra.mxu0 %v162
  %v545 = vpop.f32.mrf.mxu0
  %v546 = vadd.f32 0.0, %v545
  %547 = vmatmul.f32.gmra.mxu0 %v166
  %v548 = vpop.f32.mrf.mxu0
  %v549 = vadd.f32 0.0, %v548
  %550 = vmatmul.f32.gmra.mxu0 %v170
  %v551 = vpop.f32.mrf.mxu0
  %v552 = vadd.f32 0.0, %v551
  %553 = vmatmul.f32.gmra.mxu0 %v174
  %v554 = vpop.f32.mrf.mxu0
  %v555 = vadd.f32 0.0, %v554
  %556 = vmatmul.f32.gmra.mxu0 %v178
  %v557 = vpop.f32.mrf.mxu0
  %v558 = vadd.f32 0.0, %v557
  %559 = vmatmul.f32.gmra.mxu0 %v182
  %v560 = vpop.f32.mrf.mxu0
  %v561 = vadd.f32 0.0, %v560
  %562 = vmatmul.f32.gmra.mxu0 %v186
  %v563 = vpop.f32.mrf.mxu0
  %v564 = vadd.f32 0.0, %v563
  %565 = vmatmul.f32.gmra.mxu0 %v190
  %v566 = vpop.f32.mrf.mxu0
  %v567 = vadd.f32 0.0, %v566
  %568 = vmatmul.f32.gmra.mxu0 %v194
  %v569 = vpop.f32.mrf.mxu0
  %v570 = vadd.f32 0.0, %v569
  %571 = vmatmul.f32.gmra.mxu0 %v198
  %v572 = vpop.f32.mrf.mxu0
  %v573 = vadd.f32 0.0, %v572
  %574 = vmatmul.f32.gmra.mxu0 %v202
  %v575 = vpop.f32.mrf.mxu0
  %v576 = vadd.f32 0.0, %v575
  %577 = vmatmul.f32.gmra.mxu0 %v206
  %v578 = vpop.f32.mrf.mxu0
  %v579 = vadd.f32 0.0, %v578
  %580 = vmatmul.f32.gmra.mxu0 %v210
  %v581 = vpop.f32.mrf.mxu0
  %v582 = vadd.f32 0.0, %v581
  %583 = vmatmul.f32.gmra.mxu0 %v214
  %v584 = vpop.f32.mrf.mxu0
  %v585 = vadd.f32 0.0, %v584
  %586 = vmatmul.f32.gmra.mxu0 %v218
  %v587 = vpop.f32.mrf.mxu0
  %v588 = vadd.f32 0.0, %v587
  %589 = vmatmul.f32.gmra.mxu0 %v222
  %v590 = vpop.f32.mrf.mxu0
  %v591 = vadd.f32 0.0, %v590
  %592 = vmatmul.f32.gmra.mxu0 %v226
  %v593 = vpop.f32.mrf.mxu0
  %v594 = vadd.f32 0.0, %v593
  %595 = vmatmul.f32.gmra.mxu0 %v230
  %v596 = vpop.f32.mrf.mxu0
  %v597 = vadd.f32 0.0, %v596
  %598 = vmatmul.f32.gmra.mxu0 %v234
  %v599 = vpop.f32.mrf.mxu0
  %v600 = vadd.f32 0.0, %v599
  %601 = vmatmul.f32.gmra.mxu0 %v238
  %v602 = vpop.f32.mrf.mxu0
  %v603 = vadd.f32 0.0, %v602
  %604 = vmatmul.f32.gmra.mxu0 %v242
  %v605 = vpop.f32.mrf.mxu0
  %v606 = vadd.f32 0.0, %v605
  %607 = vmatmul.f32.gmra.mxu0 %v246
  %v608 = vpop.f32.mrf.mxu0
  %v609 = vadd.f32 0.0, %v608
  %610 = vmatmul.f32.gmra.mxu0 %v250
  %v611 = vpop.f32.mrf.mxu0
  %v612 = vadd.f32 0.0, %v611
  %613 = vmatmul.f32.gmra.mxu0 %v254
  %v614 = vpop.f32.mrf.mxu0
  %v615 = vadd.f32 0.0, %v614
  %616 = vmatmul.f32.gmra.mxu0 %v258
  %v617 = vpop.f32.mrf.mxu0
  %v618 = vadd.f32 0.0, %v617
  %619 = vmatmul.f32.gmra.mxu0 %v262
  %v620 = vpop.f32.mrf.mxu0
  %v621 = vadd.f32 0.0, %v620
  %622 = vmatmul.f32.gmra.mxu0 %v266
  %v623 = vpop.f32.mrf.mxu0
  %v624 = vadd.f32 0.0, %v623
  %625 = vmatmul.f32.gmra.mxu0 %v270
  %v626 = vpop.f32.mrf.mxu0
  %v627 = vadd.f32 0.0, %v626
  %628 = vmatmul.f32.gmra.mxu0 %v274
  %v629 = vpop.f32.mrf.mxu0
  %v630 = vadd.f32 0.0, %v629
  %631 = vmatmul.f32.gmra.mxu0 %v278
  %v632 = vpop.f32.mrf.mxu0
  %v633 = vadd.f32 0.0, %v632
  %634 = vmatmul.f32.gmra.mxu0 %v282
  %v635 = vpop.f32.mrf.mxu0
  %v636 = vadd.f32 0.0, %v635
  %637 = vmatmul.f32.gmra.mxu0 %v286
  %v638 = vpop.f32.mrf.mxu0
  %v639 = vadd.f32 0.0, %v638
  %640 = vmatmul.f32.gmra.mxu0 %v290
  %v641 = vpop.f32.mrf.mxu0
  %v642 = vadd.f32 0.0, %v641
  %643 = vmatmul.f32.gmra.mxu0 %v294
  %v644 = vpop.f32.mrf.mxu0
  %v645 = vadd.f32 0.0, %v644
  %646 = vmatmul.f32.gmra.mxu0 %v298
  %v647 = vpop.f32.mrf.mxu0
  %v648 = vadd.f32 0.0, %v647
  %649 = vmatmul.f32.gmra.mxu0 %v302
  %v650 = vpop.f32.mrf.mxu0
  %v651 = vadd.f32 0.0, %v650
  %652 = vmatmul.f32.gmra.mxu0 %v306
  %v653 = vpop.f32.mrf.mxu0
  %v654 = vadd.f32 0.0, %v653
  %655 = vmatmul.f32.gmra.mxu0 %v310
  %v656 = vpop.f32.mrf.mxu0
  %v657 = vadd.f32 0.0, %v656
  %658 = vmatmul.f32.gmra.mxu0 %v314
  %v659 = vpop.f32.mrf.mxu0
  %v660 = vadd.f32 0.0, %v659
  %661 = vmatmul.f32.gmra.mxu0 %v318
  %v662 = vpop.f32.mrf.mxu0
  %v663 = vadd.f32 0.0, %v662
  %664 = vmatmul.f32.gmra.mxu0 %v322
  %v665 = vpop.f32.mrf.mxu0
  %v666 = vadd.f32 0.0, %v665
  %667 = vmatmul.f32.gmra.mxu0 %v326
  %v668 = vpop.f32.mrf.mxu0
  %v669 = vadd.f32 0.0, %v668
  %670 = vmatmul.f32.gmra.mxu0 %v330
  %v671 = vpop.f32.mrf.mxu0
  %v672 = vadd.f32 0.0, %v671
  %673 = vmatmul.f32.gmra.mxu0 %v334
  %v674 = vpop.f32.mrf.mxu0
  %v675 = vadd.f32 0.0, %v674
  %676 = vmatmul.f32.gmra.mxu0 %v338
  %v677 = vpop.f32.mrf.mxu0
  %v678 = vadd.f32 0.0, %v677
  %679 = vmatmul.f32.gmra.mxu0 %v342
  %v680 = vpop.f32.mrf.mxu0
  %v681 = vadd.f32 0.0, %v680
  %682 = vdwg.mxu0
  %683 = vmatpush.msra.mxu0 %v441
  %684 = vmatpush.msra.mxu0 %v440
  %685 = vmatpush.msra.mxu0 %v439
  %686 = vmatpush.msra.mxu0 %v438
  %687 = vmatpush.msra.mxu0 %v437
  %688 = vmatpush.msra.mxu0 %v436
  %689 = vmatpush.msra.mxu0 %v435
  %690 = vmatpush.msra.mxu0 %v434
  %691 = vmatpush.msra.mxu0 %v433
  %692 = vmatpush.msra.mxu0 %v432
  %693 = vmatpush.msra.mxu0 %v431
  %694 = vmatpush.msra.mxu0 %v430
  %695 = vmatpush.msra.mxu0 %v429
  %696 = vmatpush.msra.mxu0 %v428
  %697 = vmatpush.msra.mxu0 %v427
  %698 = vmatpush.msra.mxu0 %v426
  %699 = vmatmul.f32.gmra.mxu0 %v91
  %v700 = vpop.f32.mrf.mxu0
  %v701 = vadd.f32 %v492, %v700
  %702 = vmatmul.f32.gmra.mxu0 %v95
  %v703 = vpop.f32.mrf.mxu0
  %v704 = vadd.f32 %v495, %v703
  %705 = vmatmul.f32.gmra.mxu0 %v99
  %v706 = vpop.f32.mrf.mxu0
  %v707 = vadd.f32 %v498, %v706
  %708 = vmatmul.f32.gmra.mxu0 %v103
  %v709 = vpop.f32.mrf.mxu0
  %v710 = vadd.f32 %v501, %v709
  %711 = vmatmul.f32.gmra.mxu0 %v107
  %v712 = vpop.f32.mrf.mxu0
  %v713 = vadd.f32 %v504, %v712
  %714 = vmatmul.f32.gmra.mxu0 %v111
  %v715 = vpop.f32.mrf.mxu0
  %v716 = vadd.f32 %v507, %v715
  %717 = vmatmul.f32.gmra.mxu0 %v115
  %v718 = vpop.f32.mrf.mxu0
  %v719 = vadd.f32 %v510, %v718
  %720 = vmatmul.f32.gmra.mxu0 %v119
  %v721 = vpop.f32.mrf.mxu0
  %v722 = vadd.f32 %v513, %v721
  %723 = vmatmul.f32.gmra.mxu0 %v123
  %v724 = vpop.f32.mrf.mxu0
  %v725 = vadd.f32 %v516, %v724
  %726 = vmatmul.f32.gmra.mxu0 %v127
  %v727 = vpop.f32.mrf.mxu0
  %v728 = vadd.f32 %v519, %v727
  %729 = vmatmul.f32.gmra.mxu0 %v131
  %v730 = vpop.f32.mrf.mxu0
  %v731 = vadd.f32 %v522, %v730
  %732 = vmatmul.f32.gmra.mxu0 %v135
  %v733 = vpop.f32.mrf.mxu0
  %v734 = vadd.f32 %v525, %v733
  %735 = vmatmul.f32.gmra.mxu0 %v139
  %v736 = vpop.f32.mrf.mxu0
  %v737 = vadd.f32 %v528, %v736
  %738 = vmatmul.f32.gmra.mxu0 %v143
  %v739 = vpop.f32.mrf.mxu0
  %v740 = vadd.f32 %v531, %v739
  %741 = vmatmul.f32.gmra.mxu0 %v147
  %v742 = vpop.f32.mrf.mxu0
  %v743 = vadd.f32 %v534, %v742
  %744 = vmatmul.f32.gmra.mxu0 %v151
  %v745 = vpop.f32.mrf.mxu0
  %v746 = vadd.f32 %v537, %v745
  %747 = vmatmul.f32.gmra.mxu0 %v155
  %v748 = vpop.f32.mrf.mxu0
  %v749 = vadd.f32 %v540, %v748
  %750 = vmatmul.f32.gmra.mxu0 %v159
  %v751 = vpop.f32.mrf.mxu0
  %v752 = vadd.f32 %v543, %v751
  %753 = vmatmul.f32.gmra.mxu0 %v163
  %v754 = vpop.f32.mrf.mxu0
  %v755 = vadd.f32 %v546, %v754
  %756 = vmatmul.f32.gmra.mxu0 %v167
  %v757 = vpop.f32.mrf.mxu0
  %v758 = vadd.f32 %v549, %v757
  %759 = vmatmul.f32.gmra.mxu0 %v171
  %v760 = vpop.f32.mrf.mxu0
  %v761 = vadd.f32 %v552, %v760
  %762 = vmatmul.f32.gmra.mxu0 %v175
  %v763 = vpop.f32.mrf.mxu0
  %v764 = vadd.f32 %v555, %v763
  %765 = vmatmul.f32.gmra.mxu0 %v179
  %v766 = vpop.f32.mrf.mxu0
  %v767 = vadd.f32 %v558, %v766
  %768 = vmatmul.f32.gmra.mxu0 %v183
  %v769 = vpop.f32.mrf.mxu0
  %v770 = vadd.f32 %v561, %v769
  %771 = vmatmul.f32.gmra.mxu0 %v187
  %v772 = vpop.f32.mrf.mxu0
  %v773 = vadd.f32 %v564, %v772
  %774 = vmatmul.f32.gmra.mxu0 %v191
  %v775 = vpop.f32.mrf.mxu0
  %v776 = vadd.f32 %v567, %v775
  %777 = vmatmul.f32.gmra.mxu0 %v195
  %v778 = vpop.f32.mrf.mxu0
  %v779 = vadd.f32 %v570, %v778
  %780 = vmatmul.f32.gmra.mxu0 %v199
  %v781 = vpop.f32.mrf.mxu0
  %v782 = vadd.f32 %v573, %v781
  %783 = vmatmul.f32.gmra.mxu0 %v203
  %v784 = vpop.f32.mrf.mxu0
  %v785 = vadd.f32 %v576, %v784
  %786 = vmatmul.f32.gmra.mxu0 %v207
  %v787 = vpop.f32.mrf.mxu0
  %v788 = vadd.f32 %v579, %v787
  %789 = vmatmul.f32.gmra.mxu0 %v211
  %v790 = vpop.f32.mrf.mxu0
  %v791 = vadd.f32 %v582, %v790
  %792 = vmatmul.f32.gmra.mxu0 %v215
  %v793 = vpop.f32.mrf.mxu0
  %v794 = vadd.f32 %v585, %v793
  %795 = vmatmul.f32.gmra.mxu0 %v219
  %v796 = vpop.f32.mrf.mxu0
  %v797 = vadd.f32 %v588, %v796
  %798 = vmatmul.f32.gmra.mxu0 %v223
  %v799 = vpop.f32.mrf.mxu0
  %v800 = vadd.f32 %v591, %v799
  %801 = vmatmul.f32.gmra.mxu0 %v227
  %v802 = vpop.f32.mrf.mxu0
  %v803 = vadd.f32 %v594, %v802
  %804 = vmatmul.f32.gmra.mxu0 %v231
  %v805 = vpop.f32.mrf.mxu0
  %v806 = vadd.f32 %v597, %v805
  %807 = vmatmul.f32.gmra.mxu0 %v235
  %v808 = vpop.f32.mrf.mxu0
  %v809 = vadd.f32 %v600, %v808
  %810 = vmatmul.f32.gmra.mxu0 %v239
  %v811 = vpop.f32.mrf.mxu0
  %v812 = vadd.f32 %v603, %v811
  %813 = vmatmul.f32.gmra.mxu0 %v243
  %v814 = vpop.f32.mrf.mxu0
  %v815 = vadd.f32 %v606, %v814
  %816 = vmatmul.f32.gmra.mxu0 %v247
  %v817 = vpop.f32.mrf.mxu0
  %v818 = vadd.f32 %v609, %v817
  %819 = vmatmul.f32.gmra.mxu0 %v251
  %v820 = vpop.f32.mrf.mxu0
  %v821 = vadd.f32 %v612, %v820
  %822 = vmatmul.f32.gmra.mxu0 %v255
  %v823 = vpop.f32.mrf.mxu0
  %v824 = vadd.f32 %v615, %v823
  %825 = vmatmul.f32.gmra.mxu0 %v259
  %v826 = vpop.f32.mrf.mxu0
  %v827 = vadd.f32 %v618, %v826
  %828 = vmatmul.f32.gmra.mxu0 %v263
  %v829 = vpop.f32.mrf.mxu0
  %v830 = vadd.f32 %v621, %v829
  %831 = vmatmul.f32.gmra.mxu0 %v267
  %v832 = vpop.f32.mrf.mxu0
  %v833 = vadd.f32 %v624, %v832
  %834 = vmatmul.f32.gmra.mxu0 %v271
  %v835 = vpop.f32.mrf.mxu0
  %v836 = vadd.f32 %v627, %v835
  %837 = vmatmul.f32.gmra.mxu0 %v275
  %v838 = vpop.f32.mrf.mxu0
  %v839 = vadd.f32 %v630, %v838
  %840 = vmatmul.f32.gmra.mxu0 %v279
  %v841 = vpop.f32.mrf.mxu0
  %v842 = vadd.f32 %v633, %v841
  %843 = vmatmul.f32.gmra.mxu0 %v283
  %v844 = vpop.f32.mrf.mxu0
  %v845 = vadd.f32 %v636, %v844
  %846 = vmatmul.f32.gmra.mxu0 %v287
  %v847 = vpop.f32.mrf.mxu0
  %v848 = vadd.f32 %v639, %v847
  %849 = vmatmul.f32.gmra.mxu0 %v291
  %v850 = vpop.f32.mrf.mxu0
  %v851 = vadd.f32 %v642, %v850
  %852 = vmatmul.f32.gmra.mxu0 %v295
  %v853 = vpop.f32.mrf.mxu0
  %v854 = vadd.f32 %v645, %v853
  %855 = vmatmul.f32.gmra.mxu0 %v299
  %v856 = vpop.f32.mrf.mxu0
  %v857 = vadd.f32 %v648, %v856
  %858 = vmatmul.f32.gmra.mxu0 %v303
  %v859 = vpop.f32.mrf.mxu0
  %v860 = vadd.f32 %v651, %v859
  %861 = vmatmul.f32.gmra.mxu0 %v307
  %v862 = vpop.f32.mrf.mxu0
  %v863 = vadd.f32 %v654, %v862
  %864 = vmatmul.f32.gmra.mxu0 %v311
  %v865 = vpop.f32.mrf.mxu0
  %v866 = vadd.f32 %v657, %v865
  %867 = vmatmul.f32.gmra.mxu0 %v315
  %v868 = vpop.f32.mrf.mxu0
  %v869 = vadd.f32 %v660, %v868
  %870 = vmatmul.f32.gmra.mxu0 %v319
  %v871 = vpop.f32.mrf.mxu0
  %v872 = vadd.f32 %v663, %v871
  %873 = vmatmul.f32.gmra.mxu0 %v323
  %v874 = vpop.f32.mrf.mxu0
  %v875 = vadd.f32 %v666, %v874
  %876 = vmatmul.f32.gmra.mxu0 %v327
  %v877 = vpop.f32.mrf.mxu0
  %v878 = vadd.f32 %v669, %v877
  %879 = vmatmul.f32.gmra.mxu0 %v331
  %v880 = vpop.f32.mrf.mxu0
  %v881 = vadd.f32 %v672, %v880
  %882 = vmatmul.f32.gmra.mxu0 %v335
  %v883 = vpop.f32.mrf.mxu0
  %v884 = vadd.f32 %v675, %v883
  %885 = vmatmul.f32.gmra.mxu0 %v339
  %v886 = vpop.f32.mrf.mxu0
  %v887 = vadd.f32 %v678, %v886
  %888 = vmatmul.f32.gmra.mxu0 %v343
  %v889 = vpop.f32.mrf.mxu0
  %v890 = vadd.f32 %v681, %v889
  %891 = vdwg.mxu0
  %892 = vmatpush.msra.mxu0 %v457
  %893 = vmatpush.msra.mxu0 %v456
  %894 = vmatpush.msra.mxu0 %v455
  %895 = vmatpush.msra.mxu0 %v454
  %896 = vmatpush.msra.mxu0 %v453
  %897 = vmatpush.msra.mxu0 %v452
  %898 = vmatpush.msra.mxu0 %v451
  %899 = vmatpush.msra.mxu0 %v450
  %900 = vmatpush.msra.mxu0 %v449
  %901 = vmatpush.msra.mxu0 %v448
  %902 = vmatpush.msra.mxu0 %v447
  %903 = vmatpush.msra.mxu0 %v446
  %904 = vmatpush.msra.mxu0 %v445
  %905 = vmatpush.msra.mxu0 %v444
  %906 = vmatpush.msra.mxu0 %v443
  %907 = vmatpush.msra.mxu0 %v442
  %908 = vmatmul.f32.gmra.mxu0 %v92
  %v909 = vpop.f32.mrf.mxu0
  %v910 = vadd.f32 %v701, %v909
  %911 = vmatmul.f32.gmra.mxu0 %v96
  %v912 = vpop.f32.mrf.mxu0
  %v913 = vadd.f32 %v704, %v912
  %914 = vmatmul.f32.gmra.mxu0 %v100
  %v915 = vpop.f32.mrf.mxu0
  %v916 = vadd.f32 %v707, %v915
  %917 = vmatmul.f32.gmra.mxu0 %v104
  %v918 = vpop.f32.mrf.mxu0
  %v919 = vadd.f32 %v710, %v918
  %920 = vmatmul.f32.gmra.mxu0 %v108
  %v921 = vpop.f32.mrf.mxu0
  %v922 = vadd.f32 %v713, %v921
  %923 = vmatmul.f32.gmra.mxu0 %v112
  %v924 = vpop.f32.mrf.mxu0
  %v925 = vadd.f32 %v716, %v924
  %926 = vmatmul.f32.gmra.mxu0 %v116
  %v927 = vpop.f32.mrf.mxu0
  %v928 = vadd.f32 %v719, %v927
  %929 = vmatmul.f32.gmra.mxu0 %v120
  %v930 = vpop.f32.mrf.mxu0
  %v931 = vadd.f32 %v722, %v930
  %932 = vmatmul.f32.gmra.mxu0 %v124
  %v933 = vpop.f32.mrf.mxu0
  %v934 = vadd.f32 %v725, %v933
  %935 = vmatmul.f32.gmra.mxu0 %v128
  %v936 = vpop.f32.mrf.mxu0
  %v937 = vadd.f32 %v728, %v936
  %938 = vmatmul.f32.gmra.mxu0 %v132
  %v939 = vpop.f32.mrf.mxu0
  %v940 = vadd.f32 %v731, %v939
  %941 = vmatmul.f32.gmra.mxu0 %v136
  %v942 = vpop.f32.mrf.mxu0
  %v943 = vadd.f32 %v734, %v942
  %944 = vmatmul.f32.gmra.mxu0 %v140
  %v945 = vpop.f32.mrf.mxu0
  %v946 = vadd.f32 %v737, %v945
  %947 = vmatmul.f32.gmra.mxu0 %v144
  %v948 = vpop.f32.mrf.mxu0
  %v949 = vadd.f32 %v740, %v948
  %950 = vmatmul.f32.gmra.mxu0 %v148
  %v951 = vpop.f32.mrf.mxu0
  %v952 = vadd.f32 %v743, %v951
  %953 = vmatmul.f32.gmra.mxu0 %v152
  %v954 = vpop.f32.mrf.mxu0
  %v955 = vadd.f32 %v746, %v954
  %956 = vmatmul.f32.gmra.mxu0 %v156
  %v957 = vpop.f32.mrf.mxu0
  %v958 = vadd.f32 %v749, %v957
  %959 = vmatmul.f32.gmra.mxu0 %v160
  %v960 = vpop.f32.mrf.mxu0
  %v961 = vadd.f32 %v752, %v960
  %962 = vmatmul.f32.gmra.mxu0 %v164
  %v963 = vpop.f32.mrf.mxu0
  %v964 = vadd.f32 %v755, %v963
  %965 = vmatmul.f32.gmra.mxu0 %v168
  %v966 = vpop.f32.mrf.mxu0
  %v967 = vadd.f32 %v758, %v966
  %968 = vmatmul.f32.gmra.mxu0 %v172
  %v969 = vpop.f32.mrf.mxu0
  %v970 = vadd.f32 %v761, %v969
  %971 = vmatmul.f32.gmra.mxu0 %v176
  %v972 = vpop.f32.mrf.mxu0
  %v973 = vadd.f32 %v764, %v972
  %974 = vmatmul.f32.gmra.mxu0 %v180
  %v975 = vpop.f32.mrf.mxu0
  %v976 = vadd.f32 %v767, %v975
  %977 = vmatmul.f32.gmra.mxu0 %v184
  %v978 = vpop.f32.mrf.mxu0
  %v979 = vadd.f32 %v770, %v978
  %980 = vmatmul.f32.gmra.mxu0 %v188
  %v981 = vpop.f32.mrf.mxu0
  %v982 = vadd.f32 %v773, %v981
  %983 = vmatmul.f32.gmra.mxu0 %v192
  %v984 = vpop.f32.mrf.mxu0
  %v985 = vadd.f32 %v776, %v984
  %986 = vmatmul.f32.gmra.mxu0 %v196
  %v987 = vpop.f32.mrf.mxu0
  %v988 = vadd.f32 %v779, %v987
  %989 = vmatmul.f32.gmra.mxu0 %v200
  %v990 = vpop.f32.mrf.mxu0
  %v991 = vadd.f32 %v782, %v990
  %992 = vmatmul.f32.gmra.mxu0 %v204
  %v993 = vpop.f32.mrf.mxu0
  %v994 = vadd.f32 %v785, %v993
  %995 = vmatmul.f32.gmra.mxu0 %v208
  %v996 = vpop.f32.mrf.mxu0
  %v997 = vadd.f32 %v788, %v996
  %998 = vmatmul.f32.gmra.mxu0 %v212
  %v999 = vpop.f32.mrf.mxu0
  %v1000 = vadd.f32 %v791, %v999
  %1001 = vmatmul.f32.gmra.mxu0 %v216
  %v1002 = vpop.f32.mrf.mxu0
  %v1003 = vadd.f32 %v794, %v1002
  %1004 = vmatmul.f32.gmra.mxu0 %v220
  %v1005 = vpop.f32.mrf.mxu0
  %v1006 = vadd.f32 %v797, %v1005
  %1007 = vmatmul.f32.gmra.mxu0 %v224
  %v1008 = vpop.f32.mrf.mxu0
  %v1009 = vadd.f32 %v800, %v1008
  %1010 = vmatmul.f32.gmra.mxu0 %v228
  %v1011 = vpop.f32.mrf.mxu0
  %v1012 = vadd.f32 %v803, %v1011
  %1013 = vmatmul.f32.gmra.mxu0 %v232
  %v1014 = vpop.f32.mrf.mxu0
  %v1015 = vadd.f32 %v806, %v1014
  %1016 = vmatmul.f32.gmra.mxu0 %v236
  %v1017 = vpop.f32.mrf.mxu0
  %v1018 = vadd.f32 %v809, %v1017
  %1019 = vmatmul.f32.gmra.mxu0 %v240
  %v1020 = vpop.f32.mrf.mxu0
  %v1021 = vadd.f32 %v812, %v1020
  %1022 = vmatmul.f32.gmra.mxu0 %v244
  %v1023 = vpop.f32.mrf.mxu0
  %v1024 = vadd.f32 %v815, %v1023
  %1025 = vmatmul.f32.gmra.mxu0 %v248
  %v1026 = vpop.f32.mrf.mxu0
  %v1027 = vadd.f32 %v818, %v1026
  %1028 = vmatmul.f32.gmra.mxu0 %v252
  %v1029 = vpop.f32.mrf.mxu0
  %v1030 = vadd.f32 %v821, %v1029
  %1031 = vmatmul.f32.gmra.mxu0 %v256
  %v1032 = vpop.f32.mrf.mxu0
  %v1033 = vadd.f32 %v824, %v1032
  %1034 = vmatmul.f32.gmra.mxu0 %v260
  %v1035 = vpop.f32.mrf.mxu0
  %v1036 = vadd.f32 %v827, %v1035
  %1037 = vmatmul.f32.gmra.mxu0 %v264
  %v1038 = vpop.f32.mrf.mxu0
  %v1039 = vadd.f32 %v830, %v1038
  %1040 = vmatmul.f32.gmra.mxu0 %v268
  %v1041 = vpop.f32.mrf.mxu0
  %v1042 = vadd.f32 %v833, %v1041
  %1043 = vmatmul.f32.gmra.mxu0 %v272
  %v1044 = vpop.f32.mrf.mxu0
  %v1045 = vadd.f32 %v836, %v1044
  %1046 = vmatmul.f32.gmra.mxu0 %v276
  %v1047 = vpop.f32.mrf.mxu0
  %v1048 = vadd.f32 %v839, %v1047
  %1049 = vmatmul.f32.gmra.mxu0 %v280
  %v1050 = vpop.f32.mrf.mxu0
  %v1051 = vadd.f32 %v842, %v1050
  %1052 = vmatmul.f32.gmra.mxu0 %v284
  %v1053 = vpop.f32.mrf.mxu0
  %v1054 = vadd.f32 %v845, %v1053
  %1055 = vmatmul.f32.gmra.mxu0 %v288
  %v1056 = vpop.f32.mrf.mxu0
  %v1057 = vadd.f32 %v848, %v1056
  %1058 = vmatmul.f32.gmra.mxu0 %v292
  %v1059 = vpop.f32.mrf.mxu0
  %v1060 = vadd.f32 %v851, %v1059
  %1061 = vmatmul.f32.gmra.mxu0 %v296
  %v1062 = vpop.f32.mrf.mxu0
  %v1063 = vadd.f32 %v854, %v1062
  %1064 = vmatmul.f32.gmra.mxu0 %v300
  %v1065 = vpop.f32.mrf.mxu0
  %v1066 = vadd.f32 %v857, %v1065
  %1067 = vmatmul.f32.gmra.mxu0 %v304
  %v1068 = vpop.f32.mrf.mxu0
  %v1069 = vadd.f32 %v860, %v1068
  %1070 = vmatmul.f32.gmra.mxu0 %v308
  %v1071 = vpop.f32.mrf.mxu0
  %v1072 = vadd.f32 %v863, %v1071
  %1073 = vmatmul.f32.gmra.mxu0 %v312
  %v1074 = vpop.f32.mrf.mxu0
  %v1075 = vadd.f32 %v866, %v1074
  %1076 = vmatmul.f32.gmra.mxu0 %v316
  %v1077 = vpop.f32.mrf.mxu0
  %v1078 = vadd.f32 %v869, %v1077
  %1079 = vmatmul.f32.gmra.mxu0 %v320
  %v1080 = vpop.f32.mrf.mxu0
  %v1081 = vadd.f32 %v872, %v1080
  %1082 = vmatmul.f32.gmra.mxu0 %v324
  %v1083 = vpop.f32.mrf.mxu0
  %v1084 = vadd.f32 %v875, %v1083
  %1085 = vmatmul.f32.gmra.mxu0 %v328
  %v1086 = vpop.f32.mrf.mxu0
  %v1087 = vadd.f32 %v878, %v1086
  %1088 = vmatmul.f32.gmra.mxu0 %v332
  %v1089 = vpop.f32.mrf.mxu0
  %v1090 = vadd.f32 %v881, %v1089
  %1091 = vmatmul.f32.gmra.mxu0 %v336
  %v1092 = vpop.f32.mrf.mxu0
  %v1093 = vadd.f32 %v884, %v1092
  %1094 = vmatmul.f32.gmra.mxu0 %v340
  %v1095 = vpop.f32.mrf.mxu0
  %v1096 = vadd.f32 %v887, %v1095
  %1097 = vmatmul.f32.gmra.mxu0 %v344
  %v1098 = vpop.f32.mrf.mxu0
  %v1099 = vadd.f32 %v890, %v1098
  %1100 = vdwg.mxu0
  %1101 = vmatpush.msra.mxu0 %v473
  %1102 = vmatpush.msra.mxu0 %v472
  %1103 = vmatpush.msra.mxu0 %v471
  %1104 = vmatpush.msra.mxu0 %v470
  %1105 = vmatpush.msra.mxu0 %v469
  %1106 = vmatpush.msra.mxu0 %v468
  %1107 = vmatpush.msra.mxu0 %v467
  %1108 = vmatpush.msra.mxu0 %v466
  %1109 = vmatpush.msra.mxu0 %v465
  %1110 = vmatpush.msra.mxu0 %v464
  %1111 = vmatpush.msra.mxu0 %v463
  %1112 = vmatpush.msra.mxu0 %v462
  %1113 = vmatpush.msra.mxu0 %v461
  %1114 = vmatpush.msra.mxu0 %v460
  %1115 = vmatpush.msra.mxu0 %v459
  %1116 = vmatpush.msra.mxu0 %v458
  %1117 = vmatmul.f32.gmra.mxu0 %v93
  %v1118 = vpop.f32.mrf.mxu0
  %v1119 = vadd.f32 %v910, %v1118
  %1120 = vmatmul.f32.gmra.mxu0 %v97
  %v1121 = vpop.f32.mrf.mxu0
  %v1122 = vadd.f32 %v913, %v1121
  %1123 = vmatmul.f32.gmra.mxu0 %v101
  %v1124 = vpop.f32.mrf.mxu0
  %v1125 = vadd.f32 %v916, %v1124
  %1126 = vmatmul.f32.gmra.mxu0 %v105
  %v1127 = vpop.f32.mrf.mxu0
  %v1128 = vadd.f32 %v919, %v1127
  %1129 = vmatmul.f32.gmra.mxu0 %v109
  %v1130 = vpop.f32.mrf.mxu0
  %v1131 = vadd.f32 %v922, %v1130
  %1132 = vmatmul.f32.gmra.mxu0 %v113
  %v1133 = vpop.f32.mrf.mxu0
  %v1134 = vadd.f32 %v925, %v1133
  %1135 = vmatmul.f32.gmra.mxu0 %v117
  %v1136 = vpop.f32.mrf.mxu0
  %v1137 = vadd.f32 %v928, %v1136
  %1138 = vmatmul.f32.gmra.mxu0 %v121
  %v1139 = vpop.f32.mrf.mxu0
  %v1140 = vadd.f32 %v931, %v1139
  %1141 = vmatmul.f32.gmra.mxu0 %v125
  %v1142 = vpop.f32.mrf.mxu0
  %v1143 = vadd.f32 %v934, %v1142
  %1144 = vmatmul.f32.gmra.mxu0 %v129
  %v1145 = vpop.f32.mrf.mxu0
  %v1146 = vadd.f32 %v937, %v1145
  %1147 = vmatmul.f32.gmra.mxu0 %v133
  %v1148 = vpop.f32.mrf.mxu0
  %v1149 = vadd.f32 %v940, %v1148
  %1150 = vmatmul.f32.gmra.mxu0 %v137
  %v1151 = vpop.f32.mrf.mxu0
  %v1152 = vadd.f32 %v943, %v1151
  %1153 = vmatmul.f32.gmra.mxu0 %v141
  %v1154 = vpop.f32.mrf.mxu0
  %v1155 = vadd.f32 %v946, %v1154
  %1156 = vmatmul.f32.gmra.mxu0 %v145
  %v1157 = vpop.f32.mrf.mxu0
  %v1158 = vadd.f32 %v949, %v1157
  %1159 = vmatmul.f32.gmra.mxu0 %v149
  %v1160 = vpop.f32.mrf.mxu0
  %v1161 = vadd.f32 %v952, %v1160
  %1162 = vmatmul.f32.gmra.mxu0 %v153
  %v1163 = vpop.f32.mrf.mxu0
  %v1164 = vadd.f32 %v955, %v1163
  %1165 = vmatmul.f32.gmra.mxu0 %v157
  %v1166 = vpop.f32.mrf.mxu0
  %v1167 = vadd.f32 %v958, %v1166
  %1168 = vmatmul.f32.gmra.mxu0 %v161
  %v1169 = vpop.f32.mrf.mxu0
  %v1170 = vadd.f32 %v961, %v1169
  %1171 = vmatmul.f32.gmra.mxu0 %v165
  %v1172 = vpop.f32.mrf.mxu0
  %v1173 = vadd.f32 %v964, %v1172
  %1174 = vmatmul.f32.gmra.mxu0 %v169
  %v1175 = vpop.f32.mrf.mxu0
  %v1176 = vadd.f32 %v967, %v1175
  %1177 = vmatmul.f32.gmra.mxu0 %v173
  %v1178 = vpop.f32.mrf.mxu0
  %v1179 = vadd.f32 %v970, %v1178
  %1180 = vmatmul.f32.gmra.mxu0 %v177
  %v1181 = vpop.f32.mrf.mxu0
  %v1182 = vadd.f32 %v973, %v1181
  %1183 = vmatmul.f32.gmra.mxu0 %v181
  %v1184 = vpop.f32.mrf.mxu0
  %v1185 = vadd.f32 %v976, %v1184
  %1186 = vmatmul.f32.gmra.mxu0 %v185
  %v1187 = vpop.f32.mrf.mxu0
  %v1188 = vadd.f32 %v979, %v1187
  %1189 = vmatmul.f32.gmra.mxu0 %v189
  %v1190 = vpop.f32.mrf.mxu0
  %v1191 = vadd.f32 %v982, %v1190
  %1192 = vmatmul.f32.gmra.mxu0 %v193
  %v1193 = vpop.f32.mrf.mxu0
  %v1194 = vadd.f32 %v985, %v1193
  %1195 = vmatmul.f32.gmra.mxu0 %v197
  %v1196 = vpop.f32.mrf.mxu0
  %v1197 = vadd.f32 %v988, %v1196
  %1198 = vmatmul.f32.gmra.mxu0 %v201
  %v1199 = vpop.f32.mrf.mxu0
  %v1200 = vadd.f32 %v991, %v1199
  %1201 = vmatmul.f32.gmra.mxu0 %v205
  %v1202 = vpop.f32.mrf.mxu0
  %v1203 = vadd.f32 %v994, %v1202
  %1204 = vmatmul.f32.gmra.mxu0 %v209
  %v1205 = vpop.f32.mrf.mxu0
  %v1206 = vadd.f32 %v997, %v1205
  %1207 = vmatmul.f32.gmra.mxu0 %v213
  %v1208 = vpop.f32.mrf.mxu0
  %v1209 = vadd.f32 %v1000, %v1208
  %1210 = vmatmul.f32.gmra.mxu0 %v217
  %v1211 = vpop.f32.mrf.mxu0
  %v1212 = vadd.f32 %v1003, %v1211
  %1213 = vmatmul.f32.gmra.mxu0 %v221
  %v1214 = vpop.f32.mrf.mxu0
  %v1215 = vadd.f32 %v1006, %v1214
  %1216 = vmatmul.f32.gmra.mxu0 %v225
  %v1217 = vpop.f32.mrf.mxu0
  %v1218 = vadd.f32 %v1009, %v1217
  %1219 = vmatmul.f32.gmra.mxu0 %v229
  %v1220 = vpop.f32.mrf.mxu0
  %v1221 = vadd.f32 %v1012, %v1220
  %1222 = vmatmul.f32.gmra.mxu0 %v233
  %v1223 = vpop.f32.mrf.mxu0
  %v1224 = vadd.f32 %v1015, %v1223
  %1225 = vmatmul.f32.gmra.mxu0 %v237
  %v1226 = vpop.f32.mrf.mxu0
  %v1227 = vadd.f32 %v1018, %v1226
  %1228 = vmatmul.f32.gmra.mxu0 %v241
  %v1229 = vpop.f32.mrf.mxu0
  %v1230 = vadd.f32 %v1021, %v1229
  %1231 = vmatmul.f32.gmra.mxu0 %v245
  %v1232 = vpop.f32.mrf.mxu0
  %v1233 = vadd.f32 %v1024, %v1232
  %1234 = vmatmul.f32.gmra.mxu0 %v249
  %v1235 = vpop.f32.mrf.mxu0
  %v1236 = vadd.f32 %v1027, %v1235
  %1237 = vmatmul.f32.gmra.mxu0 %v253
  %v1238 = vpop.f32.mrf.mxu0
  %v1239 = vadd.f32 %v1030, %v1238
  %1240 = vmatmul.f32.gmra.mxu0 %v257
  %v1241 = vpop.f32.mrf.mxu0
  %v1242 = vadd.f32 %v1033, %v1241
  %1243 = vmatmul.f32.gmra.mxu0 %v261
  %v1244 = vpop.f32.mrf.mxu0
  %v1245 = vadd.f32 %v1036, %v1244
  %1246 = vmatmul.f32.gmra.mxu0 %v265
  %v1247 = vpop.f32.mrf.mxu0
  %v1248 = vadd.f32 %v1039, %v1247
  %1249 = vmatmul.f32.gmra.mxu0 %v269
  %v1250 = vpop.f32.mrf.mxu0
  %v1251 = vadd.f32 %v1042, %v1250
  %1252 = vmatmul.f32.gmra.mxu0 %v273
  %v1253 = vpop.f32.mrf.mxu0
  %v1254 = vadd.f32 %v1045, %v1253
  %1255 = vmatmul.f32.gmra.mxu0 %v277
  %v1256 = vpop.f32.mrf.mxu0
  %v1257 = vadd.f32 %v1048, %v1256
  %1258 = vmatmul.f32.gmra.mxu0 %v281
  %v1259 = vpop.f32.mrf.mxu0
  %v1260 = vadd.f32 %v1051, %v1259
  %1261 = vmatmul.f32.gmra.mxu0 %v285
  %v1262 = vpop.f32.mrf.mxu0
  %v1263 = vadd.f32 %v1054, %v1262
  %1264 = vmatmul.f32.gmra.mxu0 %v289
  %v1265 = vpop.f32.mrf.mxu0
  %v1266 = vadd.f32 %v1057, %v1265
  %1267 = vmatmul.f32.gmra.mxu0 %v293
  %v1268 = vpop.f32.mrf.mxu0
  %v1269 = vadd.f32 %v1060, %v1268
  %1270 = vmatmul.f32.gmra.mxu0 %v297
  %v1271 = vpop.f32.mrf.mxu0
  %v1272 = vadd.f32 %v1063, %v1271
  %1273 = vmatmul.f32.gmra.mxu0 %v301
  %v1274 = vpop.f32.mrf.mxu0
  %v1275 = vadd.f32 %v1066, %v1274
  %1276 = vmatmul.f32.gmra.mxu0 %v305
  %v1277 = vpop.f32.mrf.mxu0
  %v1278 = vadd.f32 %v1069, %v1277
  %1279 = vmatmul.f32.gmra.mxu0 %v309
  %v1280 = vpop.f32.mrf.mxu0
  %v1281 = vadd.f32 %v1072, %v1280
  %1282 = vmatmul.f32.gmra.mxu0 %v313
  %v1283 = vpop.f32.mrf.mxu0
  %v1284 = vadd.f32 %v1075, %v1283
  %1285 = vmatmul.f32.gmra.mxu0 %v317
  %v1286 = vpop.f32.mrf.mxu0
  %v1287 = vadd.f32 %v1078, %v1286
  %1288 = vmatmul.f32.gmra.mxu0 %v321
  %v1289 = vpop.f32.mrf.mxu0
  %v1290 = vadd.f32 %v1081, %v1289
  %1291 = vmatmul.f32.gmra.mxu0 %v325
  %v1292 = vpop.f32.mrf.mxu0
  %v1293 = vadd.f32 %v1084, %v1292
  %1294 = vmatmul.f32.gmra.mxu0 %v329
  %v1295 = vpop.f32.mrf.mxu0
  %v1296 = vadd.f32 %v1087, %v1295
  %1297 = vmatmul.f32.gmra.mxu0 %v333
  %v1298 = vpop.f32.mrf.mxu0
  %v1299 = vadd.f32 %v1090, %v1298
  %1300 = vmatmul.f32.gmra.mxu0 %v337
  %v1301 = vpop.f32.mrf.mxu0
  %v1302 = vadd.f32 %v1093, %v1301
  %1303 = vmatmul.f32.gmra.mxu0 %v341
  %v1304 = vpop.f32.mrf.mxu0
  %v1305 = vadd.f32 %v1096, %v1304
  %1306 = vmatmul.f32.gmra.mxu0 %v345
  %v1307 = vpop.f32.mrf.mxu0
  %v1308 = vadd.f32 %v1099, %v1307
  %1309 = vdwg.mxu0
  %v1310 = vadd.f32 %v346, %v1119
  %v1311 = vadd.f32 %v347, %v1122
  %v1312 = vadd.f32 %v348, %v1125
  %v1313 = vadd.f32 %v349, %v1128
  %v1314 = vadd.f32 %v350, %v1131
  %v1315 = vadd.f32 %v351, %v1134
  %v1316 = vadd.f32 %v352, %v1137
  %v1317 = vadd.f32 %v353, %v1140
  %v1318 = vadd.f32 %v354, %v1143
  %v1319 = vadd.f32 %v355, %v1146
  %v1320 = vadd.f32 %v356, %v1149
  %v1321 = vadd.f32 %v357, %v1152
  %v1322 = vadd.f32 %v358, %v1155
  %v1323 = vadd.f32 %v359, %v1158
  %v1324 = vadd.f32 %v360, %v1161
  %v1325 = vadd.f32 %v361, %v1164
  %v1326 = vadd.f32 %v362, %v1167
  %v1327 = vadd.f32 %v363, %v1170
  %v1328 = vadd.f32 %v364, %v1173
  %v1329 = vadd.f32 %v365, %v1176
  %v1330 = vadd.f32 %v366, %v1179
  %v1331 = vadd.f32 %v367, %v1182
  %v1332 = vadd.f32 %v368, %v1185
  %v1333 = vadd.f32 %v369, %v1188
  %v1334 = vadd.f32 %v370, %v1191
  %v1335 = vadd.f32 %v371, %v1194
  %v1336 = vadd.f32 %v372, %v1197
  %v1337 = vadd.f32 %v373, %v1200
  %v1338 = vadd.f32 %v374, %v1203
  %v1339 = vadd.f32 %v375, %v1206
  %v1340 = vadd.f32 %v376, %v1209
  %v1341 = vadd.f32 %v377, %v1212
  %v1342 = vadd.f32 %v378, %v1215
  %v1343 = vadd.f32 %v379, %v1218
  %v1344 = vadd.f32 %v380, %v1221
  %v1345 = vadd.f32 %v381, %v1224
  %v1346 = vadd.f32 %v382, %v1227
  %v1347 = vadd.f32 %v383, %v1230
  %v1348 = vadd.f32 %v384, %v1233
  %v1349 = vadd.f32 %v385, %v1236
  %v1350 = vadd.f32 %v386, %v1239
  %v1351 = vadd.f32 %v387, %v1242
  %v1352 = vadd.f32 %v388, %v1245
  %v1353 = vadd.f32 %v389, %v1248
  %v1354 = vadd.f32 %v390, %v1251
  %v1355 = vadd.f32 %v391, %v1254
  %v1356 = vadd.f32 %v392, %v1257
  %v1357 = vadd.f32 %v393, %v1260
  %v1358 = vadd.f32 %v394, %v1263
  %v1359 = vadd.f32 %v395, %v1266
  %v1360 = vadd.f32 %v396, %v1269
  %v1361 = vadd.f32 %v397, %v1272
  %v1362 = vadd.f32 %v398, %v1275
  %v1363 = vadd.f32 %v399, %v1278
  %v1364 = vadd.f32 %v400, %v1281
  %v1365 = vadd.f32 %v401, %v1284
  %v1366 = vadd.f32 %v402, %v1287
  %v1367 = vadd.f32 %v403, %v1290
  %v1368 = vadd.f32 %v404, %v1293
  %v1369 = vadd.f32 %v405, %v1296
  %v1370 = vadd.f32 %v406, %v1299
  %v1371 = vadd.f32 %v407, %v1302
  %v1372 = vadd.f32 %v408, %v1305
  %v1373 = vadd.f32 %v409, %v1308
  %vm1374 = vcmask 130048
  %1375 = vst.msk [vmem:[%s5] sm:$0xff] %vm1374, %v1310
  %1376 = vst.msk [vmem:[%s5 + $0x8] sm:$0xff] %vm1374, %v1311
  %1377 = vst.msk [vmem:[%s5 + $0x10] sm:$0xff] %vm1374, %v1312
  %1378 = vst.msk [vmem:[%s5 + $0x18] sm:$0xff] %vm1374, %v1313
  %1379 = vst.msk [vmem:[%s5 + $0x20] sm:$0xff] %vm1374, %v1314
  %1380 = vst.msk [vmem:[%s5 + $0x28] sm:$0xff] %vm1374, %v1315
  %1381 = vst.msk [vmem:[%s5 + $0x30] sm:$0xff] %vm1374, %v1316
  %1382 = vst.msk [vmem:[%s5 + $0x38] sm:$0xff] %vm1374, %v1317
  %1383 = vst.msk [vmem:[%s5 + $0x40] sm:$0xff] %vm1374, %v1318
  %1384 = vst.msk [vmem:[%s5 + $0x48] sm:$0xff] %vm1374, %v1319
  %1385 = vst.msk [vmem:[%s5 + $0x50] sm:$0xff] %vm1374, %v1320
  %1386 = vst.msk [vmem:[%s5 + $0x58] sm:$0xff] %vm1374, %v1321
  %1387 = vst.msk [vmem:[%s5 + $0x60] sm:$0xff] %vm1374, %v1322
  %1388 = vst.msk [vmem:[%s5 + $0x68] sm:$0xff] %vm1374, %v1323
  %1389 = vst.msk [vmem:[%s5 + $0x70] sm:$0xff] %vm1374, %v1324
  %1390 = vst.msk [vmem:[%s5 + $0x78] sm:$0xff] %vm1374, %v1325
  %1391 = vst.msk [vmem:[%s5 + $0x80] sm:$0xff] %vm1374, %v1326
  %1392 = vst.msk [vmem:[%s5 + $0x88] sm:$0xff] %vm1374, %v1327
  %1393 = vst.msk [vmem:[%s5 + $0x90] sm:$0xff] %vm1374, %v1328
  %1394 = vst.msk [vmem:[%s5 + $0x98] sm:$0xff] %vm1374, %v1329
  %1395 = vst.msk [vmem:[%s5 + $0xa0] sm:$0xff] %vm1374, %v1330
  %1396 = vst.msk [vmem:[%s5 + $0xa8] sm:$0xff] %vm1374, %v1331
  %1397 = vst.msk [vmem:[%s5 + $0xb0] sm:$0xff] %vm1374, %v1332
  %1398 = vst.msk [vmem:[%s5 + $0xb8] sm:$0xff] %vm1374, %v1333
  %1399 = vst.msk [vmem:[%s5 + $0xc0] sm:$0xff] %vm1374, %v1334
  %1400 = vst.msk [vmem:[%s5 + $0xc8] sm:$0xff] %vm1374, %v1335
  %1401 = vst.msk [vmem:[%s5 + $0xd0] sm:$0xff] %vm1374, %v1336
  %1402 = vst.msk [vmem:[%s5 + $0xd8] sm:$0xff] %vm1374, %v1337
  %1403 = vst.msk [vmem:[%s5 + $0xe0] sm:$0xff] %vm1374, %v1338
  %1404 = vst.msk [vmem:[%s5 + $0xe8] sm:$0xff] %vm1374, %v1339
  %1405 = vst.msk [vmem:[%s5 + $0xf0] sm:$0xff] %vm1374, %v1340
  %1406 = vst.msk [vmem:[%s5 + $0xf8] sm:$0xff] %vm1374, %v1341
  %1407 = vst.msk [vmem:[%s5 + $0x100] sm:$0xff] %vm1374, %v1342
  %1408 = vst.msk [vmem:[%s5 + $0x108] sm:$0xff] %vm1374, %v1343
  %1409 = vst.msk [vmem:[%s5 + $0x110] sm:$0xff] %vm1374, %v1344
  %1410 = vst.msk [vmem:[%s5 + $0x118] sm:$0xff] %vm1374, %v1345
  %1411 = vst.msk [vmem:[%s5 + $0x120] sm:$0xff] %vm1374, %v1346
  %1412 = vst.msk [vmem:[%s5 + $0x128] sm:$0xff] %vm1374, %v1347
  %1413 = vst.msk [vmem:[%s5 + $0x130] sm:$0xff] %vm1374, %v1348
  %1414 = vst.msk [vmem:[%s5 + $0x138] sm:$0xff] %vm1374, %v1349
  %1415 = vst.msk [vmem:[%s5 + $0x140] sm:$0xff] %vm1374, %v1350
  %1416 = vst.msk [vmem:[%s5 + $0x148] sm:$0xff] %vm1374, %v1351
  %1417 = vst.msk [vmem:[%s5 + $0x150] sm:$0xff] %vm1374, %v1352
  %1418 = vst.msk [vmem:[%s5 + $0x158] sm:$0xff] %vm1374, %v1353
  %1419 = vst.msk [vmem:[%s5 + $0x160] sm:$0xff] %vm1374, %v1354
  %1420 = vst.msk [vmem:[%s5 + $0x168] sm:$0xff] %vm1374, %v1355
  %1421 = vst.msk [vmem:[%s5 + $0x170] sm:$0xff] %vm1374, %v1356
  %1422 = vst.msk [vmem:[%s5 + $0x178] sm:$0xff] %vm1374, %v1357
  %1423 = vst.msk [vmem:[%s5 + $0x180] sm:$0xff] %vm1374, %v1358
  %1424 = vst.msk [vmem:[%s5 + $0x188] sm:$0xff] %vm1374, %v1359
  %1425 = vst.msk [vmem:[%s5 + $0x190] sm:$0xff] %vm1374, %v1360
  %1426 = vst.msk [vmem:[%s5 + $0x198] sm:$0xff] %vm1374, %v1361
  %1427 = vst.msk [vmem:[%s5 + $0x1a0] sm:$0xff] %vm1374, %v1362
  %1428 = vst.msk [vmem:[%s5 + $0x1a8] sm:$0xff] %vm1374, %v1363
  %1429 = vst.msk [vmem:[%s5 + $0x1b0] sm:$0xff] %vm1374, %v1364
  %1430 = vst.msk [vmem:[%s5 + $0x1b8] sm:$0xff] %vm1374, %v1365
  %1431 = vst.msk [vmem:[%s5 + $0x1c0] sm:$0xff] %vm1374, %v1366
  %1432 = vst.msk [vmem:[%s5 + $0x1c8] sm:$0xff] %vm1374, %v1367
  %1433 = vst.msk [vmem:[%s5 + $0x1d0] sm:$0xff] %vm1374, %v1368
  %1434 = vst.msk [vmem:[%s5 + $0x1d8] sm:$0xff] %vm1374, %v1369
  %1435 = vst.msk [vmem:[%s5 + $0x1e0] sm:$0xff] %vm1374, %v1370
  %1436 = vst.msk [vmem:[%s5 + $0x1e8] sm:$0xff] %vm1374, %v1371
  %1437 = vst.msk [vmem:[%s5 + $0x1f0] sm:$0xff] %vm1374, %v1372
  %1438 = vst.msk [vmem:[%s5 + $0x1f8] sm:$0xff] %vm1374, %v1373
  // Predicated region
  $region26: #{sage_forward.3} parent=0 // pred_check
    %p1439 = pneg %p21
  $region27: #{sage_forward.3} parent=0 // pred_check_branch
    %1441 = sbr.rel (%p1439) target = $region29
  $region28: #{sage_forward.3} parent=0 // pred_region
    %v1442 = vld [vmem:[%s2] sm:$0xff]
    %v1443 = vld [vmem:[%s2 + $0x8] sm:$0xff]
    %v1444 = vld [vmem:[%s2 + $0x10] sm:$0xff]
    %v1445 = vld [vmem:[%s2 + $0x18] sm:$0xff]
    %v1446 = vld [vmem:[%s2 + $0x20] sm:$0xff]
    %v1447 = vld [vmem:[%s2 + $0x28] sm:$0xff]
    %v1448 = vld [vmem:[%s2 + $0x30] sm:$0xff]
    %v1449 = vld [vmem:[%s2 + $0x38] sm:$0xff]
    %v1450 = vld [vmem:[%s2 + $0x40] sm:$0xff]
    %v1451 = vld [vmem:[%s2 + $0x48] sm:$0xff]
    %v1452 = vld [vmem:[%s2 + $0x50] sm:$0xff]
    %v1453 = vld [vmem:[%s2 + $0x58] sm:$0xff]
    %v1454 = vld [vmem:[%s2 + $0x60] sm:$0xff]
    %v1455 = vld [vmem:[%s2 + $0x68] sm:$0xff]
    %v1456 = vld [vmem:[%s2 + $0x70] sm:$0xff]
    %v1457 = vld [vmem:[%s2 + $0x78] sm:$0xff]
    %v1458 = vld [vmem:[%s2 + $0x80] sm:$0xff]
    %v1459 = vld [vmem:[%s2 + $0x88] sm:$0xff]
    %v1460 = vld [vmem:[%s2 + $0x90] sm:$0xff]
    %v1461 = vld [vmem:[%s2 + $0x98] sm:$0xff]
    %v1462 = vld [vmem:[%s2 + $0xa0] sm:$0xff]
    %v1463 = vld [vmem:[%s2 + $0xa8] sm:$0xff]
    %v1464 = vld [vmem:[%s2 + $0xb0] sm:$0xff]
    %v1465 = vld [vmem:[%s2 + $0xb8] sm:$0xff]
    %v1466 = vld [vmem:[%s2 + $0xc0] sm:$0xff]
    %v1467 = vld [vmem:[%s2 + $0xc8] sm:$0xff]
    %v1468 = vld [vmem:[%s2 + $0xd0] sm:$0xff]
    %v1469 = vld [vmem:[%s2 + $0xd8] sm:$0xff]
    %v1470 = vld [vmem:[%s2 + $0xe0] sm:$0xff]
    %v1471 = vld [vmem:[%s2 + $0xe8] sm:$0xff]
    %v1472 = vld [vmem:[%s2 + $0xf0] sm:$0xff]
    %v1473 = vld [vmem:[%s2 + $0xf8] sm:$0xff]
    %v1474 = vld [vmem:[%s2 + $0x100] sm:$0xff]
    %v1475 = vld [vmem:[%s2 + $0x108] sm:$0xff]
    %v1476 = vld [vmem:[%s2 + $0x110] sm:$0xff]
    %v1477 = vld [vmem:[%s2 + $0x118] sm:$0xff]
    %v1478 = vld [vmem:[%s2 + $0x120] sm:$0xff]
    %v1479 = vld [vmem:[%s2 + $0x128] sm:$0xff]
    %v1480 = vld [vmem:[%s2 + $0x130] sm:$0xff]
    %v1481 = vld [vmem:[%s2 + $0x138] sm:$0xff]
    %v1482 = vld [vmem:[%s2 + $0x140] sm:$0xff]
    %v1483 = vld [vmem:[%s2 + $0x148] sm:$0xff]
    %v1484 = vld [vmem:[%s2 + $0x150] sm:$0xff]
    %v1485 = vld [vmem:[%s2 + $0x158] sm:$0xff]
    %v1486 = vld [vmem:[%s2 + $0x160] sm:$0xff]
    %v1487 = vld [vmem:[%s2 + $0x168] sm:$0xff]
    %v1488 = vld [vmem:[%s2 + $0x170] sm:$0xff]
    %v1489 = vld [vmem:[%s2 + $0x178] sm:$0xff]
    %v1490 = vld [vmem:[%s2 + $0x180] sm:$0xff]
    %v1491 = vld [vmem:[%s2 + $0x188] sm:$0xff]
    %v1492 = vld [vmem:[%s2 + $0x190] sm:$0xff]
    %v1493 = vld [vmem:[%s2 + $0x198] sm:$0xff]
    %v1494 = vld [vmem:[%s2 + $0x1a0] sm:$0xff]
    %v1495 = vld [vmem:[%s2 + $0x1a8] sm:$0xff]
    %v1496 = vld [vmem:[%s2 + $0x1b0] sm:$0xff]
    %v1497 = vld [vmem:[%s2 + $0x1b8] sm:$0xff]
    %v1498 = vld [vmem:[%s2 + $0x1c0] sm:$0xff]
    %v1499 = vld [vmem:[%s2 + $0x1c8] sm:$0xff]
    %v1500 = vld [vmem:[%s2 + $0x1d0] sm:$0xff]
    %v1501 = vld [vmem:[%s2 + $0x1d8] sm:$0xff]
    %v1502 = vld [vmem:[%s2 + $0x1e0] sm:$0xff]
    %v1503 = vld [vmem:[%s2 + $0x1e8] sm:$0xff]
    %v1504 = vld [vmem:[%s2 + $0x1f0] sm:$0xff]
    %v1505 = vld [vmem:[%s2 + $0x1f8] sm:$0xff]
    %v1506 = vld [vmem:[%s3] sm:$0xff]
    %v1507 = vld [vmem:[%s3 + $0x8] sm:$0xff]
    %v1508 = vld [vmem:[%s3 + $0x10] sm:$0xff]
    %v1509 = vld [vmem:[%s3 + $0x18] sm:$0xff]
    %v1510 = vld [vmem:[%s3 + $0x20] sm:$0xff]
    %v1511 = vld [vmem:[%s3 + $0x28] sm:$0xff]
    %v1512 = vld [vmem:[%s3 + $0x30] sm:$0xff]
    %v1513 = vld [vmem:[%s3 + $0x38] sm:$0xff]
    %v1514 = vld [vmem:[%s3 + $0x40] sm:$0xff]
    %v1515 = vld [vmem:[%s3 + $0x48] sm:$0xff]
    %v1516 = vld [vmem:[%s3 + $0x50] sm:$0xff]
    %v1517 = vld [vmem:[%s3 + $0x58] sm:$0xff]
    %v1518 = vld [vmem:[%s3 + $0x60] sm:$0xff]
    %v1519 = vld [vmem:[%s3 + $0x68] sm:$0xff]
    %v1520 = vld [vmem:[%s3 + $0x70] sm:$0xff]
    %v1521 = vld [vmem:[%s3 + $0x78] sm:$0xff]
    %v1522 = vld [vmem:[%s3 + $0x80] sm:$0xff]
    %v1523 = vld [vmem:[%s3 + $0x88] sm:$0xff]
    %v1524 = vld [vmem:[%s3 + $0x90] sm:$0xff]
    %v1525 = vld [vmem:[%s3 + $0x98] sm:$0xff]
    %v1526 = vld [vmem:[%s3 + $0xa0] sm:$0xff]
    %v1527 = vld [vmem:[%s3 + $0xa8] sm:$0xff]
    %v1528 = vld [vmem:[%s3 + $0xb0] sm:$0xff]
    %v1529 = vld [vmem:[%s3 + $0xb8] sm:$0xff]
    %v1530 = vld [vmem:[%s3 + $0xc0] sm:$0xff]
    %v1531 = vld [vmem:[%s3 + $0xc8] sm:$0xff]
    %v1532 = vld [vmem:[%s3 + $0xd0] sm:$0xff]
    %v1533 = vld [vmem:[%s3 + $0xd8] sm:$0xff]
    %v1534 = vld [vmem:[%s3 + $0xe0] sm:$0xff]
    %v1535 = vld [vmem:[%s3 + $0xe8] sm:$0xff]
    %v1536 = vld [vmem:[%s3 + $0xf0] sm:$0xff]
    %v1537 = vld [vmem:[%s3 + $0xf8] sm:$0xff]
    %v1538 = vld [vmem:[%s3 + $0x100] sm:$0xff]
    %v1539 = vld [vmem:[%s3 + $0x108] sm:$0xff]
    %v1540 = vld [vmem:[%s3 + $0x110] sm:$0xff]
    %v1541 = vld [vmem:[%s3 + $0x118] sm:$0xff]
    %v1542 = vld [vmem:[%s3 + $0x120] sm:$0xff]
    %v1543 = vld [vmem:[%s3 + $0x128] sm:$0xff]
    %v1544 = vld [vmem:[%s3 + $0x130] sm:$0xff]
    %v1545 = vld [vmem:[%s3 + $0x138] sm:$0xff]
    %v1546 = vld [vmem:[%s3 + $0x140] sm:$0xff]
    %v1547 = vld [vmem:[%s3 + $0x148] sm:$0xff]
    %v1548 = vld [vmem:[%s3 + $0x150] sm:$0xff]
    %v1549 = vld [vmem:[%s3 + $0x158] sm:$0xff]
    %v1550 = vld [vmem:[%s3 + $0x160] sm:$0xff]
    %v1551 = vld [vmem:[%s3 + $0x168] sm:$0xff]
    %v1552 = vld [vmem:[%s3 + $0x170] sm:$0xff]
    %v1553 = vld [vmem:[%s3 + $0x178] sm:$0xff]
    %v1554 = vld [vmem:[%s3 + $0x180] sm:$0xff]
    %v1555 = vld [vmem:[%s3 + $0x188] sm:$0xff]
    %v1556 = vld [vmem:[%s3 + $0x190] sm:$0xff]
    %v1557 = vld [vmem:[%s3 + $0x198] sm:$0xff]
    %v1558 = vld [vmem:[%s3 + $0x1a0] sm:$0xff]
    %v1559 = vld [vmem:[%s3 + $0x1a8] sm:$0xff]
    %v1560 = vld [vmem:[%s3 + $0x1b0] sm:$0xff]
    %v1561 = vld [vmem:[%s3 + $0x1b8] sm:$0xff]
    %v1562 = vld [vmem:[%s3 + $0x1c0] sm:$0xff]
    %v1563 = vld [vmem:[%s3 + $0x1c8] sm:$0xff]
    %v1564 = vld [vmem:[%s3 + $0x1d0] sm:$0xff]
    %v1565 = vld [vmem:[%s3 + $0x1d8] sm:$0xff]
    %v1566 = vld [vmem:[%s3 + $0x1e0] sm:$0xff]
    %v1567 = vld [vmem:[%s3 + $0x1e8] sm:$0xff]
    %v1568 = vld [vmem:[%s3 + $0x1f0] sm:$0xff]
    %v1569 = vld [vmem:[%s3 + $0x1f8] sm:$0xff]
    %v1570 = vld [vmem:[%s5] sm:$0xff]
    %v1571 = vld [vmem:[%s5 + $0x8] sm:$0xff]
    %v1572 = vld [vmem:[%s5 + $0x10] sm:$0xff]
    %v1573 = vld [vmem:[%s5 + $0x18] sm:$0xff]
    %v1574 = vld [vmem:[%s5 + $0x20] sm:$0xff]
    %v1575 = vld [vmem:[%s5 + $0x28] sm:$0xff]
    %v1576 = vld [vmem:[%s5 + $0x30] sm:$0xff]
    %v1577 = vld [vmem:[%s5 + $0x38] sm:$0xff]
    %v1578 = vld [vmem:[%s5 + $0x40] sm:$0xff]
    %v1579 = vld [vmem:[%s5 + $0x48] sm:$0xff]
    %v1580 = vld [vmem:[%s5 + $0x50] sm:$0xff]
    %v1581 = vld [vmem:[%s5 + $0x58] sm:$0xff]
    %v1582 = vld [vmem:[%s5 + $0x60] sm:$0xff]
    %v1583 = vld [vmem:[%s5 + $0x68] sm:$0xff]
    %v1584 = vld [vmem:[%s5 + $0x70] sm:$0xff]
    %v1585 = vld [vmem:[%s5 + $0x78] sm:$0xff]
    %v1586 = vld [vmem:[%s5 + $0x80] sm:$0xff]
    %v1587 = vld [vmem:[%s5 + $0x88] sm:$0xff]
    %v1588 = vld [vmem:[%s5 + $0x90] sm:$0xff]
    %v1589 = vld [vmem:[%s5 + $0x98] sm:$0xff]
    %v1590 = vld [vmem:[%s5 + $0xa0] sm:$0xff]
    %v1591 = vld [vmem:[%s5 + $0xa8] sm:$0xff]
    %v1592 = vld [vmem:[%s5 + $0xb0] sm:$0xff]
    %v1593 = vld [vmem:[%s5 + $0xb8] sm:$0xff]
    %v1594 = vld [vmem:[%s5 + $0xc0] sm:$0xff]
    %v1595 = vld [vmem:[%s5 + $0xc8] sm:$0xff]
    %v1596 = vld [vmem:[%s5 + $0xd0] sm:$0xff]
    %v1597 = vld [vmem:[%s5 + $0xd8] sm:$0xff]
    %v1598 = vld [vmem:[%s5 + $0xe0] sm:$0xff]
    %v1599 = vld [vmem:[%s5 + $0xe8] sm:$0xff]
    %v1600 = vld [vmem:[%s5 + $0xf0] sm:$0xff]
    %v1601 = vld [vmem:[%s5 + $0xf8] sm:$0xff]
    %v1602 = vld [vmem:[%s5 + $0x100] sm:$0xff]
    %v1603 = vld [vmem:[%s5 + $0x108] sm:$0xff]
    %v1604 = vld [vmem:[%s5 + $0x110] sm:$0xff]
    %v1605 = vld [vmem:[%s5 + $0x118] sm:$0xff]
    %v1606 = vld [vmem:[%s5 + $0x120] sm:$0xff]
    %v1607 = vld [vmem:[%s5 + $0x128] sm:$0xff]
    %v1608 = vld [vmem:[%s5 + $0x130] sm:$0xff]
    %v1609 = vld [vmem:[%s5 + $0x138] sm:$0xff]
    %v1610 = vld [vmem:[%s5 + $0x140] sm:$0xff]
    %v1611 = vld [vmem:[%s5 + $0x148] sm:$0xff]
    %v1612 = vld [vmem:[%s5 + $0x150] sm:$0xff]
    %v1613 = vld [vmem:[%s5 + $0x158] sm:$0xff]
    %v1614 = vld [vmem:[%s5 + $0x160] sm:$0xff]
    %v1615 = vld [vmem:[%s5 + $0x168] sm:$0xff]
    %v1616 = vld [vmem:[%s5 + $0x170] sm:$0xff]
    %v1617 = vld [vmem:[%s5 + $0x178] sm:$0xff]
    %v1618 = vld [vmem:[%s5 + $0x180] sm:$0xff]
    %v1619 = vld [vmem:[%s5 + $0x188] sm:$0xff]
    %v1620 = vld [vmem:[%s5 + $0x190] sm:$0xff]
    %v1621 = vld [vmem:[%s5 + $0x198] sm:$0xff]
    %v1622 = vld [vmem:[%s5 + $0x1a0] sm:$0xff]
    %v1623 = vld [vmem:[%s5 + $0x1a8] sm:$0xff]
    %v1624 = vld [vmem:[%s5 + $0x1b0] sm:$0xff]
    %v1625 = vld [vmem:[%s5 + $0x1b8] sm:$0xff]
    %v1626 = vld [vmem:[%s5 + $0x1c0] sm:$0xff]
    %v1627 = vld [vmem:[%s5 + $0x1c8] sm:$0xff]
    %v1628 = vld [vmem:[%s5 + $0x1d0] sm:$0xff]
    %v1629 = vld [vmem:[%s5 + $0x1d8] sm:$0xff]
    %v1630 = vld [vmem:[%s5 + $0x1e0] sm:$0xff]
    %v1631 = vld [vmem:[%s5 + $0x1e8] sm:$0xff]
    %v1632 = vld [vmem:[%s5 + $0x1f0] sm:$0xff]
    %v1633 = vld [vmem:[%s5 + $0x1f8] sm:$0xff]
    %1635 = vset.pattern.permute.xlu0 0
    %1636 = vperm.xlu0 %1635, %v1506
    %v1637 = vpop.permute.xlu0 %1636
    %1640 = vset.pattern.permute.xlu0 0
    %1641 = vperm.xlu0 %1640, %v1507
    %v1642 = vpop.permute.xlu0 %1641
    %1645 = vset.pattern.permute.xlu0 0
    %1646 = vperm.xlu0 %1645, %v1508
    %v1647 = vpop.permute.xlu0 %1646
    %1650 = vset.pattern.permute.xlu0 0
    %1651 = vperm.xlu0 %1650, %v1509
    %v1652 = vpop.permute.xlu0 %1651
    %1655 = vset.pattern.permute.xlu0 0
    %1656 = vperm.xlu0 %1655, %v1510
    %v1657 = vpop.permute.xlu0 %1656
    %1660 = vset.pattern.permute.xlu0 0
    %1661 = vperm.xlu0 %1660, %v1511
    %v1662 = vpop.permute.xlu0 %1661
    %1665 = vset.pattern.permute.xlu0 0
    %1666 = vperm.xlu0 %1665, %v1512
    %v1667 = vpop.permute.xlu0 %1666
    %1670 = vset.pattern.permute.xlu0 0
    %1671 = vperm.xlu0 %1670, %v1513
    %v1672 = vpop.permute.xlu0 %1671
    %1675 = vset.pattern.permute.xlu0 0
    %1676 = vperm.xlu0 %1675, %v1514
    %v1677 = vpop.permute.xlu0 %1676
    %1680 = vset.pattern.permute.xlu0 0
    %1681 = vperm.xlu0 %1680, %v1515
    %v1682 = vpop.permute.xlu0 %1681
    %1685 = vset.pattern.permute.xlu0 0
    %1686 = vperm.xlu0 %1685, %v1516
    %v1687 = vpop.permute.xlu0 %1686
    %1690 = vset.pattern.permute.xlu0 0
    %1691 = vperm.xlu0 %1690, %v1517
    %v1692 = vpop.permute.xlu0 %1691
    %1695 = vset.pattern.permute.xlu0 0
    %1696 = vperm.xlu0 %1695, %v1518
    %v1697 = vpop.permute.xlu0 %1696
    %1700 = vset.pattern.permute.xlu0 0
    %1701 = vperm.xlu0 %1700, %v1519
    %v1702 = vpop.permute.xlu0 %1701
    %1705 = vset.pattern.permute.xlu0 0
    %1706 = vperm.xlu0 %1705, %v1520
    %v1707 = vpop.permute.xlu0 %1706
    %1710 = vset.pattern.permute.xlu0 0
    %1711 = vperm.xlu0 %1710, %v1521
    %v1712 = vpop.permute.xlu0 %1711
    %1715 = vset.pattern.permute.xlu0 0
    %1716 = vperm.xlu0 %1715, %v1522
    %v1717 = vpop.permute.xlu0 %1716
    %1720 = vset.pattern.permute.xlu0 0
    %1721 = vperm.xlu0 %1720, %v1523
    %v1722 = vpop.permute.xlu0 %1721
    %1725 = vset.pattern.permute.xlu0 0
    %1726 = vperm.xlu0 %1725, %v1524
    %v1727 = vpop.permute.xlu0 %1726
    %1730 = vset.pattern.permute.xlu0 0
    %1731 = vperm.xlu0 %1730, %v1525
    %v1732 = vpop.permute.xlu0 %1731
    %1735 = vset.pattern.permute.xlu0 0
    %1736 = vperm.xlu0 %1735, %v1526
    %v1737 = vpop.permute.xlu0 %1736
    %1740 = vset.pattern.permute.xlu0 0
    %1741 = vperm.xlu0 %1740, %v1527
    %v1742 = vpop.permute.xlu0 %1741
    %1745 = vset.pattern.permute.xlu0 0
    %1746 = vperm.xlu0 %1745, %v1528
    %v1747 = vpop.permute.xlu0 %1746
    %1750 = vset.pattern.permute.xlu0 0
    %1751 = vperm.xlu0 %1750, %v1529
    %v1752 = vpop.permute.xlu0 %1751
    %1755 = vset.pattern.permute.xlu0 0
    %1756 = vperm.xlu0 %1755, %v1530
    %v1757 = vpop.permute.xlu0 %1756
    %1760 = vset.pattern.permute.xlu0 0
    %1761 = vperm.xlu0 %1760, %v1531
    %v1762 = vpop.permute.xlu0 %1761
    %1765 = vset.pattern.permute.xlu0 0
    %1766 = vperm.xlu0 %1765, %v1532
    %v1767 = vpop.permute.xlu0 %1766
    %1770 = vset.pattern.permute.xlu0 0
    %1771 = vperm.xlu0 %1770, %v1533
    %v1772 = vpop.permute.xlu0 %1771
    %1775 = vset.pattern.permute.xlu0 0
    %1776 = vperm.xlu0 %1775, %v1534
    %v1777 = vpop.permute.xlu0 %1776
    %1780 = vset.pattern.permute.xlu0 0
    %1781 = vperm.xlu0 %1780, %v1535
    %v1782 = vpop.permute.xlu0 %1781
    %1785 = vset.pattern.permute.xlu0 0
    %1786 = vperm.xlu0 %1785, %v1536
    %v1787 = vpop.permute.xlu0 %1786
    %1790 = vset.pattern.permute.xlu0 0
    %1791 = vperm.xlu0 %1790, %v1537
    %v1792 = vpop.permute.xlu0 %1791
    %1795 = vset.pattern.permute.xlu0 0
    %1796 = vperm.xlu0 %1795, %v1538
    %v1797 = vpop.permute.xlu0 %1796
    %1800 = vset.pattern.permute.xlu0 0
    %1801 = vperm.xlu0 %1800, %v1539
    %v1802 = vpop.permute.xlu0 %1801
    %1805 = vset.pattern.permute.xlu0 0
    %1806 = vperm.xlu0 %1805, %v1540
    %v1807 = vpop.permute.xlu0 %1806
    %1810 = vset.pattern.permute.xlu0 0
    %1811 = vperm.xlu0 %1810, %v1541
    %v1812 = vpop.permute.xlu0 %1811
    %1815 = vset.pattern.permute.xlu0 0
    %1816 = vperm.xlu0 %1815, %v1542
    %v1817 = vpop.permute.xlu0 %1816
    %1820 = vset.pattern.permute.xlu0 0
    %1821 = vperm.xlu0 %1820, %v1543
    %v1822 = vpop.permute.xlu0 %1821
    %1825 = vset.pattern.permute.xlu0 0
    %1826 = vperm.xlu0 %1825, %v1544
    %v1827 = vpop.permute.xlu0 %1826
    %1830 = vset.pattern.permute.xlu0 0
    %1831 = vperm.xlu0 %1830, %v1545
    %v1832 = vpop.permute.xlu0 %1831
    %1835 = vset.pattern.permute.xlu0 0
    %1836 = vperm.xlu0 %1835, %v1546
    %v1837 = vpop.permute.xlu0 %1836
    %1840 = vset.pattern.permute.xlu0 0
    %1841 = vperm.xlu0 %1840, %v1547
    %v1842 = vpop.permute.xlu0 %1841
    %1845 = vset.pattern.permute.xlu0 0
    %1846 = vperm.xlu0 %1845, %v1548
    %v1847 = vpop.permute.xlu0 %1846
    %1850 = vset.pattern.permute.xlu0 0
    %1851 = vperm.xlu0 %1850, %v1549
    %v1852 = vpop.permute.xlu0 %1851
    %1855 = vset.pattern.permute.xlu0 0
    %1856 = vperm.xlu0 %1855, %v1550
    %v1857 = vpop.permute.xlu0 %1856
    %1860 = vset.pattern.permute.xlu0 0
    %1861 = vperm.xlu0 %1860, %v1551
    %v1862 = vpop.permute.xlu0 %1861
    %1865 = vset.pattern.permute.xlu0 0
    %1866 = vperm.xlu0 %1865, %v1552
    %v1867 = vpop.permute.xlu0 %1866
    %1870 = vset.pattern.permute.xlu0 0
    %1871 = vperm.xlu0 %1870, %v1553
    %v1872 = vpop.permute.xlu0 %1871
    %1875 = vset.pattern.permute.xlu0 0
    %1876 = vperm.xlu0 %1875, %v1554
    %v1877 = vpop.permute.xlu0 %1876
    %1880 = vset.pattern.permute.xlu0 0
    %1881 = vperm.xlu0 %1880, %v1555
    %v1882 = vpop.permute.xlu0 %1881
    %1885 = vset.pattern.permute.xlu0 0
    %1886 = vperm.xlu0 %1885, %v1556
    %v1887 = vpop.permute.xlu0 %1886
    %1890 = vset.pattern.permute.xlu0 0
    %1891 = vperm.xlu0 %1890, %v1557
    %v1892 = vpop.permute.xlu0 %1891
    %1895 = vset.pattern.permute.xlu0 0
    %1896 = vperm.xlu0 %1895, %v1558
    %v1897 = vpop.permute.xlu0 %1896
    %1900 = vset.pattern.permute.xlu0 0
    %1901 = vperm.xlu0 %1900, %v1559
    %v1902 = vpop.permute.xlu0 %1901
    %1905 = vset.pattern.permute.xlu0 0
    %1906 = vperm.xlu0 %1905, %v1560
    %v1907 = vpop.permute.xlu0 %1906
    %1910 = vset.pattern.permute.xlu0 0
    %1911 = vperm.xlu0 %1910, %v1561
    %v1912 = vpop.permute.xlu0 %1911
    %1915 = vset.pattern.permute.xlu0 0
    %1916 = vperm.xlu0 %1915, %v1562
    %v1917 = vpop.permute.xlu0 %1916
    %1920 = vset.pattern.permute.xlu0 0
    %1921 = vperm.xlu0 %1920, %v1563
    %v1922 = vpop.permute.xlu0 %1921
    %1925 = vset.pattern.permute.xlu0 0
    %1926 = vperm.xlu0 %1925, %v1564
    %v1927 = vpop.permute.xlu0 %1926
    %1930 = vset.pattern.permute.xlu0 0
    %1931 = vperm.xlu0 %1930, %v1565
    %v1932 = vpop.permute.xlu0 %1931
    %1935 = vset.pattern.permute.xlu0 0
    %1936 = vperm.xlu0 %1935, %v1566
    %v1937 = vpop.permute.xlu0 %1936
    %1940 = vset.pattern.permute.xlu0 0
    %1941 = vperm.xlu0 %1940, %v1567
    %v1942 = vpop.permute.xlu0 %1941
    %1945 = vset.pattern.permute.xlu0 0
    %1946 = vperm.xlu0 %1945, %v1568
    %v1947 = vpop.permute.xlu0 %1946
    %1950 = vset.pattern.permute.xlu0 0
    %1951 = vperm.xlu0 %1950, %v1569
    %v1952 = vpop.permute.xlu0 %1951
    %v1954 = vmul.f32 %v1637, %v1570
    %v1955 = vmul.f32 %v1642, %v1571
    %v1956 = vmul.f32 %v1647, %v1572
    %v1957 = vmul.f32 %v1652, %v1573
    %v1958 = vmul.f32 %v1657, %v1574
    %v1959 = vmul.f32 %v1662, %v1575
    %v1960 = vmul.f32 %v1667, %v1576
    %v1961 = vmul.f32 %v1672, %v1577
    %v1962 = vmul.f32 %v1677, %v1578
    %v1963 = vmul.f32 %v1682, %v1579
    %v1964 = vmul.f32 %v1687, %v1580
    %v1965 = vmul.f32 %v1692, %v1581
    %v1966 = vmul.f32 %v1697, %v1582
    %v1967 = vmul.f32 %v1702, %v1583
    %v1968 = vmul.f32 %v1707, %v1584
    %v1969 = vmul.f32 %v1712, %v1585
    %v1970 = vmul.f32 %v1717, %v1586
    %v1971 = vmul.f32 %v1722, %v1587
    %v1972 = vmul.f32 %v1727, %v1588
    %v1973 = vmul.f32 %v1732, %v1589
    %v1974 = vmul.f32 %v1737, %v1590
    %v1975 = vmul.f32 %v1742, %v1591
    %v1976 = vmul.f32 %v1747, %v1592
    %v1977 = vmul.f32 %v1752, %v1593
    %v1978 = vmul.f32 %v1757, %v1594
    %v1979 = vmul.f32 %v1762, %v1595
    %v1980 = vmul.f32 %v1767, %v1596
    %v1981 = vmul.f32 %v1772, %v1597
    %v1982 = vmul.f32 %v1777, %v1598
    %v1983 = vmul.f32 %v1782, %v1599
    %v1984 = vmul.f32 %v1787, %v1600
    %v1985 = vmul.f32 %v1792, %v1601
    %v1986 = vmul.f32 %v1797, %v1602
    %v1987 = vmul.f32 %v1802, %v1603
    %v1988 = vmul.f32 %v1807, %v1604
    %v1989 = vmul.f32 %v1812, %v1605
    %v1990 = vmul.f32 %v1817, %v1606
    %v1991 = vmul.f32 %v1822, %v1607
    %v1992 = vmul.f32 %v1827, %v1608
    %v1993 = vmul.f32 %v1832, %v1609
    %v1994 = vmul.f32 %v1837, %v1610
    %v1995 = vmul.f32 %v1842, %v1611
    %v1996 = vmul.f32 %v1847, %v1612
    %v1997 = vmul.f32 %v1852, %v1613
    %v1998 = vmul.f32 %v1857, %v1614
    %v1999 = vmul.f32 %v1862, %v1615
    %v2000 = vmul.f32 %v1867, %v1616
    %v2001 = vmul.f32 %v1872, %v1617
    %v2002 = vmul.f32 %v1877, %v1618
    %v2003 = vmul.f32 %v1882, %v1619
    %v2004 = vmul.f32 %v1887, %v1620
    %v2005 = vmul.f32 %v1892, %v1621
    %v2006 = vmul.f32 %v1897, %v1622
    %v2007 = vmul.f32 %v1902, %v1623
    %v2008 = vmul.f32 %v1907, %v1624
    %v2009 = vmul.f32 %v1912, %v1625
    %v2010 = vmul.f32 %v1917, %v1626
    %v2011 = vmul.f32 %v1922, %v1627
    %v2012 = vmul.f32 %v1927, %v1628
    %v2013 = vmul.f32 %v1932, %v1629
    %v2014 = vmul.f32 %v1937, %v1630
    %v2015 = vmul.f32 %v1942, %v1631
    %v2016 = vmul.f32 %v1947, %v1632
    %v2017 = vmul.f32 %v1952, %v1633
    %v2018 = vadd.f32 %v1442, %v1954
    %v2019 = vadd.f32 %v1443, %v1955
    %v2020 = vadd.f32 %v1444, %v1956
    %v2021 = vadd.f32 %v1445, %v1957
    %v2022 = vadd.f32 %v1446, %v1958
    %v2023 = vadd.f32 %v1447, %v1959
    %v2024 = vadd.f32 %v1448, %v1960
    %v2025 = vadd.f32 %v1449, %v1961
    %v2026 = vadd.f32 %v1450, %v1962
    %v2027 = vadd.f32 %v1451, %v1963
    %v2028 = vadd.f32 %v1452, %v1964
    %v2029 = vadd.f32 %v1453, %v1965
    %v2030 = vadd.f32 %v1454, %v1966
    %v2031 = vadd.f32 %v1455, %v1967
    %v2032 = vadd.f32 %v1456, %v1968
    %v2033 = vadd.f32 %v1457, %v1969
    %v2034 = vadd.f32 %v1458, %v1970
    %v2035 = vadd.f32 %v1459, %v1971
    %v2036 = vadd.f32 %v1460, %v1972
    %v2037 = vadd.f32 %v1461, %v1973
    %v2038 = vadd.f32 %v1462, %v1974
    %v2039 = vadd.f32 %v1463, %v1975
    %v2040 = vadd.f32 %v1464, %v1976
    %v2041 = vadd.f32 %v1465, %v1977
    %v2042 = vadd.f32 %v1466, %v1978
    %v2043 = vadd.f32 %v1467, %v1979
    %v2044 = vadd.f32 %v1468, %v1980
    %v2045 = vadd.f32 %v1469, %v1981
    %v2046 = vadd.f32 %v1470, %v1982
    %v2047 = vadd.f32 %v1471, %v1983
    %v2048 = vadd.f32 %v1472, %v1984
    %v2049 = vadd.f32 %v1473, %v1985
    %v2050 = vadd.f32 %v1474, %v1986
    %v2051 = vadd.f32 %v1475, %v1987
    %v2052 = vadd.f32 %v1476, %v1988
    %v2053 = vadd.f32 %v1477, %v1989
    %v2054 = vadd.f32 %v1478, %v1990
    %v2055 = vadd.f32 %v1479, %v1991
    %v2056 = vadd.f32 %v1480, %v1992
    %v2057 = vadd.f32 %v1481, %v1993
    %v2058 = vadd.f32 %v1482, %v1994
    %v2059 = vadd.f32 %v1483, %v1995
    %v2060 = vadd.f32 %v1484, %v1996
    %v2061 = vadd.f32 %v1485, %v1997
    %v2062 = vadd.f32 %v1486, %v1998
    %v2063 = vadd.f32 %v1487, %v1999
    %v2064 = vadd.f32 %v1488, %v2000
    %v2065 = vadd.f32 %v1489, %v2001
    %v2066 = vadd.f32 %v1490, %v2002
    %v2067 = vadd.f32 %v1491, %v2003
    %v2068 = vadd.f32 %v1492, %v2004
    %v2069 = vadd.f32 %v1493, %v2005
    %v2070 = vadd.f32 %v1494, %v2006
    %v2071 = vadd.f32 %v1495, %v2007
    %v2072 = vadd.f32 %v1496, %v2008
    %v2073 = vadd.f32 %v1497, %v2009
    %v2074 = vadd.f32 %v1498, %v2010
    %v2075 = vadd.f32 %v1499, %v2011
    %v2076 = vadd.f32 %v1500, %v2012
    %v2077 = vadd.f32 %v1501, %v2013
    %v2078 = vadd.f32 %v1502, %v2014
    %v2079 = vadd.f32 %v1503, %v2015
    %v2080 = vadd.f32 %v1504, %v2016
    %v2081 = vadd.f32 %v1505, %v2017
    %s2082 = sld [smem:[#allocation2]]
    %vm2083 = vcmp.gt.f32.partialorder %v2018, 0.0
    %vm2084 = vcmp.gt.f32.partialorder %v2019, 0.0
    %vm2085 = vcmp.gt.f32.partialorder %v2020, 0.0
    %vm2086 = vcmp.gt.f32.partialorder %v2021, 0.0
    %vm2087 = vcmp.gt.f32.partialorder %v2022, 0.0
    %vm2088 = vcmp.gt.f32.partialorder %v2023, 0.0
    %vm2089 = vcmp.gt.f32.partialorder %v2024, 0.0
    %vm2090 = vcmp.gt.f32.partialorder %v2025, 0.0
    %vm2091 = vcmp.gt.f32.partialorder %v2026, 0.0
    %vm2092 = vcmp.gt.f32.partialorder %v2027, 0.0
    %vm2093 = vcmp.gt.f32.partialorder %v2028, 0.0
    %vm2094 = vcmp.gt.f32.partialorder %v2029, 0.0
    %vm2095 = vcmp.gt.f32.partialorder %v2030, 0.0
    %vm2096 = vcmp.gt.f32.partialorder %v2031, 0.0
    %vm2097 = vcmp.gt.f32.partialorder %v2032, 0.0
    %vm2098 = vcmp.gt.f32.partialorder %v2033, 0.0
    %vm2099 = vcmp.gt.f32.partialorder %v2034, 0.0
    %vm2100 = vcmp.gt.f32.partialorder %v2035, 0.0
    %vm2101 = vcmp.gt.f32.partialorder %v2036, 0.0
    %vm2102 = vcmp.gt.f32.partialorder %v2037, 0.0
    %vm2103 = vcmp.gt.f32.partialorder %v2038, 0.0
    %vm2104 = vcmp.gt.f32.partialorder %v2039, 0.0
    %vm2105 = vcmp.gt.f32.partialorder %v2040, 0.0
    %vm2106 = vcmp.gt.f32.partialorder %v2041, 0.0
    %vm2107 = vcmp.gt.f32.partialorder %v2042, 0.0
    %vm2108 = vcmp.gt.f32.partialorder %v2043, 0.0
    %vm2109 = vcmp.gt.f32.partialorder %v2044, 0.0
    %vm2110 = vcmp.gt.f32.partialorder %v2045, 0.0
    %vm2111 = vcmp.gt.f32.partialorder %v2046, 0.0
    %vm2112 = vcmp.gt.f32.partialorder %v2047, 0.0
    %vm2113 = vcmp.gt.f32.partialorder %v2048, 0.0
    %vm2114 = vcmp.gt.f32.partialorder %v2049, 0.0
    %vm2115 = vcmp.gt.f32.partialorder %v2050, 0.0
    %vm2116 = vcmp.gt.f32.partialorder %v2051, 0.0
    %vm2117 = vcmp.gt.f32.partialorder %v2052, 0.0
    %vm2118 = vcmp.gt.f32.partialorder %v2053, 0.0
    %vm2119 = vcmp.gt.f32.partialorder %v2054, 0.0
    %vm2120 = vcmp.gt.f32.partialorder %v2055, 0.0
    %vm2121 = vcmp.gt.f32.partialorder %v2056, 0.0
    %vm2122 = vcmp.gt.f32.partialorder %v2057, 0.0
    %vm2123 = vcmp.gt.f32.partialorder %v2058, 0.0
    %vm2124 = vcmp.gt.f32.partialorder %v2059, 0.0
    %vm2125 = vcmp.gt.f32.partialorder %v2060, 0.0
    %vm2126 = vcmp.gt.f32.partialorder %v2061, 0.0
    %vm2127 = vcmp.gt.f32.partialorder %v2062, 0.0
    %vm2128 = vcmp.gt.f32.partialorder %v2063, 0.0
    %vm2129 = vcmp.gt.f32.partialorder %v2064, 0.0
    %vm2130 = vcmp.gt.f32.partialorder %v2065, 0.0
    %vm2131 = vcmp.gt.f32.partialorder %v2066, 0.0
    %vm2132 = vcmp.gt.f32.partialorder %v2067, 0.0
    %vm2133 = vcmp.gt.f32.partialorder %v2068, 0.0
    %vm2134 = vcmp.gt.f32.partialorder %v2069, 0.0
    %vm2135 = vcmp.gt.f32.partialorder %v2070, 0.0
    %vm2136 = vcmp.gt.f32.partialorder %v2071, 0.0
    %vm2137 = vcmp.gt.f32.partialorder %v2072, 0.0
    %vm2138 = vcmp.gt.f32.partialorder %v2073, 0.0
    %vm2139 = vcmp.gt.f32.partialorder %v2074, 0.0
    %vm2140 = vcmp.gt.f32.partialorder %v2075, 0.0
    %vm2141 = vcmp.gt.f32.partialorder %v2076, 0.0
    %vm2142 = vcmp.gt.f32.partialorder %v2077, 0.0
    %vm2143 = vcmp.gt.f32.partialorder %v2078, 0.0
    %vm2144 = vcmp.gt.f32.partialorder %v2079, 0.0
    %vm2145 = vcmp.gt.f32.partialorder %v2080, 0.0
    %vm2146 = vcmp.gt.f32.partialorder %v2081, 0.0
    %v2147 = vstv %s2082
    %v2148 = vmul.f32 %v2147, %v2018
    %v2149 = vmul.f32 %v2147, %v2019
    %v2150 = vmul.f32 %v2147, %v2020
    %v2151 = vmul.f32 %v2147, %v2021
    %v2152 = vmul.f32 %v2147, %v2022
    %v2153 = vmul.f32 %v2147, %v2023
    %v2154 = vmul.f32 %v2147, %v2024
    %v2155 = vmul.f32 %v2147, %v2025
    %v2156 = vmul.f32 %v2147, %v2026
    %v2157 = vmul.f32 %v2147, %v2027
    %v2158 = vmul.f32 %v2147, %v2028
    %v2159 = vmul.f32 %v2147, %v2029
    %v2160 = vmul.f32 %v2147, %v2030
    %v2161 = vmul.f32 %v2147, %v2031
    %v2162 = vmul.f32 %v2147, %v2032
    %v2163 = vmul.f32 %v2147, %v2033
    %v2164 = vmul.f32 %v2147, %v2034
    %v2165 = vmul.f32 %v2147, %v2035
    %v2166 = vmul.f32 %v2147, %v2036
    %v2167 = vmul.f32 %v2147, %v2037
    %v2168 = vmul.f32 %v2147, %v2038
    %v2169 = vmul.f32 %v2147, %v2039
    %v2170 = vmul.f32 %v2147, %v2040
    %v2171 = vmul.f32 %v2147, %v2041
    %v2172 = vmul.f32 %v2147, %v2042
    %v2173 = vmul.f32 %v2147, %v2043
    %v2174 = vmul.f32 %v2147, %v2044
    %v2175 = vmul.f32 %v2147, %v2045
    %v2176 = vmul.f32 %v2147, %v2046
    %v2177 = vmul.f32 %v2147, %v2047
    %v2178 = vmul.f32 %v2147, %v2048
    %v2179 = vmul.f32 %v2147, %v2049
    %v2180 = vmul.f32 %v2147, %v2050
    %v2181 = vmul.f32 %v2147, %v2051
    %v2182 = vmul.f32 %v2147, %v2052
    %v2183 = vmul.f32 %v2147, %v2053
    %v2184 = vmul.f32 %v2147, %v2054
    %v2185 = vmul.f32 %v2147, %v2055
    %v2186 = vmul.f32 %v2147, %v2056
    %v2187 = vmul.f32 %v2147, %v2057
    %v2188 = vmul.f32 %v2147, %v2058
    %v2189 = vmul.f32 %v2147, %v2059
    %v2190 = vmul.f32 %v2147, %v2060
    %v2191 = vmul.f32 %v2147, %v2061
    %v2192 = vmul.f32 %v2147, %v2062
    %v2193 = vmul.f32 %v2147, %v2063
    %v2194 = vmul.f32 %v2147, %v2064
    %v2195 = vmul.f32 %v2147, %v2065
    %v2196 = vmul.f32 %v2147, %v2066
    %v2197 = vmul.f32 %v2147, %v2067
    %v2198 = vmul.f32 %v2147, %v2068
    %v2199 = vmul.f32 %v2147, %v2069
    %v2200 = vmul.f32 %v2147, %v2070
    %v2201 = vmul.f32 %v2147, %v2071
    %v2202 = vmul.f32 %v2147, %v2072
    %v2203 = vmul.f32 %v2147, %v2073
    %v2204 = vmul.f32 %v2147, %v2074
    %v2205 = vmul.f32 %v2147, %v2075
    %v2206 = vmul.f32 %v2147, %v2076
    %v2207 = vmul.f32 %v2147, %v2077
    %v2208 = vmul.f32 %v2147, %v2078
    %v2209 = vmul.f32 %v2147, %v2079
    %v2210 = vmul.f32 %v2147, %v2080
    %v2211 = vmul.f32 %v2147, %v2081
    %v2212 = vsel %vm2083, %v2018, %v2148
    %v2213 = vsel %vm2084, %v2019, %v2149
    %v2214 = vsel %vm2085, %v2020, %v2150
    %v2215 = vsel %vm2086, %v2021, %v2151
    %v2216 = vsel %vm2087, %v2022, %v2152
    %v2217 = vsel %vm2088, %v2023, %v2153
    %v2218 = vsel %vm2089, %v2024, %v2154
    %v2219 = vsel %vm2090, %v2025, %v2155
    %v2220 = vsel %vm2091, %v2026, %v2156
    %v2221 = vsel %vm2092, %v2027, %v2157
    %v2222 = vsel %vm2093, %v2028, %v2158
    %v2223 = vsel %vm2094, %v2029, %v2159
    %v2224 = vsel %vm2095, %v2030, %v2160
    %v2225 = vsel %vm2096, %v2031, %v2161
    %v2226 = vsel %vm2097, %v2032, %v2162
    %v2227 = vsel %vm2098, %v2033, %v2163
    %v2228 = vsel %vm2099, %v2034, %v2164
    %v2229 = vsel %vm2100, %v2035, %v2165
    %v2230 = vsel %vm2101, %v2036, %v2166
    %v2231 = vsel %vm2102, %v2037, %v2167
    %v2232 = vsel %vm2103, %v2038, %v2168
    %v2233 = vsel %vm2104, %v2039, %v2169
    %v2234 = vsel %vm2105, %v2040, %v2170
    %v2235 = vsel %vm2106, %v2041, %v2171
    %v2236 = vsel %vm2107, %v2042, %v2172
    %v2237 = vsel %vm2108, %v2043, %v2173
    %v2238 = vsel %vm2109, %v2044, %v2174
    %v2239 = vsel %vm2110, %v2045, %v2175
    %v2240 = vsel %vm2111, %v2046, %v2176
    %v2241 = vsel %vm2112, %v2047, %v2177
    %v2242 = vsel %vm2113, %v2048, %v2178
    %v2243 = vsel %vm2114, %v2049, %v2179
    %v2244 = vsel %vm2115, %v2050, %v2180
    %v2245 = vsel %vm2116, %v2051, %v2181
    %v2246 = vsel %vm2117, %v2052, %v2182
    %v2247 = vsel %vm2118, %v2053, %v2183
    %v2248 = vsel %vm2119, %v2054, %v2184
    %v2249 = vsel %vm2120, %v2055, %v2185
    %v2250 = vsel %vm2121, %v2056, %v2186
    %v2251 = vsel %vm2122, %v2057, %v2187
    %v2252 = vsel %vm2123, %v2058, %v2188
    %v2253 = vsel %vm2124, %v2059, %v2189
    %v2254 = vsel %vm2125, %v2060, %v2190
    %v2255 = vsel %vm2126, %v2061, %v2191
    %v2256 = vsel %vm2127, %v2062, %v2192
    %v2257 = vsel %vm2128, %v2063, %v2193
    %v2258 = vsel %vm2129, %v2064, %v2194
    %v2259 = vsel %vm2130, %v2065, %v2195
    %v2260 = vsel %vm2131, %v2066, %v2196
    %v2261 = vsel %vm2132, %v2067, %v2197
    %v2262 = vsel %vm2133, %v2068, %v2198
    %v2263 = vsel %vm2134, %v2069, %v2199
    %v2264 = vsel %vm2135, %v2070, %v2200
    %v2265 = vsel %vm2136, %v2071, %v2201
    %v2266 = vsel %vm2137, %v2072, %v2202
    %v2267 = vsel %vm2138, %v2073, %v2203
    %v2268 = vsel %vm2139, %v2074, %v2204
    %v2269 = vsel %vm2140, %v2075, %v2205
    %v2270 = vsel %vm2141, %v2076, %v2206
    %v2271 = vsel %vm2142, %v2077, %v2207
    %v2272 = vsel %vm2143, %v2078, %v2208
    %v2273 = vsel %vm2144, %v2079, %v2209
    %v2274 = vsel %vm2145, %v2080, %v2210
    %v2275 = vsel %vm2146, %v2081, %v2211
    %2276 = vst.msk [vmem:[%s5] sm:$0xff] %vm1374, %v2212
    %2277 = vst.msk [vmem:[%s5 + $0x8] sm:$0xff] %vm1374, %v2213
    %2278 = vst.msk [vmem:[%s5 + $0x10] sm:$0xff] %vm1374, %v2214
    %2279 = vst.msk [vmem:[%s5 + $0x18] sm:$0xff] %vm1374, %v2215
    %2280 = vst.msk [vmem:[%s5 + $0x20] sm:$0xff] %vm1374, %v2216
    %2281 = vst.msk [vmem:[%s5 + $0x28] sm:$0xff] %vm1374, %v2217
    %2282 = vst.msk [vmem:[%s5 + $0x30] sm:$0xff] %vm1374, %v2218
    %2283 = vst.msk [vmem:[%s5 + $0x38] sm:$0xff] %vm1374, %v2219
    %2284 = vst.msk [vmem:[%s5 + $0x40] sm:$0xff] %vm1374, %v2220
    %2285 = vst.msk [vmem:[%s5 + $0x48] sm:$0xff] %vm1374, %v2221
    %2286 = vst.msk [vmem:[%s5 + $0x50] sm:$0xff] %vm1374, %v2222
    %2287 = vst.msk [vmem:[%s5 + $0x58] sm:$0xff] %vm1374, %v2223
    %2288 = vst.msk [vmem:[%s5 + $0x60] sm:$0xff] %vm1374, %v2224
    %2289 = vst.msk [vmem:[%s5 + $0x68] sm:$0xff] %vm1374, %v2225
    %2290 = vst.msk [vmem:[%s5 + $0x70] sm:$0xff] %vm1374, %v2226
    %2291 = vst.msk [vmem:[%s5 + $0x78] sm:$0xff] %vm1374, %v2227
    %2292 = vst.msk [vmem:[%s5 + $0x80] sm:$0xff] %vm1374, %v2228
    %2293 = vst.msk [vmem:[%s5 + $0x88] sm:$0xff] %vm1374, %v2229
    %2294 = vst.msk [vmem:[%s5 + $0x90] sm:$0xff] %vm1374, %v2230
    %2295 = vst.msk [vmem:[%s5 + $0x98] sm:$0xff] %vm1374, %v2231
    %2296 = vst.msk [vmem:[%s5 + $0xa0] sm:$0xff] %vm1374, %v2232
    %2297 = vst.msk [vmem:[%s5 + $0xa8] sm:$0xff] %vm1374, %v2233
    %2298 = vst.msk [vmem:[%s5 + $0xb0] sm:$0xff] %vm1374, %v2234
    %2299 = vst.msk [vmem:[%s5 + $0xb8] sm:$0xff] %vm1374, %v2235
    %2300 = vst.msk [vmem:[%s5 + $0xc0] sm:$0xff] %vm1374, %v2236
    %2301 = vst.msk [vmem:[%s5 + $0xc8] sm:$0xff] %vm1374, %v2237
    %2302 = vst.msk [vmem:[%s5 + $0xd0] sm:$0xff] %vm1374, %v2238
    %2303 = vst.msk [vmem:[%s5 + $0xd8] sm:$0xff] %vm1374, %v2239
    %2304 = vst.msk [vmem:[%s5 + $0xe0] sm:$0xff] %vm1374, %v2240
    %2305 = vst.msk [vmem:[%s5 + $0xe8] sm:$0xff] %vm1374, %v2241
    %2306 = vst.msk [vmem:[%s5 + $0xf0] sm:$0xff] %vm1374, %v2242
    %2307 = vst.msk [vmem:[%s5 + $0xf8] sm:$0xff] %vm1374, %v2243
    %2308 = vst.msk [vmem:[%s5 + $0x100] sm:$0xff] %vm1374, %v2244
    %2309 = vst.msk [vmem:[%s5 + $0x108] sm:$0xff] %vm1374, %v2245
    %2310 = vst.msk [vmem:[%s5 + $0x110] sm:$0xff] %vm1374, %v2246
    %2311 = vst.msk [vmem:[%s5 + $0x118] sm:$0xff] %vm1374, %v2247
    %2312 = vst.msk [vmem:[%s5 + $0x120] sm:$0xff] %vm1374, %v2248
    %2313 = vst.msk [vmem:[%s5 + $0x128] sm:$0xff] %vm1374, %v2249
    %2314 = vst.msk [vmem:[%s5 + $0x130] sm:$0xff] %vm1374, %v2250
    %2315 = vst.msk [vmem:[%s5 + $0x138] sm:$0xff] %vm1374, %v2251
    %2316 = vst.msk [vmem:[%s5 + $0x140] sm:$0xff] %vm1374, %v2252
    %2317 = vst.msk [vmem:[%s5 + $0x148] sm:$0xff] %vm1374, %v2253
    %2318 = vst.msk [vmem:[%s5 + $0x150] sm:$0xff] %vm1374, %v2254
    %2319 = vst.msk [vmem:[%s5 + $0x158] sm:$0xff] %vm1374, %v2255
    %2320 = vst.msk [vmem:[%s5 + $0x160] sm:$0xff] %vm1374, %v2256
    %2321 = vst.msk [vmem:[%s5 + $0x168] sm:$0xff] %vm1374, %v2257
    %2322 = vst.msk [vmem:[%s5 + $0x170] sm:$0xff] %vm1374, %v2258
    %2323 = vst.msk [vmem:[%s5 + $0x178] sm:$0xff] %vm1374, %v2259
    %2324 = vst.msk [vmem:[%s5 + $0x180] sm:$0xff] %vm1374, %v2260
    %2325 = vst.msk [vmem:[%s5 + $0x188] sm:$0xff] %vm1374, %v2261
    %2326 = vst.msk [vmem:[%s5 + $0x190] sm:$0xff] %vm1374, %v2262
    %2327 = vst.msk [vmem:[%s5 + $0x198] sm:$0xff] %vm1374, %v2263
    %2328 = vst.msk [vmem:[%s5 + $0x1a0] sm:$0xff] %vm1374, %v2264
    %2329 = vst.msk [vmem:[%s5 + $0x1a8] sm:$0xff] %vm1374, %v2265
    %2330 = vst.msk [vmem:[%s5 + $0x1b0] sm:$0xff] %vm1374, %v2266
    %2331 = vst.msk [vmem:[%s5 + $0x1b8] sm:$0xff] %vm1374, %v2267
    %2332 = vst.msk [vmem:[%s5 + $0x1c0] sm:$0xff] %vm1374, %v2268
    %2333 = vst.msk [vmem:[%s5 + $0x1c8] sm:$0xff] %vm1374, %v2269
    %2334 = vst.msk [vmem:[%s5 + $0x1d0] sm:$0xff] %vm1374, %v2270
    %2335 = vst.msk [vmem:[%s5 + $0x1d8] sm:$0xff] %vm1374, %v2271
    %2336 = vst.msk [vmem:[%s5 + $0x1e0] sm:$0xff] %vm1374, %v2272
    %2337 = vst.msk [vmem:[%s5 + $0x1e8] sm:$0xff] %vm1374, %v2273
    %2338 = vst.msk [vmem:[%s5 + $0x1f0] sm:$0xff] %vm1374, %v2274
    %2339 = vst.msk [vmem:[%s5 + $0x1f8] sm:$0xff] %vm1374, %v2275
  $region29: #{sage_forward.3} parent=0 // pred_fallthru
    _
  // Predicated region
  $region30: #{sage_forward.3} parent=0 // pred_check
    _
  $region31: #{sage_forward.3} parent=0 // pred_check_branch
    %2341 = sbr.rel (0) target = $region33
  $region32: #{sage_forward.3} parent=0 // pred_region
    _
  $region33: #{sage_forward.3} parent=0 // pred_fallthru
    _
  // Predicated region
  $region34: #{sage_forward.3} parent=0 // pred_check
    _
  $region35: #{sage_forward.3} parent=0 // pred_check_branch
    %2343 = sbr.rel (0) target = $region37
  $region36: #{sage_forward.3} parent=0 // pred_region
    _
  $region37: #{sage_forward.3} parent=0 // pred_fallthru
    _

</llo_original>
